<compile_context>
chip_gen: v6e
topology: v6e:2x2x1
jax: 0.10.0
libtpu: 0.0.40
codegen_flags: <defaults>
</compile_context>

<pallas_src>
import functools

import jax
import jax.numpy as jnp
from jax import lax
from jax.experimental import pallas as pl
from jax.experimental.pallas import tpu as pltpu


def _round_up(x, m):
    return (x + m - 1) // m * m


def rnn_lstm_kernel(x_ref, w_ih_ref, w_hh_ref, b_ref, w_out_ref, b_out_ref,
                    out_ref, seq_ref, gx_ref, *, seq_len, batch_tile):
    """4-layer LSTM recurrence + linear head for one batch tile.

    x_ref:     (T*Bt, K)      bf16  time-major input, features zero-padded to K
    w_ih_ref:  (L, K, 4*Hg)   bf16  input->gate weights, gates packed at Hg
    w_hh_ref:  (L, Hg, 4*Hg)  bf16  hidden->gate weights, gates packed at Hg
    b_ref:     (L, 1, 4*Hg)   f32   combined bias b_ih + b_hh (zero in padding)
    w_out_ref: (Hg, Op)       bf16  linear head weight (transposed, padded)
    b_out_ref: (1, Op)        f32   linear head bias (padded)
    out_ref:   (Bt, Op)       f32   head output for this batch tile
    seq_ref:   (T*Bt, Hg)     f32   scratch: current layer's output sequence
    gx_ref:    (T*Bt, 4*Hg)   f32   scratch: hoisted input projection (+ bias)
    """
    T, Bt = seq_len, batch_tile
    Hg = seq_ref.shape[1]
    num_layers = w_ih_ref.shape[0]

    # Lane mask selecting the candidate ("g") gate block in the packed gate
    # vector; PyTorch gate order is (i, f, g, o).  Hoisted out of all loops.
    lane = lax.broadcasted_iota(jnp.int32, (Bt, 4 * Hg), 1)
    g_mask = (lane >= 2 * Hg) & (lane < 3 * Hg)

    # Full unroll only for short sequences; cap it to bound vreg pressure.
    unroll = True if T <= 16 else 8

    h_last = None
    for l in range(num_layers):                        # static layer loop
        w_hh_l = w_hh_ref[l]                           # (Hg, 4*Hg) bf16, tiny

        # ---- Hoisted input projection: one MXU matmul for all T steps, bias
        # folded in once.  Layer 0 reads the input block directly; deeper
        # layers read the previous layer's outputs from VMEM scratch.
        if l == 0:
            x_all = x_ref[...]                         # (T*Bt, K) bf16
        else:
            x_all = seq_ref[...].astype(jnp.bfloat16)
        gx_ref[...] = (
            jnp.dot(x_all, w_ih_ref[l], preferred_element_type=jnp.float32)
            + b_ref[l])                                # (T*Bt, 4*Hg) f32

        last_layer = (l == num_layers - 1)

        def step(t, carry, w_hh_l=w_hh_l, last_layer=last_layer):
            h, c = carry                               # (Bt, Hg) f32 state
            row = pl.multiple_of(t * Bt, 8)            # sublane-aligned offset
            # Only this small (Bt,Hg)@(Hg,4Hg) matmul sits on the serial
            # critical path; the packed bf16 RHS is a single small MXU push.
            gates = gx_ref[pl.ds(row, Bt), :] + jnp.dot(
                h.astype(jnp.bfloat16), w_hh_l,
                preferred_element_type=jnp.float32)    # (Bt, 4*Hg) f32
            # One sigmoid + one tanh over the packed gates, VPU select.
            act = jnp.where(g_mask, jnp.tanh(gates), jax.nn.sigmoid(gates))
            i_g = act[:, 0 * Hg:1 * Hg]
            f_g = act[:, 1 * Hg:2 * Hg]
            g_g = act[:, 2 * Hg:3 * Hg]
            o_g = act[:, 3 * Hg:4 * Hg]
            c_new = f_g * c + i_g * g_g
            h_new = o_g * jnp.tanh(c_new)
            if not last_layer:                         # top layer never re-read
                seq_ref[pl.ds(row, Bt), :] = h_new
            return (h_new, c_new)

        zeros = jnp.zeros((Bt, Hg), jnp.float32)
        h_last, _ = lax.fori_loop(0, T, step, (zeros, zeros), unroll=unroll)

    # Linear head on the last time step of the top layer.
    out_ref[...] = (
        jnp.dot(h_last.astype(jnp.bfloat16), w_out_ref[...],
                preferred_element_type=jnp.float32)
        + b_out_ref[...])


def rnn_forward(x, params):
    """x: (B, T, 4) float32 (PyTorch batch_first layout). Returns (B, 4) f32."""
    B, T, I = x.shape
    L, K, G = params["w_ih"].shape          # G = 4 * Hg
    Hg = G // 4
    Op = params["w_out"].shape[1]

    # Batch tiling: pad to 8 sublanes; one grid tile per B_TILE rows so larger
    # batches shard across TensorCores via the "parallel" grid axis.  B_TILE is
    # capped at the MXU height (256) before adding more tiles.
    B_TILE = min(_round_up(max(B, 8), 8), 256)
    Bp = _round_up(B, B_TILE)
    n_tiles = Bp // B_TILE

    # Time-major, zero-pad features I->K and batch B->Bp, then regroup as
    # (n_tiles, T*B_TILE, K) so each grid step sees a sublane-dense 2-D slab
    # and the in-kernel input projection is a single matmul; bf16 for the MXU.
    x_tm = jnp.zeros((T, Bp, K), jnp.float32)
    x_tm = x_tm.at[:, :B, :I].set(jnp.transpose(x, (1, 0, 2)))
    x_tiles = (x_tm.reshape(T, n_tiles, B_TILE, K)
               .transpose(1, 0, 2, 3)
               .reshape(n_tiles, T * B_TILE, K)
               .astype(jnp.bfloat16))

    # VMEM budget from the actual footprint (input/output blocks are
    # double-buffered by the pipeline); capped at 48 MiB for v7x's 64 MiB VMEM.
    def _nbytes(a):
        return a.size * a.dtype.itemsize
    weight_bytes = sum(_nbytes(params[k])
                       for k in ("w_ih", "w_hh", "b", "w_out", "b_out"))
    block_bytes = T * B_TILE * K * 2 + B_TILE * Op * 4
    scratch_bytes = T * B_TILE * Hg * 4 + T * B_TILE * 4 * Hg * 4
    vmem_limit = int(min(max(2 * (weight_bytes + block_bytes) + scratch_bytes
                             + (2 << 20), 8 << 20), 48 << 20))

    out = pl.pallas_call(
        functools.partial(rnn_lstm_kernel, seq_len=T, batch_tile=B_TILE),
        out_shape=jax.ShapeDtypeStruct((Bp, Op), jnp.float32),
        grid=(n_tiles,),
        in_specs=[
            pl.BlockSpec((None, T * B_TILE, K), lambda b: (b, 0, 0)),
            pl.BlockSpec(params["w_ih"].shape, lambda b: (0, 0, 0)),
            pl.BlockSpec(params["w_hh"].shape, lambda b: (0, 0, 0)),
            pl.BlockSpec(params["b"].shape, lambda b: (0, 0, 0)),
            pl.BlockSpec(params["w_out"].shape, lambda b: (0, 0)),
            pl.BlockSpec(params["b_out"].shape, lambda b: (0, 0)),
        ],
        out_specs=pl.BlockSpec((B_TILE, Op), lambda b: (b, 0)),
        scratch_shapes=[
            pltpu.VMEM((T * B_TILE, Hg), jnp.float32),      # layer output seq
            pltpu.VMEM((T * B_TILE, 4 * Hg), jnp.float32),  # hoisted input proj
        ],
        compiler_params=pltpu.CompilerParams(
            dimension_semantics=("parallel",),
            vmem_limit_bytes=vmem_limit),
    )(x_tiles, params["w_ih"], params["w_hh"], params["b"],
      params["w_out"], params["b_out"])
    return out[:B, :4]


def init_params(key, hidden, num_layers=4, input_size=4, out_size=4):
    """nn.LSTM / nn.Linear style init (uniform(-1/sqrt(H), 1/sqrt(H))), packed
    and padded to TPU-friendly shapes.

    Packed gate layout: gate g (PyTorch order i, f, g, o) occupies lanes
    [g*Hg, g*Hg + H) of the 4*Hg gate axis, Hg = round_up(H, 32), so the gate
    axis is a multiple of 128 lanes.  Padding preserves semantics: padded gate
    lanes see zero weights & bias (sigmoid(0)=0.5, tanh(0)=0, c0=0), so padded
    hidden units stay exactly 0."""
    H = hidden
    Hg = _round_up(H, 32)       # per-gate width; 4*Hg multiple of 128 lanes
    K = Hg                      # contraction / state width
    assert input_size <= K, "input_size must fit in the padded hidden width"
    Op = _round_up(out_size, 128)
    k = 1.0 / (float(H) ** 0.5)
    keys = jax.random.split(key, 4 * num_layers + 2)

    w_ih, w_hh, b = [], [], []
    for l in range(num_layers):
        in_sz = input_size if l == 0 else H
        kw_ih, kw_hh, kb_ih, kb_hh = keys[4 * l:4 * l + 4]
        w_ih_l = jax.random.uniform(kw_ih, (4 * H, in_sz), jnp.float32, -k, k)
        w_hh_l = jax.random.uniform(kw_hh, (4 * H, H), jnp.float32, -k, k)
        b_ih_l = jax.random.uniform(kb_ih, (4 * H,), jnp.float32, -k, k)
        b_hh_l = jax.random.uniform(kb_hh, (4 * H,), jnp.float32, -k, k)
        b_l = b_ih_l + b_hh_l

        wi = jnp.zeros((K, 4 * Hg), jnp.float32)
        wh = jnp.zeros((Hg, 4 * Hg), jnp.float32)
        bb = jnp.zeros((4 * Hg,), jnp.float32)
        for g in range(4):        # PyTorch gate order (i, f, g, o)
            wi = wi.at[:in_sz, g * Hg:g * Hg + H].set(
                w_ih_l[g * H:(g + 1) * H, :].T)
            wh = wh.at[:H, g * Hg:g * Hg + H].set(
                w_hh_l[g * H:(g + 1) * H, :].T)
            bb = bb.at[g * Hg:g * Hg + H].set(b_l[g * H:(g + 1) * H])
        w_ih.append(wi)
        w_hh.append(wh)
        b.append(bb[None, :])

    kw_out, kb_out = keys[-2:]
    w_out_l = jax.random.uniform(kw_out, (out_size, H), jnp.float32, -k, k)
    b_out_l = jax.random.uniform(kb_out, (out_size,), jnp.float32, -k, k)
    w_out = jnp.zeros((Hg, Op), jnp.float32).at[:H, :out_size].set(w_out_l.T)
    b_out = jnp.zeros((Op,), jnp.float32).at[:out_size].set(b_out_l)

    return dict(
        w_ih=jnp.stack(w_ih).astype(jnp.bfloat16),   # (L, K, 4*Hg) bf16
        w_hh=jnp.stack(w_hh).astype(jnp.bfloat16),   # (L, Hg, 4*Hg) bf16
        b=jnp.stack(b),                              # (L, 1, 4*Hg) f32
        w_out=w_out.astype(jnp.bfloat16),            # (Hg, Op) bf16
        b_out=b_out[None, :],                        # (1, Op) f32
    )


def rnn_reference(x, params):
    """Pure-JAX mirror of the kernel math (bf16 matmul operands, f32 state /
    accumulation), PyTorch LSTM semantics with the packed-gate layout."""
    B, T, I = x.shape
    L, K, G = params["w_ih"].shape
    Hg = G // 4
    seq = jnp.zeros((T, B, K), jnp.float32).at[:, :, :I].set(
        jnp.transpose(x, (1, 0, 2)))
    h = jnp.zeros((B, Hg), jnp.float32)
    for l in range(L):
        w_ih_l, w_hh_l, b_l = params["w_ih"][l], params["w_hh"][l], params["b"][l]

        def step(carry, x_t, w_ih_l=w_ih_l, w_hh_l=w_hh_l, b_l=b_l):
            h, c = carry
            gates = ((jnp.dot(x_t.astype(jnp.bfloat16), w_ih_l,
                              preferred_element_type=jnp.float32) + b_l)
                     + jnp.dot(h.astype(jnp.bfloat16), w_hh_l,
                               preferred_element_type=jnp.float32))
            i = jax.nn.sigmoid(gates[:, 0 * Hg:1 * Hg])
            f = jax.nn.sigmoid(gates[:, 1 * Hg:2 * Hg])
            g = jnp.tanh(gates[:, 2 * Hg:3 * Hg])
            o = jax.nn.sigmoid(gates[:, 3 * Hg:4 * Hg])
            c = f * c + i * g
            h = o * jnp.tanh(c)
            return (h, c), h

        init = (jnp.zeros((B, Hg), jnp.float32), jnp.zeros((B, Hg), jnp.float32))
        (h, _), seq = lax.scan(step, init, seq)
    out = (jnp.dot(h.astype(jnp.bfloat16), params["w_out"],
                   preferred_element_type=jnp.float32) + params["b_out"])
    return out[:, :4]


if __name__ == "__main__":
    key = jax.random.PRNGKey(0)
    kp, kx = jax.random.split(key)

    B, T, I, H = 2, 8, 4, 32          # batch, seq len, input features, hidden
    params = init_params(kp, H)
    x = jax.random.normal(kx, (B, T, I), jnp.float32)

    out = jax.block_until_ready(rnn_forward(x, params))
    ref = rnn_reference(x, params)

    assert out.shape == (B, 4), out.shape
    assert jnp.allclose(out, ref, atol=2e-3, rtol=2e-3), (out, ref)

    print("KERNEL_OK")
</pallas_src>

<mosaic_0001>
module attributes {stable_mosaic.version = 11 : i64} {
  func.func @rnn_lstm_kernel(%arg0: i32, %arg1: memref<1x64x32xbf16, #tpu.memory_space<vmem>>, %arg2: memref<4x32x128xbf16, #tpu.memory_space<vmem>>, %arg3: memref<4x32x128xbf16, #tpu.memory_space<vmem>>, %arg4: memref<4x1x128xf32, #tpu.memory_space<vmem>>, %arg5: memref<32x128xbf16, #tpu.memory_space<vmem>>, %arg6: memref<1x128xf32, #tpu.memory_space<vmem>>, %arg7: memref<8x128xf32, #tpu.memory_space<vmem>>, %arg8: memref<64x32xf32, #tpu.memory_space<vmem>>, %arg9: memref<64x128xf32, #tpu.memory_space<vmem>>) attributes {dimension_semantics = [#tpu.dimension_semantics<parallel>], iteration_bounds = array<i64: 1>, scalar_prefetch = 0 : i64, scratch_operands = 2 : i64, tpu.core_type = #tpu.core_type<tc>, window_params = [{transform_indices = @transform_0, window_bounds = array<i64: 1, 64, 32>}, {pipeline_mode = #tpu.pipeline_mode<synchronous>, transform_indices = @transform_1, window_bounds = array<i64: 4, 32, 128>}, {pipeline_mode = #tpu.pipeline_mode<synchronous>, transform_indices = @transform_2, window_bounds = array<i64: 4, 32, 128>}, {pipeline_mode = #tpu.pipeline_mode<synchronous>, transform_indices = @transform_3, window_bounds = array<i64: 4, 1, 128>}, {pipeline_mode = #tpu.pipeline_mode<synchronous>, transform_indices = @transform_4, window_bounds = array<i64: 32, 128>}, {pipeline_mode = #tpu.pipeline_mode<synchronous>, transform_indices = @transform_5, window_bounds = array<i64: 1, 128>}, {transform_indices = @transform_6, window_bounds = array<i64: 8, 128>}]} {
    %0 = tpu.iota {dimensions = array<i32: 1>} : vector<8x128xi32>
    %c64_i32 = arith.constant 64 : i32
    %1 = vector.broadcast %c64_i32 : i32 to vector<8x128xi32>
    %2 = arith.cmpi sge, %0, %1 : vector<8x128xi32>
    %c96_i32 = arith.constant 96 : i32
    %3 = vector.broadcast %c96_i32 : i32 to vector<8x128xi32>
    %4 = arith.cmpi slt, %0, %3 : vector<8x128xi32>
    %5 = arith.andi %2, %4 : vector<8x128xi1>
    %c0 = arith.constant 0 : index
    %c0_0 = arith.constant 0 : index
    %c0_1 = arith.constant 0 : index
    %6 = vector.load %arg3[%c0, %c0_0, %c0_1] : memref<4x32x128xbf16, #tpu.memory_space<vmem>>, vector<1x32x128xbf16>
    %7 = vector.shape_cast %6 : vector<1x32x128xbf16> to vector<32x128xbf16>
    %c0_2 = arith.constant 0 : index
    %c0_3 = arith.constant 0 : index
    %c0_4 = arith.constant 0 : index
    %8 = vector.load %arg1[%c0_2, %c0_3, %c0_4] : memref<1x64x32xbf16, #tpu.memory_space<vmem>>, vector<1x64x32xbf16>
    %9 = vector.shape_cast %8 : vector<1x64x32xbf16> to vector<64x32xbf16>
    %c0_5 = arith.constant 0 : index
    %c0_6 = arith.constant 0 : index
    %c0_7 = arith.constant 0 : index
    %10 = vector.load %arg2[%c0_5, %c0_6, %c0_7] : memref<4x32x128xbf16, #tpu.memory_space<vmem>>, vector<1x32x128xbf16>
    %11 = vector.shape_cast %10 : vector<1x32x128xbf16> to vector<32x128xbf16>
    %cst = arith.constant dense<0.000000e+00> : vector<64x128xf32>
    %12 = tpu.matmul %9, %11, %cst {dimension_numbers = #tpu.dot_dimension_numbers<[1], [0], [0], [1], [0, 0, 1, 1], [], []>} : vector<64x32xbf16>, vector<32x128xbf16>, vector<64x128xf32> -> vector<64x128xf32>
    %c0_8 = arith.constant 0 : index
    %c0_9 = arith.constant 0 : index
    %c0_10 = arith.constant 0 : index
    %13 = vector.load %arg4[%c0_8, %c0_9, %c0_10] : memref<4x1x128xf32, #tpu.memory_space<vmem>>, vector<1x1x128xf32>
    %14 = vector.shape_cast %13 : vector<1x1x128xf32> to vector<1x128xf32>
    %15 = vector.broadcast %14 : vector<1x128xf32> to vector<64x128xf32>
    %16 = arith.addf %12, %15 : vector<64x128xf32>
    %c0_11 = arith.constant 0 : index
    %c0_12 = arith.constant 0 : index
    %17 = vector.load %arg9[%c0_11, %c0_12] : memref<64x128xf32, #tpu.memory_space<vmem>>, vector<64x128xf32>
    tpu.vector_store %arg9[%c0_11, %c0_12], %16 {strides = array<i32>} : memref<64x128xf32, #tpu.memory_space<vmem>>, vector<64x128xf32>,
    %cst_13 = arith.constant 0.000000e+00 : f32
    %18 = vector.broadcast %cst_13 : f32 to vector<8x32xf32>
    %c0_i32 = arith.constant 0 : i32
    %c8_i32 = arith.constant 8 : i32
    %19 = arith.muli %c0_i32, %c8_i32 : i32
    %20 = tpu.assume_multiple %19, 8 : i32
    %21 = arith.index_cast %20 : i32 to index
    %c0_14 = arith.constant 0 : index
    %22 = vector.load %arg9[%21, %c0_14] : memref<64x128xf32, #tpu.memory_space<vmem>>, vector<8x128xf32>
    %23 = arith.truncf %18 : vector<8x32xf32> to vector<8x32xbf16>
    %cst_15 = arith.constant dense<0.000000e+00> : vector<8x128xf32>
    %24 = tpu.matmul %23, %7, %cst_15 {dimension_numbers = #tpu.dot_dimension_numbers<[1], [0], [0], [1], [0, 0, 1, 1], [], []>} : vector<8x32xbf16>, vector<32x128xbf16>, vector<8x128xf32> -> vector<8x128xf32>
    %25 = arith.addf %22, %24 : vector<8x128xf32>
    %26 = math.tanh %25 : vector<8x128xf32>
    %27 = arith.negf %25 : vector<8x128xf32>
    %28 = math.exp %27 : vector<8x128xf32>
    %cst_16 = arith.constant 1.000000e+00 : f32
    %29 = vector.broadcast %cst_16 : f32 to vector<8x128xf32>
    %30 = arith.addf %29, %28 : vector<8x128xf32>
    %31 = arith.divf %29, %30 : vector<8x128xf32>
    %32 = arith.select %5, %26, %31 : vector<8x128xi1>, vector<8x128xf32>
    %33 = vector.extract_strided_slice %32 {offsets = [0, 0], sizes = [8, 32], strides = [1, 1]} : vector<8x128xf32> to vector<8x32xf32>
    %34 = vector.extract_strided_slice %32 {offsets = [0, 32], sizes = [8, 32], strides = [1, 1]} : vector<8x128xf32> to vector<8x32xf32>
    %35 = vector.extract_strided_slice %32 {offsets = [0, 64], sizes = [8, 32], strides = [1, 1]} : vector<8x128xf32> to vector<8x32xf32>
    %36 = vector.extract_strided_slice %32 {offsets = [0, 96], sizes = [8, 32], strides = [1, 1]} : vector<8x128xf32> to vector<8x32xf32>
    %37 = arith.mulf %34, %18 : vector<8x32xf32>
    %38 = arith.mulf %33, %35 : vector<8x32xf32>
    %39 = arith.addf %37, %38 : vector<8x32xf32>
    %40 = math.tanh %39 : vector<8x32xf32>
    %41 = arith.mulf %36, %40 : vector<8x32xf32>
    %42 = arith.index_cast %20 : i32 to index
    %c0_17 = arith.constant 0 : index
    %43 = vector.load %arg8[%42, %c0_17] : memref<64x32xf32, #tpu.memory_space<vmem>>, vector<8x32xf32>
    tpu.vector_store %arg8[%42, %c0_17], %41 {strides = array<i32>} : memref<64x32xf32, #tpu.memory_space<vmem>>, vector<8x32xf32>,
    %c1_i32 = arith.constant 1 : i32
    %c8_i32_18 = arith.constant 8 : i32
    %44 = arith.muli %c1_i32, %c8_i32_18 : i32
    %45 = tpu.assume_multiple %44, 8 : i32
    %46 = arith.index_cast %45 : i32 to index
    %c0_19 = arith.constant 0 : index
    %47 = vector.load %arg9[%46, %c0_19] : memref<64x128xf32, #tpu.memory_space<vmem>>, vector<8x128xf32>
    %48 = arith.truncf %41 : vector<8x32xf32> to vector<8x32xbf16>
    %cst_20 = arith.constant dense<0.000000e+00> : vector<8x128xf32>
    %49 = tpu.matmul %48, %7, %cst_20 {dimension_numbers = #tpu.dot_dimension_numbers<[1], [0], [0], [1], [0, 0, 1, 1], [], []>} : vector<8x32xbf16>, vector<32x128xbf16>, vector<8x128xf32> -> vector<8x128xf32>
    %50 = arith.addf %47, %49 : vector<8x128xf32>
    %51 = math.tanh %50 : vector<8x128xf32>
    %52 = arith.negf %50 : vector<8x128xf32>
    %53 = math.exp %52 : vector<8x128xf32>
    %cst_21 = arith.constant 1.000000e+00 : f32
    %54 = vector.broadcast %cst_21 : f32 to vector<8x128xf32>
    %55 = arith.addf %54, %53 : vector<8x128xf32>
    %56 = arith.divf %54, %55 : vector<8x128xf32>
    %57 = arith.select %5, %51, %56 : vector<8x128xi1>, vector<8x128xf32>
    %58 = vector.extract_strided_slice %57 {offsets = [0, 0], sizes = [8, 32], strides = [1, 1]} : vector<8x128xf32> to vector<8x32xf32>
    %59 = vector.extract_strided_slice %57 {offsets = [0, 32], sizes = [8, 32], strides = [1, 1]} : vector<8x128xf32> to vector<8x32xf32>
    %60 = vector.extract_strided_slice %57 {offsets = [0, 64], sizes = [8, 32], strides = [1, 1]} : vector<8x128xf32> to vector<8x32xf32>
    %61 = vector.extract_strided_slice %57 {offsets = [0, 96], sizes = [8, 32], strides = [1, 1]} : vector<8x128xf32> to vector<8x32xf32>
    %62 = arith.mulf %59, %39 : vector<8x32xf32>
    %63 = arith.mulf %58, %60 : vector<8x32xf32>
    %64 = arith.addf %62, %63 : vector<8x32xf32>
    %65 = math.tanh %64 : vector<8x32xf32>
    %66 = arith.mulf %61, %65 : vector<8x32xf32>
    %67 = arith.index_cast %45 : i32 to index
    %c0_22 = arith.constant 0 : index
    %68 = vector.load %arg8[%67, %c0_22] : memref<64x32xf32, #tpu.memory_space<vmem>>, vector<8x32xf32>
    tpu.vector_store %arg8[%67, %c0_22], %66 {strides = array<i32>} : memref<64x32xf32, #tpu.memory_space<vmem>>, vector<8x32xf32>,
    %c2_i32 = arith.constant 2 : i32
    %c8_i32_23 = arith.constant 8 : i32
    %69 = arith.muli %c2_i32, %c8_i32_23 : i32
    %70 = tpu.assume_multiple %69, 8 : i32
    %71 = arith.index_cast %70 : i32 to index
    %c0_24 = arith.constant 0 : index
    %72 = vector.load %arg9[%71, %c0_24] : memref<64x128xf32, #tpu.memory_space<vmem>>, vector<8x128xf32>
    %73 = arith.truncf %66 : vector<8x32xf32> to vector<8x32xbf16>
    %cst_25 = arith.constant dense<0.000000e+00> : vector<8x128xf32>
    %74 = tpu.matmul %73, %7, %cst_25 {dimension_numbers = #tpu.dot_dimension_numbers<[1], [0], [0], [1], [0, 0, 1, 1], [], []>} : vector<8x32xbf16>, vector<32x128xbf16>, vector<8x128xf32> -> vector<8x128xf32>
    %75 = arith.addf %72, %74 : vector<8x128xf32>
    %76 = math.tanh %75 : vector<8x128xf32>
    %77 = arith.negf %75 : vector<8x128xf32>
    %78 = math.exp %77 : vector<8x128xf32>
    %cst_26 = arith.constant 1.000000e+00 : f32
    %79 = vector.broadcast %cst_26 : f32 to vector<8x128xf32>
    %80 = arith.addf %79, %78 : vector<8x128xf32>
    %81 = arith.divf %79, %80 : vector<8x128xf32>
    %82 = arith.select %5, %76, %81 : vector<8x128xi1>, vector<8x128xf32>
    %83 = vector.extract_strided_slice %82 {offsets = [0, 0], sizes = [8, 32], strides = [1, 1]} : vector<8x128xf32> to vector<8x32xf32>
    %84 = vector.extract_strided_slice %82 {offsets = [0, 32], sizes = [8, 32], strides = [1, 1]} : vector<8x128xf32> to vector<8x32xf32>
    %85 = vector.extract_strided_slice %82 {offsets = [0, 64], sizes = [8, 32], strides = [1, 1]} : vector<8x128xf32> to vector<8x32xf32>
    %86 = vector.extract_strided_slice %82 {offsets = [0, 96], sizes = [8, 32], strides = [1, 1]} : vector<8x128xf32> to vector<8x32xf32>
    %87 = arith.mulf %84, %64 : vector<8x32xf32>
    %88 = arith.mulf %83, %85 : vector<8x32xf32>
    %89 = arith.addf %87, %88 : vector<8x32xf32>
    %90 = math.tanh %89 : vector<8x32xf32>
    %91 = arith.mulf %86, %90 : vector<8x32xf32>
    %92 = arith.index_cast %70 : i32 to index
    %c0_27 = arith.constant 0 : index
    %93 = vector.load %arg8[%92, %c0_27] : memref<64x32xf32, #tpu.memory_space<vmem>>, vector<8x32xf32>
    tpu.vector_store %arg8[%92, %c0_27], %91 {strides = array<i32>} : memref<64x32xf32, #tpu.memory_space<vmem>>, vector<8x32xf32>,
    %c3_i32 = arith.constant 3 : i32
    %c8_i32_28 = arith.constant 8 : i32
    %94 = arith.muli %c3_i32, %c8_i32_28 : i32
    %95 = tpu.assume_multiple %94, 8 : i32
    %96 = arith.index_cast %95 : i32 to index
    %c0_29 = arith.constant 0 : index
    %97 = vector.load %arg9[%96, %c0_29] : memref<64x128xf32, #tpu.memory_space<vmem>>, vector<8x128xf32>
    %98 = arith.truncf %91 : vector<8x32xf32> to vector<8x32xbf16>
    %cst_30 = arith.constant dense<0.000000e+00> : vector<8x128xf32>
    %99 = tpu.matmul %98, %7, %cst_30 {dimension_numbers = #tpu.dot_dimension_numbers<[1], [0], [0], [1], [0, 0, 1, 1], [], []>} : vector<8x32xbf16>, vector<32x128xbf16>, vector<8x128xf32> -> vector<8x128xf32>
    %100 = arith.addf %97, %99 : vector<8x128xf32>
    %101 = math.tanh %100 : vector<8x128xf32>
    %102 = arith.negf %100 : vector<8x128xf32>
    %103 = math.exp %102 : vector<8x128xf32>
    %cst_31 = arith.constant 1.000000e+00 : f32
    %104 = vector.broadcast %cst_31 : f32 to vector<8x128xf32>
    %105 = arith.addf %104, %103 : vector<8x128xf32>
    %106 = arith.divf %104, %105 : vector<8x128xf32>
    %107 = arith.select %5, %101, %106 : vector<8x128xi1>, vector<8x128xf32>
    %108 = vector.extract_strided_slice %107 {offsets = [0, 0], sizes = [8, 32], strides = [1, 1]} : vector<8x128xf32> to vector<8x32xf32>
    %109 = vector.extract_strided_slice %107 {offsets = [0, 32], sizes = [8, 32], strides = [1, 1]} : vector<8x128xf32> to vector<8x32xf32>
    %110 = vector.extract_strided_slice %107 {offsets = [0, 64], sizes = [8, 32], strides = [1, 1]} : vector<8x128xf32> to vector<8x32xf32>
    %111 = vector.extract_strided_slice %107 {offsets = [0, 96], sizes = [8, 32], strides = [1, 1]} : vector<8x128xf32> to vector<8x32xf32>
    %112 = arith.mulf %109, %89 : vector<8x32xf32>
    %113 = arith.mulf %108, %110 : vector<8x32xf32>
    %114 = arith.addf %112, %113 : vector<8x32xf32>
    %115 = math.tanh %114 : vector<8x32xf32>
    %116 = arith.mulf %111, %115 : vector<8x32xf32>
    %117 = arith.index_cast %95 : i32 to index
    %c0_32 = arith.constant 0 : index
    %118 = vector.load %arg8[%117, %c0_32] : memref<64x32xf32, #tpu.memory_space<vmem>>, vector<8x32xf32>
    tpu.vector_store %arg8[%117, %c0_32], %116 {strides = array<i32>} : memref<64x32xf32, #tpu.memory_space<vmem>>, vector<8x32xf32>,
    %c4_i32 = arith.constant 4 : i32
    %c8_i32_33 = arith.constant 8 : i32
    %119 = arith.muli %c4_i32, %c8_i32_33 : i32
    %120 = tpu.assume_multiple %119, 8 : i32
    %121 = arith.index_cast %120 : i32 to index
    %c0_34 = arith.constant 0 : index
    %122 = vector.load %arg9[%121, %c0_34] : memref<64x128xf32, #tpu.memory_space<vmem>>, vector<8x128xf32>
    %123 = arith.truncf %116 : vector<8x32xf32> to vector<8x32xbf16>
    %cst_35 = arith.constant dense<0.000000e+00> : vector<8x128xf32>
    %124 = tpu.matmul %123, %7, %cst_35 {dimension_numbers = #tpu.dot_dimension_numbers<[1], [0], [0], [1], [0, 0, 1, 1], [], []>} : vector<8x32xbf16>, vector<32x128xbf16>, vector<8x128xf32> -> vector<8x128xf32>
    %125 = arith.addf %122, %124 : vector<8x128xf32>
    %126 = math.tanh %125 : vector<8x128xf32>
    %127 = arith.negf %125 : vector<8x128xf32>
    %128 = math.exp %127 : vector<8x128xf32>
    %cst_36 = arith.constant 1.000000e+00 : f32
    %129 = vector.broadcast %cst_36 : f32 to vector<8x128xf32>
    %130 = arith.addf %129, %128 : vector<8x128xf32>
    %131 = arith.divf %129, %130 : vector<8x128xf32>
    %132 = arith.select %5, %126, %131 : vector<8x128xi1>, vector<8x128xf32>
    %133 = vector.extract_strided_slice %132 {offsets = [0, 0], sizes = [8, 32], strides = [1, 1]} : vector<8x128xf32> to vector<8x32xf32>
    %134 = vector.extract_strided_slice %132 {offsets = [0, 32], sizes = [8, 32], strides = [1, 1]} : vector<8x128xf32> to vector<8x32xf32>
    %135 = vector.extract_strided_slice %132 {offsets = [0, 64], sizes = [8, 32], strides = [1, 1]} : vector<8x128xf32> to vector<8x32xf32>
    %136 = vector.extract_strided_slice %132 {offsets = [0, 96], sizes = [8, 32], strides = [1, 1]} : vector<8x128xf32> to vector<8x32xf32>
    %137 = arith.mulf %134, %114 : vector<8x32xf32>
    %138 = arith.mulf %133, %135 : vector<8x32xf32>
    %139 = arith.addf %137, %138 : vector<8x32xf32>
    %140 = math.tanh %139 : vector<8x32xf32>
    %141 = arith.mulf %136, %140 : vector<8x32xf32>
    %142 = arith.index_cast %120 : i32 to index
    %c0_37 = arith.constant 0 : index
    %143 = vector.load %arg8[%142, %c0_37] : memref<64x32xf32, #tpu.memory_space<vmem>>, vector<8x32xf32>
    tpu.vector_store %arg8[%142, %c0_37], %141 {strides = array<i32>} : memref<64x32xf32, #tpu.memory_space<vmem>>, vector<8x32xf32>,
    %c5_i32 = arith.constant 5 : i32
    %c8_i32_38 = arith.constant 8 : i32
    %144 = arith.muli %c5_i32, %c8_i32_38 : i32
    %145 = tpu.assume_multiple %144, 8 : i32
    %146 = arith.index_cast %145 : i32 to index
    %c0_39 = arith.constant 0 : index
    %147 = vector.load %arg9[%146, %c0_39] : memref<64x128xf32, #tpu.memory_space<vmem>>, vector<8x128xf32>
    %148 = arith.truncf %141 : vector<8x32xf32> to vector<8x32xbf16>
    %cst_40 = arith.constant dense<0.000000e+00> : vector<8x128xf32>
    %149 = tpu.matmul %148, %7, %cst_40 {dimension_numbers = #tpu.dot_dimension_numbers<[1], [0], [0], [1], [0, 0, 1, 1], [], []>} : vector<8x32xbf16>, vector<32x128xbf16>, vector<8x128xf32> -> vector<8x128xf32>
    %150 = arith.addf %147, %149 : vector<8x128xf32>
    %151 = math.tanh %150 : vector<8x128xf32>
    %152 = arith.negf %150 : vector<8x128xf32>
    %153 = math.exp %152 : vector<8x128xf32>
    %cst_41 = arith.constant 1.000000e+00 : f32
    %154 = vector.broadcast %cst_41 : f32 to vector<8x128xf32>
    %155 = arith.addf %154, %153 : vector<8x128xf32>
    %156 = arith.divf %154, %155 : vector<8x128xf32>
    %157 = arith.select %5, %151, %156 : vector<8x128xi1>, vector<8x128xf32>
    %158 = vector.extract_strided_slice %157 {offsets = [0, 0], sizes = [8, 32], strides = [1, 1]} : vector<8x128xf32> to vector<8x32xf32>
    %159 = vector.extract_strided_slice %157 {offsets = [0, 32], sizes = [8, 32], strides = [1, 1]} : vector<8x128xf32> to vector<8x32xf32>
    %160 = vector.extract_strided_slice %157 {offsets = [0, 64], sizes = [8, 32], strides = [1, 1]} : vector<8x128xf32> to vector<8x32xf32>
    %161 = vector.extract_strided_slice %157 {offsets = [0, 96], sizes = [8, 32], strides = [1, 1]} : vector<8x128xf32> to vector<8x32xf32>
    %162 = arith.mulf %159, %139 : vector<8x32xf32>
    %163 = arith.mulf %158, %160 : vector<8x32xf32>
    %164 = arith.addf %162, %163 : vector<8x32xf32>
    %165 = math.tanh %164 : vector<8x32xf32>
    %166 = arith.mulf %161, %165 : vector<8x32xf32>
    %167 = arith.index_cast %145 : i32 to index
    %c0_42 = arith.constant 0 : index
    %168 = vector.load %arg8[%167, %c0_42] : memref<64x32xf32, #tpu.memory_space<vmem>>, vector<8x32xf32>
    tpu.vector_store %arg8[%167, %c0_42], %166 {strides = array<i32>} : memref<64x32xf32, #tpu.memory_space<vmem>>, vector<8x32xf32>,
    %c6_i32 = arith.constant 6 : i32
    %c8_i32_43 = arith.constant 8 : i32
    %169 = arith.muli %c6_i32, %c8_i32_43 : i32
    %170 = tpu.assume_multiple %169, 8 : i32
    %171 = arith.index_cast %170 : i32 to index
    %c0_44 = arith.constant 0 : index
    %172 = vector.load %arg9[%171, %c0_44] : memref<64x128xf32, #tpu.memory_space<vmem>>, vector<8x128xf32>
    %173 = arith.truncf %166 : vector<8x32xf32> to vector<8x32xbf16>
    %cst_45 = arith.constant dense<0.000000e+00> : vector<8x128xf32>
    %174 = tpu.matmul %173, %7, %cst_45 {dimension_numbers = #tpu.dot_dimension_numbers<[1], [0], [0], [1], [0, 0, 1, 1], [], []>} : vector<8x32xbf16>, vector<32x128xbf16>, vector<8x128xf32> -> vector<8x128xf32>
    %175 = arith.addf %172, %174 : vector<8x128xf32>
    %176 = math.tanh %175 : vector<8x128xf32>
    %177 = arith.negf %175 : vector<8x128xf32>
    %178 = math.exp %177 : vector<8x128xf32>
    %cst_46 = arith.constant 1.000000e+00 : f32
    %179 = vector.broadcast %cst_46 : f32 to vector<8x128xf32>
    %180 = arith.addf %179, %178 : vector<8x128xf32>
    %181 = arith.divf %179, %180 : vector<8x128xf32>
    %182 = arith.select %5, %176, %181 : vector<8x128xi1>, vector<8x128xf32>
    %183 = vector.extract_strided_slice %182 {offsets = [0, 0], sizes = [8, 32], strides = [1, 1]} : vector<8x128xf32> to vector<8x32xf32>
    %184 = vector.extract_strided_slice %182 {offsets = [0, 32], sizes = [8, 32], strides = [1, 1]} : vector<8x128xf32> to vector<8x32xf32>
    %185 = vector.extract_strided_slice %182 {offsets = [0, 64], sizes = [8, 32], strides = [1, 1]} : vector<8x128xf32> to vector<8x32xf32>
    %186 = vector.extract_strided_slice %182 {offsets = [0, 96], sizes = [8, 32], strides = [1, 1]} : vector<8x128xf32> to vector<8x32xf32>
    %187 = arith.mulf %184, %164 : vector<8x32xf32>
    %188 = arith.mulf %183, %185 : vector<8x32xf32>
    %189 = arith.addf %187, %188 : vector<8x32xf32>
    %190 = math.tanh %189 : vector<8x32xf32>
    %191 = arith.mulf %186, %190 : vector<8x32xf32>
    %192 = arith.index_cast %170 : i32 to index
    %c0_47 = arith.constant 0 : index
    %193 = vector.load %arg8[%192, %c0_47] : memref<64x32xf32, #tpu.memory_space<vmem>>, vector<8x32xf32>
    tpu.vector_store %arg8[%192, %c0_47], %191 {strides = array<i32>} : memref<64x32xf32, #tpu.memory_space<vmem>>, vector<8x32xf32>,
    %c7_i32 = arith.constant 7 : i32
    %c8_i32_48 = arith.constant 8 : i32
    %194 = arith.muli %c7_i32, %c8_i32_48 : i32
    %195 = tpu.assume_multiple %194, 8 : i32
    %196 = arith.index_cast %195 : i32 to index
    %c0_49 = arith.constant 0 : index
    %197 = vector.load %arg9[%196, %c0_49] : memref<64x128xf32, #tpu.memory_space<vmem>>, vector<8x128xf32>
    %198 = arith.truncf %191 : vector<8x32xf32> to vector<8x32xbf16>
    %cst_50 = arith.constant dense<0.000000e+00> : vector<8x128xf32>
    %199 = tpu.matmul %198, %7, %cst_50 {dimension_numbers = #tpu.dot_dimension_numbers<[1], [0], [0], [1], [0, 0, 1, 1], [], []>} : vector<8x32xbf16>, vector<32x128xbf16>, vector<8x128xf32> -> vector<8x128xf32>
    %200 = arith.addf %197, %199 : vector<8x128xf32>
    %201 = math.tanh %200 : vector<8x128xf32>
    %202 = arith.negf %200 : vector<8x128xf32>
    %203 = math.exp %202 : vector<8x128xf32>
    %cst_51 = arith.constant 1.000000e+00 : f32
    %204 = vector.broadcast %cst_51 : f32 to vector<8x128xf32>
    %205 = arith.addf %204, %203 : vector<8x128xf32>
    %206 = arith.divf %204, %205 : vector<8x128xf32>
    %207 = arith.select %5, %201, %206 : vector<8x128xi1>, vector<8x128xf32>
    %208 = vector.extract_strided_slice %207 {offsets = [0, 0], sizes = [8, 32], strides = [1, 1]} : vector<8x128xf32> to vector<8x32xf32>
    %209 = vector.extract_strided_slice %207 {offsets = [0, 32], sizes = [8, 32], strides = [1, 1]} : vector<8x128xf32> to vector<8x32xf32>
    %210 = vector.extract_strided_slice %207 {offsets = [0, 64], sizes = [8, 32], strides = [1, 1]} : vector<8x128xf32> to vector<8x32xf32>
    %211 = vector.extract_strided_slice %207 {offsets = [0, 96], sizes = [8, 32], strides = [1, 1]} : vector<8x128xf32> to vector<8x32xf32>
    %212 = arith.mulf %209, %189 : vector<8x32xf32>
    %213 = arith.mulf %208, %210 : vector<8x32xf32>
    %214 = arith.addf %212, %213 : vector<8x32xf32>
    %215 = math.tanh %214 : vector<8x32xf32>
    %216 = arith.mulf %211, %215 : vector<8x32xf32>
    %217 = arith.index_cast %195 : i32 to index
    %c0_52 = arith.constant 0 : index
    %218 = vector.load %arg8[%217, %c0_52] : memref<64x32xf32, #tpu.memory_space<vmem>>, vector<8x32xf32>
    tpu.vector_store %arg8[%217, %c0_52], %216 {strides = array<i32>} : memref<64x32xf32, #tpu.memory_space<vmem>>, vector<8x32xf32>,
    %c8_i32_53 = arith.constant 8 : i32
    %c1 = arith.constant 1 : index
    %c0_54 = arith.constant 0 : index
    %c0_55 = arith.constant 0 : index
    %219 = vector.load %arg3[%c1, %c0_54, %c0_55] : memref<4x32x128xbf16, #tpu.memory_space<vmem>>, vector<1x32x128xbf16>
    %220 = vector.shape_cast %219 : vector<1x32x128xbf16> to vector<32x128xbf16>
    %c0_56 = arith.constant 0 : index
    %c0_57 = arith.constant 0 : index
    %221 = vector.load %arg8[%c0_56, %c0_57] : memref<64x32xf32, #tpu.memory_space<vmem>>, vector<64x32xf32>
    %222 = arith.truncf %221 : vector<64x32xf32> to vector<64x32xbf16>
    %c1_58 = arith.constant 1 : index
    %c0_59 = arith.constant 0 : index
    %c0_60 = arith.constant 0 : index
    %223 = vector.load %arg2[%c1_58, %c0_59, %c0_60] : memref<4x32x128xbf16, #tpu.memory_space<vmem>>, vector<1x32x128xbf16>
    %224 = vector.shape_cast %223 : vector<1x32x128xbf16> to vector<32x128xbf16>
    %cst_61 = arith.constant dense<0.000000e+00> : vector<64x128xf32>
    %225 = tpu.matmul %222, %224, %cst_61 {dimension_numbers = #tpu.dot_dimension_numbers<[1], [0], [0], [1], [0, 0, 1, 1], [], []>} : vector<64x32xbf16>, vector<32x128xbf16>, vector<64x128xf32> -> vector<64x128xf32>
    %c1_62 = arith.constant 1 : index
    %c0_63 = arith.constant 0 : index
    %c0_64 = arith.constant 0 : index
    %226 = vector.load %arg4[%c1_62, %c0_63, %c0_64] : memref<4x1x128xf32, #tpu.memory_space<vmem>>, vector<1x1x128xf32>
    %227 = vector.shape_cast %226 : vector<1x1x128xf32> to vector<1x128xf32>
    %228 = vector.broadcast %227 : vector<1x128xf32> to vector<64x128xf32>
    %229 = arith.addf %225, %228 : vector<64x128xf32>
    %c0_65 = arith.constant 0 : index
    %c0_66 = arith.constant 0 : index
    %230 = vector.load %arg9[%c0_65, %c0_66] : memref<64x128xf32, #tpu.memory_space<vmem>>, vector<64x128xf32>
    tpu.vector_store %arg9[%c0_65, %c0_66], %229 {strides = array<i32>} : memref<64x128xf32, #tpu.memory_space<vmem>>, vector<64x128xf32>,
    %cst_67 = arith.constant 0.000000e+00 : f32
    %231 = vector.broadcast %cst_67 : f32 to vector<8x32xf32>
    %c0_i32_68 = arith.constant 0 : i32
    %c8_i32_69 = arith.constant 8 : i32
    %232 = arith.muli %c0_i32_68, %c8_i32_69 : i32
    %233 = tpu.assume_multiple %232, 8 : i32
    %234 = arith.index_cast %233 : i32 to index
    %c0_70 = arith.constant 0 : index
    %235 = vector.load %arg9[%234, %c0_70] : memref<64x128xf32, #tpu.memory_space<vmem>>, vector<8x128xf32>
    %236 = arith.truncf %231 : vector<8x32xf32> to vector<8x32xbf16>
    %cst_71 = arith.constant dense<0.000000e+00> : vector<8x128xf32>
    %237 = tpu.matmul %236, %220, %cst_71 {dimension_numbers = #tpu.dot_dimension_numbers<[1], [0], [0], [1], [0, 0, 1, 1], [], []>} : vector<8x32xbf16>, vector<32x128xbf16>, vector<8x128xf32> -> vector<8x128xf32>
    %238 = arith.addf %235, %237 : vector<8x128xf32>
    %239 = math.tanh %238 : vector<8x128xf32>
    %240 = arith.negf %238 : vector<8x128xf32>
    %241 = math.exp %240 : vector<8x128xf32>
    %cst_72 = arith.constant 1.000000e+00 : f32
    %242 = vector.broadcast %cst_72 : f32 to vector<8x128xf32>
    %243 = arith.addf %242, %241 : vector<8x128xf32>
    %244 = arith.divf %242, %243 : vector<8x128xf32>
    %245 = arith.select %5, %239, %244 : vector<8x128xi1>, vector<8x128xf32>
    %246 = vector.extract_strided_slice %245 {offsets = [0, 0], sizes = [8, 32], strides = [1, 1]} : vector<8x128xf32> to vector<8x32xf32>
    %247 = vector.extract_strided_slice %245 {offsets = [0, 32], sizes = [8, 32], strides = [1, 1]} : vector<8x128xf32> to vector<8x32xf32>
    %248 = vector.extract_strided_slice %245 {offsets = [0, 64], sizes = [8, 32], strides = [1, 1]} : vector<8x128xf32> to vector<8x32xf32>
    %249 = vector.extract_strided_slice %245 {offsets = [0, 96], sizes = [8, 32], strides = [1, 1]} : vector<8x128xf32> to vector<8x32xf32>
    %250 = arith.mulf %247, %231 : vector<8x32xf32>
    %251 = arith.mulf %246, %248 : vector<8x32xf32>
    %252 = arith.addf %250, %251 : vector<8x32xf32>
    %253 = math.tanh %252 : vector<8x32xf32>
    %254 = arith.mulf %249, %253 : vector<8x32xf32>
    %255 = arith.index_cast %233 : i32 to index
    %c0_73 = arith.constant 0 : index
    %256 = vector.load %arg8[%255, %c0_73] : memref<64x32xf32, #tpu.memory_space<vmem>>, vector<8x32xf32>
    tpu.vector_store %arg8[%255, %c0_73], %254 {strides = array<i32>} : memref<64x32xf32, #tpu.memory_space<vmem>>, vector<8x32xf32>,
    %c1_i32_74 = arith.constant 1 : i32
    %c8_i32_75 = arith.constant 8 : i32
    %257 = arith.muli %c1_i32_74, %c8_i32_75 : i32
    %258 = tpu.assume_multiple %257, 8 : i32
    %259 = arith.index_cast %258 : i32 to index
    %c0_76 = arith.constant 0 : index
    %260 = vector.load %arg9[%259, %c0_76] : memref<64x128xf32, #tpu.memory_space<vmem>>, vector<8x128xf32>
    %261 = arith.truncf %254 : vector<8x32xf32> to vector<8x32xbf16>
    %cst_77 = arith.constant dense<0.000000e+00> : vector<8x128xf32>
    %262 = tpu.matmul %261, %220, %cst_77 {dimension_numbers = #tpu.dot_dimension_numbers<[1], [0], [0], [1], [0, 0, 1, 1], [], []>} : vector<8x32xbf16>, vector<32x128xbf16>, vector<8x128xf32> -> vector<8x128xf32>
    %263 = arith.addf %260, %262 : vector<8x128xf32>
    %264 = math.tanh %263 : vector<8x128xf32>
    %265 = arith.negf %263 : vector<8x128xf32>
    %266 = math.exp %265 : vector<8x128xf32>
    %cst_78 = arith.constant 1.000000e+00 : f32
    %267 = vector.broadcast %cst_78 : f32 to vector<8x128xf32>
    %268 = arith.addf %267, %266 : vector<8x128xf32>
    %269 = arith.divf %267, %268 : vector<8x128xf32>
    %270 = arith.select %5, %264, %269 : vector<8x128xi1>, vector<8x128xf32>
    %271 = vector.extract_strided_slice %270 {offsets = [0, 0], sizes = [8, 32], strides = [1, 1]} : vector<8x128xf32> to vector<8x32xf32>
    %272 = vector.extract_strided_slice %270 {offsets = [0, 32], sizes = [8, 32], strides = [1, 1]} : vector<8x128xf32> to vector<8x32xf32>
    %273 = vector.extract_strided_slice %270 {offsets = [0, 64], sizes = [8, 32], strides = [1, 1]} : vector<8x128xf32> to vector<8x32xf32>
    %274 = vector.extract_strided_slice %270 {offsets = [0, 96], sizes = [8, 32], strides = [1, 1]} : vector<8x128xf32> to vector<8x32xf32>
    %275 = arith.mulf %272, %252 : vector<8x32xf32>
    %276 = arith.mulf %271, %273 : vector<8x32xf32>
    %277 = arith.addf %275, %276 : vector<8x32xf32>
    %278 = math.tanh %277 : vector<8x32xf32>
    %279 = arith.mulf %274, %278 : vector<8x32xf32>
    %280 = arith.index_cast %258 : i32 to index
    %c0_79 = arith.constant 0 : index
    %281 = vector.load %arg8[%280, %c0_79] : memref<64x32xf32, #tpu.memory_space<vmem>>, vector<8x32xf32>
    tpu.vector_store %arg8[%280, %c0_79], %279 {strides = array<i32>} : memref<64x32xf32, #tpu.memory_space<vmem>>, vector<8x32xf32>,
    %c2_i32_80 = arith.constant 2 : i32
    %c8_i32_81 = arith.constant 8 : i32
    %282 = arith.muli %c2_i32_80, %c8_i32_81 : i32
    %283 = tpu.assume_multiple %282, 8 : i32
    %284 = arith.index_cast %283 : i32 to index
    %c0_82 = arith.constant 0 : index
    %285 = vector.load %arg9[%284, %c0_82] : memref<64x128xf32, #tpu.memory_space<vmem>>, vector<8x128xf32>
    %286 = arith.truncf %279 : vector<8x32xf32> to vector<8x32xbf16>
    %cst_83 = arith.constant dense<0.000000e+00> : vector<8x128xf32>
    %287 = tpu.matmul %286, %220, %cst_83 {dimension_numbers = #tpu.dot_dimension_numbers<[1], [0], [0], [1], [0, 0, 1, 1], [], []>} : vector<8x32xbf16>, vector<32x128xbf16>, vector<8x128xf32> -> vector<8x128xf32>
    %288 = arith.addf %285, %287 : vector<8x128xf32>
    %289 = math.tanh %288 : vector<8x128xf32>
    %290 = arith.negf %288 : vector<8x128xf32>
    %291 = math.exp %290 : vector<8x128xf32>
    %cst_84 = arith.constant 1.000000e+00 : f32
    %292 = vector.broadcast %cst_84 : f32 to vector<8x128xf32>
    %293 = arith.addf %292, %291 : vector<8x128xf32>
    %294 = arith.divf %292, %293 : vector<8x128xf32>
    %295 = arith.select %5, %289, %294 : vector<8x128xi1>, vector<8x128xf32>
    %296 = vector.extract_strided_slice %295 {offsets = [0, 0], sizes = [8, 32], strides = [1, 1]} : vector<8x128xf32> to vector<8x32xf32>
    %297 = vector.extract_strided_slice %295 {offsets = [0, 32], sizes = [8, 32], strides = [1, 1]} : vector<8x128xf32> to vector<8x32xf32>
    %298 = vector.extract_strided_slice %295 {offsets = [0, 64], sizes = [8, 32], strides = [1, 1]} : vector<8x128xf32> to vector<8x32xf32>
    %299 = vector.extract_strided_slice %295 {offsets = [0, 96], sizes = [8, 32], strides = [1, 1]} : vector<8x128xf32> to vector<8x32xf32>
    %300 = arith.mulf %297, %277 : vector<8x32xf32>
    %301 = arith.mulf %296, %298 : vector<8x32xf32>
    %302 = arith.addf %300, %301 : vector<8x32xf32>
    %303 = math.tanh %302 : vector<8x32xf32>
    %304 = arith.mulf %299, %303 : vector<8x32xf32>
    %305 = arith.index_cast %283 : i32 to index
    %c0_85 = arith.constant 0 : index
    %306 = vector.load %arg8[%305, %c0_85] : memref<64x32xf32, #tpu.memory_space<vmem>>, vector<8x32xf32>
    tpu.vector_store %arg8[%305, %c0_85], %304 {strides = array<i32>} : memref<64x32xf32, #tpu.memory_space<vmem>>, vector<8x32xf32>,
    %c3_i32_86 = arith.constant 3 : i32
    %c8_i32_87 = arith.constant 8 : i32
    %307 = arith.muli %c3_i32_86, %c8_i32_87 : i32
    %308 = tpu.assume_multiple %307, 8 : i32
    %309 = arith.index_cast %308 : i32 to index
    %c0_88 = arith.constant 0 : index
    %310 = vector.load %arg9[%309, %c0_88] : memref<64x128xf32, #tpu.memory_space<vmem>>, vector<8x128xf32>
    %311 = arith.truncf %304 : vector<8x32xf32> to vector<8x32xbf16>
    %cst_89 = arith.constant dense<0.000000e+00> : vector<8x128xf32>
    %312 = tpu.matmul %311, %220, %cst_89 {dimension_numbers = #tpu.dot_dimension_numbers<[1], [0], [0], [1], [0, 0, 1, 1], [], []>} : vector<8x32xbf16>, vector<32x128xbf16>, vector<8x128xf32> -> vector<8x128xf32>
    %313 = arith.addf %310, %312 : vector<8x128xf32>
    %314 = math.tanh %313 : vector<8x128xf32>
    %315 = arith.negf %313 : vector<8x128xf32>
    %316 = math.exp %315 : vector<8x128xf32>
    %cst_90 = arith.constant 1.000000e+00 : f32
    %317 = vector.broadcast %cst_90 : f32 to vector<8x128xf32>
    %318 = arith.addf %317, %316 : vector<8x128xf32>
    %319 = arith.divf %317, %318 : vector<8x128xf32>
    %320 = arith.select %5, %314, %319 : vector<8x128xi1>, vector<8x128xf32>
    %321 = vector.extract_strided_slice %320 {offsets = [0, 0], sizes = [8, 32], strides = [1, 1]} : vector<8x128xf32> to vector<8x32xf32>
    %322 = vector.extract_strided_slice %320 {offsets = [0, 32], sizes = [8, 32], strides = [1, 1]} : vector<8x128xf32> to vector<8x32xf32>
    %323 = vector.extract_strided_slice %320 {offsets = [0, 64], sizes = [8, 32], strides = [1, 1]} : vector<8x128xf32> to vector<8x32xf32>
    %324 = vector.extract_strided_slice %320 {offsets = [0, 96], sizes = [8, 32], strides = [1, 1]} : vector<8x128xf32> to vector<8x32xf32>
    %325 = arith.mulf %322, %302 : vector<8x32xf32>
    %326 = arith.mulf %321, %323 : vector<8x32xf32>
    %327 = arith.addf %325, %326 : vector<8x32xf32>
    %328 = math.tanh %327 : vector<8x32xf32>
    %329 = arith.mulf %324, %328 : vector<8x32xf32>
    %330 = arith.index_cast %308 : i32 to index
    %c0_91 = arith.constant 0 : index
    %331 = vector.load %arg8[%330, %c0_91] : memref<64x32xf32, #tpu.memory_space<vmem>>, vector<8x32xf32>
    tpu.vector_store %arg8[%330, %c0_91], %329 {strides = array<i32>} : memref<64x32xf32, #tpu.memory_space<vmem>>, vector<8x32xf32>,
    %c4_i32_92 = arith.constant 4 : i32
    %c8_i32_93 = arith.constant 8 : i32
    %332 = arith.muli %c4_i32_92, %c8_i32_93 : i32
    %333 = tpu.assume_multiple %332, 8 : i32
    %334 = arith.index_cast %333 : i32 to index
    %c0_94 = arith.constant 0 : index
    %335 = vector.load %arg9[%334, %c0_94] : memref<64x128xf32, #tpu.memory_space<vmem>>, vector<8x128xf32>
    %336 = arith.truncf %329 : vector<8x32xf32> to vector<8x32xbf16>
    %cst_95 = arith.constant dense<0.000000e+00> : vector<8x128xf32>
    %337 = tpu.matmul %336, %220, %cst_95 {dimension_numbers = #tpu.dot_dimension_numbers<[1], [0], [0], [1], [0, 0, 1, 1], [], []>} : vector<8x32xbf16>, vector<32x128xbf16>, vector<8x128xf32> -> vector<8x128xf32>
    %338 = arith.addf %335, %337 : vector<8x128xf32>
    %339 = math.tanh %338 : vector<8x128xf32>
    %340 = arith.negf %338 : vector<8x128xf32>
    %341 = math.exp %340 : vector<8x128xf32>
    %cst_96 = arith.constant 1.000000e+00 : f32
    %342 = vector.broadcast %cst_96 : f32 to vector<8x128xf32>
    %343 = arith.addf %342, %341 : vector<8x128xf32>
    %344 = arith.divf %342, %343 : vector<8x128xf32>
    %345 = arith.select %5, %339, %344 : vector<8x128xi1>, vector<8x128xf32>
    %346 = vector.extract_strided_slice %345 {offsets = [0, 0], sizes = [8, 32], strides = [1, 1]} : vector<8x128xf32> to vector<8x32xf32>
    %347 = vector.extract_strided_slice %345 {offsets = [0, 32], sizes = [8, 32], strides = [1, 1]} : vector<8x128xf32> to vector<8x32xf32>
    %348 = vector.extract_strided_slice %345 {offsets = [0, 64], sizes = [8, 32], strides = [1, 1]} : vector<8x128xf32> to vector<8x32xf32>
    %349 = vector.extract_strided_slice %345 {offsets = [0, 96], sizes = [8, 32], strides = [1, 1]} : vector<8x128xf32> to vector<8x32xf32>
    %350 = arith.mulf %347, %327 : vector<8x32xf32>
    %351 = arith.mulf %346, %348 : vector<8x32xf32>
    %352 = arith.addf %350, %351 : vector<8x32xf32>
    %353 = math.tanh %352 : vector<8x32xf32>
    %354 = arith.mulf %349, %353 : vector<8x32xf32>
    %355 = arith.index_cast %333 : i32 to index
    %c0_97 = arith.constant 0 : index
    %356 = vector.load %arg8[%355, %c0_97] : memref<64x32xf32, #tpu.memory_space<vmem>>, vector<8x32xf32>
    tpu.vector_store %arg8[%355, %c0_97], %354 {strides = array<i32>} : memref<64x32xf32, #tpu.memory_space<vmem>>, vector<8x32xf32>,
    %c5_i32_98 = arith.constant 5 : i32
    %c8_i32_99 = arith.constant 8 : i32
    %357 = arith.muli %c5_i32_98, %c8_i32_99 : i32
    %358 = tpu.assume_multiple %357, 8 : i32
    %359 = arith.index_cast %358 : i32 to index
    %c0_100 = arith.constant 0 : index
    %360 = vector.load %arg9[%359, %c0_100] : memref<64x128xf32, #tpu.memory_space<vmem>>, vector<8x128xf32>
    %361 = arith.truncf %354 : vector<8x32xf32> to vector<8x32xbf16>
    %cst_101 = arith.constant dense<0.000000e+00> : vector<8x128xf32>
    %362 = tpu.matmul %361, %220, %cst_101 {dimension_numbers = #tpu.dot_dimension_numbers<[1], [0], [0], [1], [0, 0, 1, 1], [], []>} : vector<8x32xbf16>, vector<32x128xbf16>, vector<8x128xf32> -> vector<8x128xf32>
    %363 = arith.addf %360, %362 : vector<8x128xf32>
    %364 = math.tanh %363 : vector<8x128xf32>
    %365 = arith.negf %363 : vector<8x128xf32>
    %366 = math.exp %365 : vector<8x128xf32>
    %cst_102 = arith.constant 1.000000e+00 : f32
    %367 = vector.broadcast %cst_102 : f32 to vector<8x128xf32>
    %368 = arith.addf %367, %366 : vector<8x128xf32>
    %369 = arith.divf %367, %368 : vector<8x128xf32>
    %370 = arith.select %5, %364, %369 : vector<8x128xi1>, vector<8x128xf32>
    %371 = vector.extract_strided_slice %370 {offsets = [0, 0], sizes = [8, 32], strides = [1, 1]} : vector<8x128xf32> to vector<8x32xf32>
    %372 = vector.extract_strided_slice %370 {offsets = [0, 32], sizes = [8, 32], strides = [1, 1]} : vector<8x128xf32> to vector<8x32xf32>
    %373 = vector.extract_strided_slice %370 {offsets = [0, 64], sizes = [8, 32], strides = [1, 1]} : vector<8x128xf32> to vector<8x32xf32>
    %374 = vector.extract_strided_slice %370 {offsets = [0, 96], sizes = [8, 32], strides = [1, 1]} : vector<8x128xf32> to vector<8x32xf32>
    %375 = arith.mulf %372, %352 : vector<8x32xf32>
    %376 = arith.mulf %371, %373 : vector<8x32xf32>
    %377 = arith.addf %375, %376 : vector<8x32xf32>
    %378 = math.tanh %377 : vector<8x32xf32>
    %379 = arith.mulf %374, %378 : vector<8x32xf32>
    %380 = arith.index_cast %358 : i32 to index
    %c0_103 = arith.constant 0 : index
    %381 = vector.load %arg8[%380, %c0_103] : memref<64x32xf32, #tpu.memory_space<vmem>>, vector<8x32xf32>
    tpu.vector_store %arg8[%380, %c0_103], %379 {strides = array<i32>} : memref<64x32xf32, #tpu.memory_space<vmem>>, vector<8x32xf32>,
    %c6_i32_104 = arith.constant 6 : i32
    %c8_i32_105 = arith.constant 8 : i32
    %382 = arith.muli %c6_i32_104, %c8_i32_105 : i32
    %383 = tpu.assume_multiple %382, 8 : i32
    %384 = arith.index_cast %383 : i32 to index
    %c0_106 = arith.constant 0 : index
    %385 = vector.load %arg9[%384, %c0_106] : memref<64x128xf32, #tpu.memory_space<vmem>>, vector<8x128xf32>
    %386 = arith.truncf %379 : vector<8x32xf32> to vector<8x32xbf16>
    %cst_107 = arith.constant dense<0.000000e+00> : vector<8x128xf32>
    %387 = tpu.matmul %386, %220, %cst_107 {dimension_numbers = #tpu.dot_dimension_numbers<[1], [0], [0], [1], [0, 0, 1, 1], [], []>} : vector<8x32xbf16>, vector<32x128xbf16>, vector<8x128xf32> -> vector<8x128xf32>
    %388 = arith.addf %385, %387 : vector<8x128xf32>
    %389 = math.tanh %388 : vector<8x128xf32>
    %390 = arith.negf %388 : vector<8x128xf32>
    %391 = math.exp %390 : vector<8x128xf32>
    %cst_108 = arith.constant 1.000000e+00 : f32
    %392 = vector.broadcast %cst_108 : f32 to vector<8x128xf32>
    %393 = arith.addf %392, %391 : vector<8x128xf32>
    %394 = arith.divf %392, %393 : vector<8x128xf32>
    %395 = arith.select %5, %389, %394 : vector<8x128xi1>, vector<8x128xf32>
    %396 = vector.extract_strided_slice %395 {offsets = [0, 0], sizes = [8, 32], strides = [1, 1]} : vector<8x128xf32> to vector<8x32xf32>
    %397 = vector.extract_strided_slice %395 {offsets = [0, 32], sizes = [8, 32], strides = [1, 1]} : vector<8x128xf32> to vector<8x32xf32>
    %398 = vector.extract_strided_slice %395 {offsets = [0, 64], sizes = [8, 32], strides = [1, 1]} : vector<8x128xf32> to vector<8x32xf32>
    %399 = vector.extract_strided_slice %395 {offsets = [0, 96], sizes = [8, 32], strides = [1, 1]} : vector<8x128xf32> to vector<8x32xf32>
    %400 = arith.mulf %397, %377 : vector<8x32xf32>
    %401 = arith.mulf %396, %398 : vector<8x32xf32>
    %402 = arith.addf %400, %401 : vector<8x32xf32>
    %403 = math.tanh %402 : vector<8x32xf32>
    %404 = arith.mulf %399, %403 : vector<8x32xf32>
    %405 = arith.index_cast %383 : i32 to index
    %c0_109 = arith.constant 0 : index
    %406 = vector.load %arg8[%405, %c0_109] : memref<64x32xf32, #tpu.memory_space<vmem>>, vector<8x32xf32>
    tpu.vector_store %arg8[%405, %c0_109], %404 {strides = array<i32>} : memref<64x32xf32, #tpu.memory_space<vmem>>, vector<8x32xf32>,
    %c7_i32_110 = arith.constant 7 : i32
    %c8_i32_111 = arith.constant 8 : i32
    %407 = arith.muli %c7_i32_110, %c8_i32_111 : i32
    %408 = tpu.assume_multiple %407, 8 : i32
    %409 = arith.index_cast %408 : i32 to index
    %c0_112 = arith.constant 0 : index
    %410 = vector.load %arg9[%409, %c0_112] : memref<64x128xf32, #tpu.memory_space<vmem>>, vector<8x128xf32>
    %411 = arith.truncf %404 : vector<8x32xf32> to vector<8x32xbf16>
    %cst_113 = arith.constant dense<0.000000e+00> : vector<8x128xf32>
    %412 = tpu.matmul %411, %220, %cst_113 {dimension_numbers = #tpu.dot_dimension_numbers<[1], [0], [0], [1], [0, 0, 1, 1], [], []>} : vector<8x32xbf16>, vector<32x128xbf16>, vector<8x128xf32> -> vector<8x128xf32>
    %413 = arith.addf %410, %412 : vector<8x128xf32>
    %414 = math.tanh %413 : vector<8x128xf32>
    %415 = arith.negf %413 : vector<8x128xf32>
    %416 = math.exp %415 : vector<8x128xf32>
    %cst_114 = arith.constant 1.000000e+00 : f32
    %417 = vector.broadcast %cst_114 : f32 to vector<8x128xf32>
    %418 = arith.addf %417, %416 : vector<8x128xf32>
    %419 = arith.divf %417, %418 : vector<8x128xf32>
    %420 = arith.select %5, %414, %419 : vector<8x128xi1>, vector<8x128xf32>
    %421 = vector.extract_strided_slice %420 {offsets = [0, 0], sizes = [8, 32], strides = [1, 1]} : vector<8x128xf32> to vector<8x32xf32>
    %422 = vector.extract_strided_slice %420 {offsets = [0, 32], sizes = [8, 32], strides = [1, 1]} : vector<8x128xf32> to vector<8x32xf32>
    %423 = vector.extract_strided_slice %420 {offsets = [0, 64], sizes = [8, 32], strides = [1, 1]} : vector<8x128xf32> to vector<8x32xf32>
    %424 = vector.extract_strided_slice %420 {offsets = [0, 96], sizes = [8, 32], strides = [1, 1]} : vector<8x128xf32> to vector<8x32xf32>
    %425 = arith.mulf %422, %402 : vector<8x32xf32>
    %426 = arith.mulf %421, %423 : vector<8x32xf32>
    %427 = arith.addf %425, %426 : vector<8x32xf32>
    %428 = math.tanh %427 : vector<8x32xf32>
    %429 = arith.mulf %424, %428 : vector<8x32xf32>
    %430 = arith.index_cast %408 : i32 to index
    %c0_115 = arith.constant 0 : index
    %431 = vector.load %arg8[%430, %c0_115] : memref<64x32xf32, #tpu.memory_space<vmem>>, vector<8x32xf32>
    tpu.vector_store %arg8[%430, %c0_115], %429 {strides = array<i32>} : memref<64x32xf32, #tpu.memory_space<vmem>>, vector<8x32xf32>,
    %c8_i32_116 = arith.constant 8 : i32
    %c2 = arith.constant 2 : index
    %c0_117 = arith.constant 0 : index
    %c0_118 = arith.constant 0 : index
    %432 = vector.load %arg3[%c2, %c0_117, %c0_118] : memref<4x32x128xbf16, #tpu.memory_space<vmem>>, vector<1x32x128xbf16>
    %433 = vector.shape_cast %432 : vector<1x32x128xbf16> to vector<32x128xbf16>
    %c0_119 = arith.constant 0 : index
    %c0_120 = arith.constant 0 : index
    %434 = vector.load %arg8[%c0_119, %c0_120] : memref<64x32xf32, #tpu.memory_space<vmem>>, vector<64x32xf32>
    %435 = arith.truncf %434 : vector<64x32xf32> to vector<64x32xbf16>
    %c2_121 = arith.constant 2 : index
    %c0_122 = arith.constant 0 : index
    %c0_123 = arith.constant 0 : index
    %436 = vector.load %arg2[%c2_121, %c0_122, %c0_123] : memref<4x32x128xbf16, #tpu.memory_space<vmem>>, vector<1x32x128xbf16>
    %437 = vector.shape_cast %436 : vector<1x32x128xbf16> to vector<32x128xbf16>
    %cst_124 = arith.constant dense<0.000000e+00> : vector<64x128xf32>
    %438 = tpu.matmul %435, %437, %cst_124 {dimension_numbers = #tpu.dot_dimension_numbers<[1], [0], [0], [1], [0, 0, 1, 1], [], []>} : vector<64x32xbf16>, vector<32x128xbf16>, vector<64x128xf32> -> vector<64x128xf32>
    %c2_125 = arith.constant 2 : index
    %c0_126 = arith.constant 0 : index
    %c0_127 = arith.constant 0 : index
    %439 = vector.load %arg4[%c2_125, %c0_126, %c0_127] : memref<4x1x128xf32, #tpu.memory_space<vmem>>, vector<1x1x128xf32>
    %440 = vector.shape_cast %439 : vector<1x1x128xf32> to vector<1x128xf32>
    %441 = vector.broadcast %440 : vector<1x128xf32> to vector<64x128xf32>
    %442 = arith.addf %438, %441 : vector<64x128xf32>
    %c0_128 = arith.constant 0 : index
    %c0_129 = arith.constant 0 : index
    %443 = vector.load %arg9[%c0_128, %c0_129] : memref<64x128xf32, #tpu.memory_space<vmem>>, vector<64x128xf32>
    tpu.vector_store %arg9[%c0_128, %c0_129], %442 {strides = array<i32>} : memref<64x128xf32, #tpu.memory_space<vmem>>, vector<64x128xf32>,
    %cst_130 = arith.constant 0.000000e+00 : f32
    %444 = vector.broadcast %cst_130 : f32 to vector<8x32xf32>
    %c0_i32_131 = arith.constant 0 : i32
    %c8_i32_132 = arith.constant 8 : i32
    %445 = arith.muli %c0_i32_131, %c8_i32_132 : i32
    %446 = tpu.assume_multiple %445, 8 : i32
    %447 = arith.index_cast %446 : i32 to index
    %c0_133 = arith.constant 0 : index
    %448 = vector.load %arg9[%447, %c0_133] : memref<64x128xf32, #tpu.memory_space<vmem>>, vector<8x128xf32>
    %449 = arith.truncf %444 : vector<8x32xf32> to vector<8x32xbf16>
    %cst_134 = arith.constant dense<0.000000e+00> : vector<8x128xf32>
    %450 = tpu.matmul %449, %433, %cst_134 {dimension_numbers = #tpu.dot_dimension_numbers<[1], [0], [0], [1], [0, 0, 1, 1], [], []>} : vector<8x32xbf16>, vector<32x128xbf16>, vector<8x128xf32> -> vector<8x128xf32>
    %451 = arith.addf %448, %450 : vector<8x128xf32>
    %452 = math.tanh %451 : vector<8x128xf32>
    %453 = arith.negf %451 : vector<8x128xf32>
    %454 = math.exp %453 : vector<8x128xf32>
    %cst_135 = arith.constant 1.000000e+00 : f32
    %455 = vector.broadcast %cst_135 : f32 to vector<8x128xf32>
    %456 = arith.addf %455, %454 : vector<8x128xf32>
    %457 = arith.divf %455, %456 : vector<8x128xf32>
    %458 = arith.select %5, %452, %457 : vector<8x128xi1>, vector<8x128xf32>
    %459 = vector.extract_strided_slice %458 {offsets = [0, 0], sizes = [8, 32], strides = [1, 1]} : vector<8x128xf32> to vector<8x32xf32>
    %460 = vector.extract_strided_slice %458 {offsets = [0, 32], sizes = [8, 32], strides = [1, 1]} : vector<8x128xf32> to vector<8x32xf32>
    %461 = vector.extract_strided_slice %458 {offsets = [0, 64], sizes = [8, 32], strides = [1, 1]} : vector<8x128xf32> to vector<8x32xf32>
    %462 = vector.extract_strided_slice %458 {offsets = [0, 96], sizes = [8, 32], strides = [1, 1]} : vector<8x128xf32> to vector<8x32xf32>
    %463 = arith.mulf %460, %444 : vector<8x32xf32>
    %464 = arith.mulf %459, %461 : vector<8x32xf32>
    %465 = arith.addf %463, %464 : vector<8x32xf32>
    %466 = math.tanh %465 : vector<8x32xf32>
    %467 = arith.mulf %462, %466 : vector<8x32xf32>
    %468 = arith.index_cast %446 : i32 to index
    %c0_136 = arith.constant 0 : index
    %469 = vector.load %arg8[%468, %c0_136] : memref<64x32xf32, #tpu.memory_space<vmem>>, vector<8x32xf32>
    tpu.vector_store %arg8[%468, %c0_136], %467 {strides = array<i32>} : memref<64x32xf32, #tpu.memory_space<vmem>>, vector<8x32xf32>,
    %c1_i32_137 = arith.constant 1 : i32
    %c8_i32_138 = arith.constant 8 : i32
    %470 = arith.muli %c1_i32_137, %c8_i32_138 : i32
    %471 = tpu.assume_multiple %470, 8 : i32
    %472 = arith.index_cast %471 : i32 to index
    %c0_139 = arith.constant 0 : index
    %473 = vector.load %arg9[%472, %c0_139] : memref<64x128xf32, #tpu.memory_space<vmem>>, vector<8x128xf32>
    %474 = arith.truncf %467 : vector<8x32xf32> to vector<8x32xbf16>
    %cst_140 = arith.constant dense<0.000000e+00> : vector<8x128xf32>
    %475 = tpu.matmul %474, %433, %cst_140 {dimension_numbers = #tpu.dot_dimension_numbers<[1], [0], [0], [1], [0, 0, 1, 1], [], []>} : vector<8x32xbf16>, vector<32x128xbf16>, vector<8x128xf32> -> vector<8x128xf32>
    %476 = arith.addf %473, %475 : vector<8x128xf32>
    %477 = math.tanh %476 : vector<8x128xf32>
    %478 = arith.negf %476 : vector<8x128xf32>
    %479 = math.exp %478 : vector<8x128xf32>
    %cst_141 = arith.constant 1.000000e+00 : f32
    %480 = vector.broadcast %cst_141 : f32 to vector<8x128xf32>
    %481 = arith.addf %480, %479 : vector<8x128xf32>
    %482 = arith.divf %480, %481 : vector<8x128xf32>
    %483 = arith.select %5, %477, %482 : vector<8x128xi1>, vector<8x128xf32>
    %484 = vector.extract_strided_slice %483 {offsets = [0, 0], sizes = [8, 32], strides = [1, 1]} : vector<8x128xf32> to vector<8x32xf32>
    %485 = vector.extract_strided_slice %483 {offsets = [0, 32], sizes = [8, 32], strides = [1, 1]} : vector<8x128xf32> to vector<8x32xf32>
    %486 = vector.extract_strided_slice %483 {offsets = [0, 64], sizes = [8, 32], strides = [1, 1]} : vector<8x128xf32> to vector<8x32xf32>
    %487 = vector.extract_strided_slice %483 {offsets = [0, 96], sizes = [8, 32], strides = [1, 1]} : vector<8x128xf32> to vector<8x32xf32>
    %488 = arith.mulf %485, %465 : vector<8x32xf32>
    %489 = arith.mulf %484, %486 : vector<8x32xf32>
    %490 = arith.addf %488, %489 : vector<8x32xf32>
    %491 = math.tanh %490 : vector<8x32xf32>
    %492 = arith.mulf %487, %491 : vector<8x32xf32>
    %493 = arith.index_cast %471 : i32 to index
    %c0_142 = arith.constant 0 : index
    %494 = vector.load %arg8[%493, %c0_142] : memref<64x32xf32, #tpu.memory_space<vmem>>, vector<8x32xf32>
    tpu.vector_store %arg8[%493, %c0_142], %492 {strides = array<i32>} : memref<64x32xf32, #tpu.memory_space<vmem>>, vector<8x32xf32>,
    %c2_i32_143 = arith.constant 2 : i32
    %c8_i32_144 = arith.constant 8 : i32
    %495 = arith.muli %c2_i32_143, %c8_i32_144 : i32
    %496 = tpu.assume_multiple %495, 8 : i32
    %497 = arith.index_cast %496 : i32 to index
    %c0_145 = arith.constant 0 : index
    %498 = vector.load %arg9[%497, %c0_145] : memref<64x128xf32, #tpu.memory_space<vmem>>, vector<8x128xf32>
    %499 = arith.truncf %492 : vector<8x32xf32> to vector<8x32xbf16>
    %cst_146 = arith.constant dense<0.000000e+00> : vector<8x128xf32>
    %500 = tpu.matmul %499, %433, %cst_146 {dimension_numbers = #tpu.dot_dimension_numbers<[1], [0], [0], [1], [0, 0, 1, 1], [], []>} : vector<8x32xbf16>, vector<32x128xbf16>, vector<8x128xf32> -> vector<8x128xf32>
    %501 = arith.addf %498, %500 : vector<8x128xf32>
    %502 = math.tanh %501 : vector<8x128xf32>
    %503 = arith.negf %501 : vector<8x128xf32>
    %504 = math.exp %503 : vector<8x128xf32>
    %cst_147 = arith.constant 1.000000e+00 : f32
    %505 = vector.broadcast %cst_147 : f32 to vector<8x128xf32>
    %506 = arith.addf %505, %504 : vector<8x128xf32>
    %507 = arith.divf %505, %506 : vector<8x128xf32>
    %508 = arith.select %5, %502, %507 : vector<8x128xi1>, vector<8x128xf32>
    %509 = vector.extract_strided_slice %508 {offsets = [0, 0], sizes = [8, 32], strides = [1, 1]} : vector<8x128xf32> to vector<8x32xf32>
    %510 = vector.extract_strided_slice %508 {offsets = [0, 32], sizes = [8, 32], strides = [1, 1]} : vector<8x128xf32> to vector<8x32xf32>
    %511 = vector.extract_strided_slice %508 {offsets = [0, 64], sizes = [8, 32], strides = [1, 1]} : vector<8x128xf32> to vector<8x32xf32>
    %512 = vector.extract_strided_slice %508 {offsets = [0, 96], sizes = [8, 32], strides = [1, 1]} : vector<8x128xf32> to vector<8x32xf32>
    %513 = arith.mulf %510, %490 : vector<8x32xf32>
    %514 = arith.mulf %509, %511 : vector<8x32xf32>
    %515 = arith.addf %513, %514 : vector<8x32xf32>
    %516 = math.tanh %515 : vector<8x32xf32>
    %517 = arith.mulf %512, %516 : vector<8x32xf32>
    %518 = arith.index_cast %496 : i32 to index
    %c0_148 = arith.constant 0 : index
    %519 = vector.load %arg8[%518, %c0_148] : memref<64x32xf32, #tpu.memory_space<vmem>>, vector<8x32xf32>
    tpu.vector_store %arg8[%518, %c0_148], %517 {strides = array<i32>} : memref<64x32xf32, #tpu.memory_space<vmem>>, vector<8x32xf32>,
    %c3_i32_149 = arith.constant 3 : i32
    %c8_i32_150 = arith.constant 8 : i32
    %520 = arith.muli %c3_i32_149, %c8_i32_150 : i32
    %521 = tpu.assume_multiple %520, 8 : i32
    %522 = arith.index_cast %521 : i32 to index
    %c0_151 = arith.constant 0 : index
    %523 = vector.load %arg9[%522, %c0_151] : memref<64x128xf32, #tpu.memory_space<vmem>>, vector<8x128xf32>
    %524 = arith.truncf %517 : vector<8x32xf32> to vector<8x32xbf16>
    %cst_152 = arith.constant dense<0.000000e+00> : vector<8x128xf32>
    %525 = tpu.matmul %524, %433, %cst_152 {dimension_numbers = #tpu.dot_dimension_numbers<[1], [0], [0], [1], [0, 0, 1, 1], [], []>} : vector<8x32xbf16>, vector<32x128xbf16>, vector<8x128xf32> -> vector<8x128xf32>
    %526 = arith.addf %523, %525 : vector<8x128xf32>
    %527 = math.tanh %526 : vector<8x128xf32>
    %528 = arith.negf %526 : vector<8x128xf32>
    %529 = math.exp %528 : vector<8x128xf32>
    %cst_153 = arith.constant 1.000000e+00 : f32
    %530 = vector.broadcast %cst_153 : f32 to vector<8x128xf32>
    %531 = arith.addf %530, %529 : vector<8x128xf32>
    %532 = arith.divf %530, %531 : vector<8x128xf32>
    %533 = arith.select %5, %527, %532 : vector<8x128xi1>, vector<8x128xf32>
    %534 = vector.extract_strided_slice %533 {offsets = [0, 0], sizes = [8, 32], strides = [1, 1]} : vector<8x128xf32> to vector<8x32xf32>
    %535 = vector.extract_strided_slice %533 {offsets = [0, 32], sizes = [8, 32], strides = [1, 1]} : vector<8x128xf32> to vector<8x32xf32>
    %536 = vector.extract_strided_slice %533 {offsets = [0, 64], sizes = [8, 32], strides = [1, 1]} : vector<8x128xf32> to vector<8x32xf32>
    %537 = vector.extract_strided_slice %533 {offsets = [0, 96], sizes = [8, 32], strides = [1, 1]} : vector<8x128xf32> to vector<8x32xf32>
    %538 = arith.mulf %535, %515 : vector<8x32xf32>
    %539 = arith.mulf %534, %536 : vector<8x32xf32>
    %540 = arith.addf %538, %539 : vector<8x32xf32>
    %541 = math.tanh %540 : vector<8x32xf32>
    %542 = arith.mulf %537, %541 : vector<8x32xf32>
    %543 = arith.index_cast %521 : i32 to index
    %c0_154 = arith.constant 0 : index
    %544 = vector.load %arg8[%543, %c0_154] : memref<64x32xf32, #tpu.memory_space<vmem>>, vector<8x32xf32>
    tpu.vector_store %arg8[%543, %c0_154], %542 {strides = array<i32>} : memref<64x32xf32, #tpu.memory_space<vmem>>, vector<8x32xf32>,
    %c4_i32_155 = arith.constant 4 : i32
    %c8_i32_156 = arith.constant 8 : i32
    %545 = arith.muli %c4_i32_155, %c8_i32_156 : i32
    %546 = tpu.assume_multiple %545, 8 : i32
    %547 = arith.index_cast %546 : i32 to index
    %c0_157 = arith.constant 0 : index
    %548 = vector.load %arg9[%547, %c0_157] : memref<64x128xf32, #tpu.memory_space<vmem>>, vector<8x128xf32>
    %549 = arith.truncf %542 : vector<8x32xf32> to vector<8x32xbf16>
    %cst_158 = arith.constant dense<0.000000e+00> : vector<8x128xf32>
    %550 = tpu.matmul %549, %433, %cst_158 {dimension_numbers = #tpu.dot_dimension_numbers<[1], [0], [0], [1], [0, 0, 1, 1], [], []>} : vector<8x32xbf16>, vector<32x128xbf16>, vector<8x128xf32> -> vector<8x128xf32>
    %551 = arith.addf %548, %550 : vector<8x128xf32>
    %552 = math.tanh %551 : vector<8x128xf32>
    %553 = arith.negf %551 : vector<8x128xf32>
    %554 = math.exp %553 : vector<8x128xf32>
    %cst_159 = arith.constant 1.000000e+00 : f32
    %555 = vector.broadcast %cst_159 : f32 to vector<8x128xf32>
    %556 = arith.addf %555, %554 : vector<8x128xf32>
    %557 = arith.divf %555, %556 : vector<8x128xf32>
    %558 = arith.select %5, %552, %557 : vector<8x128xi1>, vector<8x128xf32>
    %559 = vector.extract_strided_slice %558 {offsets = [0, 0], sizes = [8, 32], strides = [1, 1]} : vector<8x128xf32> to vector<8x32xf32>
    %560 = vector.extract_strided_slice %558 {offsets = [0, 32], sizes = [8, 32], strides = [1, 1]} : vector<8x128xf32> to vector<8x32xf32>
    %561 = vector.extract_strided_slice %558 {offsets = [0, 64], sizes = [8, 32], strides = [1, 1]} : vector<8x128xf32> to vector<8x32xf32>
    %562 = vector.extract_strided_slice %558 {offsets = [0, 96], sizes = [8, 32], strides = [1, 1]} : vector<8x128xf32> to vector<8x32xf32>
    %563 = arith.mulf %560, %540 : vector<8x32xf32>
    %564 = arith.mulf %559, %561 : vector<8x32xf32>
    %565 = arith.addf %563, %564 : vector<8x32xf32>
    %566 = math.tanh %565 : vector<8x32xf32>
    %567 = arith.mulf %562, %566 : vector<8x32xf32>
    %568 = arith.index_cast %546 : i32 to index
    %c0_160 = arith.constant 0 : index
    %569 = vector.load %arg8[%568, %c0_160] : memref<64x32xf32, #tpu.memory_space<vmem>>, vector<8x32xf32>
    tpu.vector_store %arg8[%568, %c0_160], %567 {strides = array<i32>} : memref<64x32xf32, #tpu.memory_space<vmem>>, vector<8x32xf32>,
    %c5_i32_161 = arith.constant 5 : i32
    %c8_i32_162 = arith.constant 8 : i32
    %570 = arith.muli %c5_i32_161, %c8_i32_162 : i32
    %571 = tpu.assume_multiple %570, 8 : i32
    %572 = arith.index_cast %571 : i32 to index
    %c0_163 = arith.constant 0 : index
    %573 = vector.load %arg9[%572, %c0_163] : memref<64x128xf32, #tpu.memory_space<vmem>>, vector<8x128xf32>
    %574 = arith.truncf %567 : vector<8x32xf32> to vector<8x32xbf16>
    %cst_164 = arith.constant dense<0.000000e+00> : vector<8x128xf32>
    %575 = tpu.matmul %574, %433, %cst_164 {dimension_numbers = #tpu.dot_dimension_numbers<[1], [0], [0], [1], [0, 0, 1, 1], [], []>} : vector<8x32xbf16>, vector<32x128xbf16>, vector<8x128xf32> -> vector<8x128xf32>
    %576 = arith.addf %573, %575 : vector<8x128xf32>
    %577 = math.tanh %576 : vector<8x128xf32>
    %578 = arith.negf %576 : vector<8x128xf32>
    %579 = math.exp %578 : vector<8x128xf32>
    %cst_165 = arith.constant 1.000000e+00 : f32
    %580 = vector.broadcast %cst_165 : f32 to vector<8x128xf32>
    %581 = arith.addf %580, %579 : vector<8x128xf32>
    %582 = arith.divf %580, %581 : vector<8x128xf32>
    %583 = arith.select %5, %577, %582 : vector<8x128xi1>, vector<8x128xf32>
    %584 = vector.extract_strided_slice %583 {offsets = [0, 0], sizes = [8, 32], strides = [1, 1]} : vector<8x128xf32> to vector<8x32xf32>
    %585 = vector.extract_strided_slice %583 {offsets = [0, 32], sizes = [8, 32], strides = [1, 1]} : vector<8x128xf32> to vector<8x32xf32>
    %586 = vector.extract_strided_slice %583 {offsets = [0, 64], sizes = [8, 32], strides = [1, 1]} : vector<8x128xf32> to vector<8x32xf32>
    %587 = vector.extract_strided_slice %583 {offsets = [0, 96], sizes = [8, 32], strides = [1, 1]} : vector<8x128xf32> to vector<8x32xf32>
    %588 = arith.mulf %585, %565 : vector<8x32xf32>
    %589 = arith.mulf %584, %586 : vector<8x32xf32>
    %590 = arith.addf %588, %589 : vector<8x32xf32>
    %591 = math.tanh %590 : vector<8x32xf32>
    %592 = arith.mulf %587, %591 : vector<8x32xf32>
    %593 = arith.index_cast %571 : i32 to index
    %c0_166 = arith.constant 0 : index
    %594 = vector.load %arg8[%593, %c0_166] : memref<64x32xf32, #tpu.memory_space<vmem>>, vector<8x32xf32>
    tpu.vector_store %arg8[%593, %c0_166], %592 {strides = array<i32>} : memref<64x32xf32, #tpu.memory_space<vmem>>, vector<8x32xf32>,
    %c6_i32_167 = arith.constant 6 : i32
    %c8_i32_168 = arith.constant 8 : i32
    %595 = arith.muli %c6_i32_167, %c8_i32_168 : i32
    %596 = tpu.assume_multiple %595, 8 : i32
    %597 = arith.index_cast %596 : i32 to index
    %c0_169 = arith.constant 0 : index
    %598 = vector.load %arg9[%597, %c0_169] : memref<64x128xf32, #tpu.memory_space<vmem>>, vector<8x128xf32>
    %599 = arith.truncf %592 : vector<8x32xf32> to vector<8x32xbf16>
    %cst_170 = arith.constant dense<0.000000e+00> : vector<8x128xf32>
    %600 = tpu.matmul %599, %433, %cst_170 {dimension_numbers = #tpu.dot_dimension_numbers<[1], [0], [0], [1], [0, 0, 1, 1], [], []>} : vector<8x32xbf16>, vector<32x128xbf16>, vector<8x128xf32> -> vector<8x128xf32>
    %601 = arith.addf %598, %600 : vector<8x128xf32>
    %602 = math.tanh %601 : vector<8x128xf32>
    %603 = arith.negf %601 : vector<8x128xf32>
    %604 = math.exp %603 : vector<8x128xf32>
    %cst_171 = arith.constant 1.000000e+00 : f32
    %605 = vector.broadcast %cst_171 : f32 to vector<8x128xf32>
    %606 = arith.addf %605, %604 : vector<8x128xf32>
    %607 = arith.divf %605, %606 : vector<8x128xf32>
    %608 = arith.select %5, %602, %607 : vector<8x128xi1>, vector<8x128xf32>
    %609 = vector.extract_strided_slice %608 {offsets = [0, 0], sizes = [8, 32], strides = [1, 1]} : vector<8x128xf32> to vector<8x32xf32>
    %610 = vector.extract_strided_slice %608 {offsets = [0, 32], sizes = [8, 32], strides = [1, 1]} : vector<8x128xf32> to vector<8x32xf32>
    %611 = vector.extract_strided_slice %608 {offsets = [0, 64], sizes = [8, 32], strides = [1, 1]} : vector<8x128xf32> to vector<8x32xf32>
    %612 = vector.extract_strided_slice %608 {offsets = [0, 96], sizes = [8, 32], strides = [1, 1]} : vector<8x128xf32> to vector<8x32xf32>
    %613 = arith.mulf %610, %590 : vector<8x32xf32>
    %614 = arith.mulf %609, %611 : vector<8x32xf32>
    %615 = arith.addf %613, %614 : vector<8x32xf32>
    %616 = math.tanh %615 : vector<8x32xf32>
    %617 = arith.mulf %612, %616 : vector<8x32xf32>
    %618 = arith.index_cast %596 : i32 to index
    %c0_172 = arith.constant 0 : index
    %619 = vector.load %arg8[%618, %c0_172] : memref<64x32xf32, #tpu.memory_space<vmem>>, vector<8x32xf32>
    tpu.vector_store %arg8[%618, %c0_172], %617 {strides = array<i32>} : memref<64x32xf32, #tpu.memory_space<vmem>>, vector<8x32xf32>,
    %c7_i32_173 = arith.constant 7 : i32
    %c8_i32_174 = arith.constant 8 : i32
    %620 = arith.muli %c7_i32_173, %c8_i32_174 : i32
    %621 = tpu.assume_multiple %620, 8 : i32
    %622 = arith.index_cast %621 : i32 to index
    %c0_175 = arith.constant 0 : index
    %623 = vector.load %arg9[%622, %c0_175] : memref<64x128xf32, #tpu.memory_space<vmem>>, vector<8x128xf32>
    %624 = arith.truncf %617 : vector<8x32xf32> to vector<8x32xbf16>
    %cst_176 = arith.constant dense<0.000000e+00> : vector<8x128xf32>
    %625 = tpu.matmul %624, %433, %cst_176 {dimension_numbers = #tpu.dot_dimension_numbers<[1], [0], [0], [1], [0, 0, 1, 1], [], []>} : vector<8x32xbf16>, vector<32x128xbf16>, vector<8x128xf32> -> vector<8x128xf32>
    %626 = arith.addf %623, %625 : vector<8x128xf32>
    %627 = math.tanh %626 : vector<8x128xf32>
    %628 = arith.negf %626 : vector<8x128xf32>
    %629 = math.exp %628 : vector<8x128xf32>
    %cst_177 = arith.constant 1.000000e+00 : f32
    %630 = vector.broadcast %cst_177 : f32 to vector<8x128xf32>
    %631 = arith.addf %630, %629 : vector<8x128xf32>
    %632 = arith.divf %630, %631 : vector<8x128xf32>
    %633 = arith.select %5, %627, %632 : vector<8x128xi1>, vector<8x128xf32>
    %634 = vector.extract_strided_slice %633 {offsets = [0, 0], sizes = [8, 32], strides = [1, 1]} : vector<8x128xf32> to vector<8x32xf32>
    %635 = vector.extract_strided_slice %633 {offsets = [0, 32], sizes = [8, 32], strides = [1, 1]} : vector<8x128xf32> to vector<8x32xf32>
    %636 = vector.extract_strided_slice %633 {offsets = [0, 64], sizes = [8, 32], strides = [1, 1]} : vector<8x128xf32> to vector<8x32xf32>
    %637 = vector.extract_strided_slice %633 {offsets = [0, 96], sizes = [8, 32], strides = [1, 1]} : vector<8x128xf32> to vector<8x32xf32>
    %638 = arith.mulf %635, %615 : vector<8x32xf32>
    %639 = arith.mulf %634, %636 : vector<8x32xf32>
    %640 = arith.addf %638, %639 : vector<8x32xf32>
    %641 = math.tanh %640 : vector<8x32xf32>
    %642 = arith.mulf %637, %641 : vector<8x32xf32>
    %643 = arith.index_cast %621 : i32 to index
    %c0_178 = arith.constant 0 : index
    %644 = vector.load %arg8[%643, %c0_178] : memref<64x32xf32, #tpu.memory_space<vmem>>, vector<8x32xf32>
    tpu.vector_store %arg8[%643, %c0_178], %642 {strides = array<i32>} : memref<64x32xf32, #tpu.memory_space<vmem>>, vector<8x32xf32>,
    %c8_i32_179 = arith.constant 8 : i32
    %c3 = arith.constant 3 : index
    %c0_180 = arith.constant 0 : index
    %c0_181 = arith.constant 0 : index
    %645 = vector.load %arg3[%c3, %c0_180, %c0_181] : memref<4x32x128xbf16, #tpu.memory_space<vmem>>, vector<1x32x128xbf16>
    %646 = vector.shape_cast %645 : vector<1x32x128xbf16> to vector<32x128xbf16>
    %c0_182 = arith.constant 0 : index
    %c0_183 = arith.constant 0 : index
    %647 = vector.load %arg8[%c0_182, %c0_183] : memref<64x32xf32, #tpu.memory_space<vmem>>, vector<64x32xf32>
    %648 = arith.truncf %647 : vector<64x32xf32> to vector<64x32xbf16>
    %c3_184 = arith.constant 3 : index
    %c0_185 = arith.constant 0 : index
    %c0_186 = arith.constant 0 : index
    %649 = vector.load %arg2[%c3_184, %c0_185, %c0_186] : memref<4x32x128xbf16, #tpu.memory_space<vmem>>, vector<1x32x128xbf16>
    %650 = vector.shape_cast %649 : vector<1x32x128xbf16> to vector<32x128xbf16>
    %cst_187 = arith.constant dense<0.000000e+00> : vector<64x128xf32>
    %651 = tpu.matmul %648, %650, %cst_187 {dimension_numbers = #tpu.dot_dimension_numbers<[1], [0], [0], [1], [0, 0, 1, 1], [], []>} : vector<64x32xbf16>, vector<32x128xbf16>, vector<64x128xf32> -> vector<64x128xf32>
    %c3_188 = arith.constant 3 : index
    %c0_189 = arith.constant 0 : index
    %c0_190 = arith.constant 0 : index
    %652 = vector.load %arg4[%c3_188, %c0_189, %c0_190] : memref<4x1x128xf32, #tpu.memory_space<vmem>>, vector<1x1x128xf32>
    %653 = vector.shape_cast %652 : vector<1x1x128xf32> to vector<1x128xf32>
    %654 = vector.broadcast %653 : vector<1x128xf32> to vector<64x128xf32>
    %655 = arith.addf %651, %654 : vector<64x128xf32>
    %c0_191 = arith.constant 0 : index
    %c0_192 = arith.constant 0 : index
    %656 = vector.load %arg9[%c0_191, %c0_192] : memref<64x128xf32, #tpu.memory_space<vmem>>, vector<64x128xf32>
    tpu.vector_store %arg9[%c0_191, %c0_192], %655 {strides = array<i32>} : memref<64x128xf32, #tpu.memory_space<vmem>>, vector<64x128xf32>,
    %cst_193 = arith.constant 0.000000e+00 : f32
    %657 = vector.broadcast %cst_193 : f32 to vector<8x32xf32>
    %c0_i32_194 = arith.constant 0 : i32
    %c8_i32_195 = arith.constant 8 : i32
    %658 = arith.muli %c0_i32_194, %c8_i32_195 : i32
    %659 = tpu.assume_multiple %658, 8 : i32
    %660 = arith.index_cast %659 : i32 to index
    %c0_196 = arith.constant 0 : index
    %661 = vector.load %arg9[%660, %c0_196] : memref<64x128xf32, #tpu.memory_space<vmem>>, vector<8x128xf32>
    %662 = arith.truncf %657 : vector<8x32xf32> to vector<8x32xbf16>
    %cst_197 = arith.constant dense<0.000000e+00> : vector<8x128xf32>
    %663 = tpu.matmul %662, %646, %cst_197 {dimension_numbers = #tpu.dot_dimension_numbers<[1], [0], [0], [1], [0, 0, 1, 1], [], []>} : vector<8x32xbf16>, vector<32x128xbf16>, vector<8x128xf32> -> vector<8x128xf32>
    %664 = arith.addf %661, %663 : vector<8x128xf32>
    %665 = math.tanh %664 : vector<8x128xf32>
    %666 = arith.negf %664 : vector<8x128xf32>
    %667 = math.exp %666 : vector<8x128xf32>
    %cst_198 = arith.constant 1.000000e+00 : f32
    %668 = vector.broadcast %cst_198 : f32 to vector<8x128xf32>
    %669 = arith.addf %668, %667 : vector<8x128xf32>
    %670 = arith.divf %668, %669 : vector<8x128xf32>
    %671 = arith.select %5, %665, %670 : vector<8x128xi1>, vector<8x128xf32>
    %672 = vector.extract_strided_slice %671 {offsets = [0, 0], sizes = [8, 32], strides = [1, 1]} : vector<8x128xf32> to vector<8x32xf32>
    %673 = vector.extract_strided_slice %671 {offsets = [0, 32], sizes = [8, 32], strides = [1, 1]} : vector<8x128xf32> to vector<8x32xf32>
    %674 = vector.extract_strided_slice %671 {offsets = [0, 64], sizes = [8, 32], strides = [1, 1]} : vector<8x128xf32> to vector<8x32xf32>
    %675 = vector.extract_strided_slice %671 {offsets = [0, 96], sizes = [8, 32], strides = [1, 1]} : vector<8x128xf32> to vector<8x32xf32>
    %676 = arith.mulf %673, %657 : vector<8x32xf32>
    %677 = arith.mulf %672, %674 : vector<8x32xf32>
    %678 = arith.addf %676, %677 : vector<8x32xf32>
    %679 = math.tanh %678 : vector<8x32xf32>
    %680 = arith.mulf %675, %679 : vector<8x32xf32>
    %c1_i32_199 = arith.constant 1 : i32
    %c8_i32_200 = arith.constant 8 : i32
    %681 = arith.muli %c1_i32_199, %c8_i32_200 : i32
    %682 = tpu.assume_multiple %681, 8 : i32
    %683 = arith.index_cast %682 : i32 to index
    %c0_201 = arith.constant 0 : index
    %684 = vector.load %arg9[%683, %c0_201] : memref<64x128xf32, #tpu.memory_space<vmem>>, vector<8x128xf32>
    %685 = arith.truncf %680 : vector<8x32xf32> to vector<8x32xbf16>
    %cst_202 = arith.constant dense<0.000000e+00> : vector<8x128xf32>
    %686 = tpu.matmul %685, %646, %cst_202 {dimension_numbers = #tpu.dot_dimension_numbers<[1], [0], [0], [1], [0, 0, 1, 1], [], []>} : vector<8x32xbf16>, vector<32x128xbf16>, vector<8x128xf32> -> vector<8x128xf32>
    %687 = arith.addf %684, %686 : vector<8x128xf32>
    %688 = math.tanh %687 : vector<8x128xf32>
    %689 = arith.negf %687 : vector<8x128xf32>
    %690 = math.exp %689 : vector<8x128xf32>
    %cst_203 = arith.constant 1.000000e+00 : f32
    %691 = vector.broadcast %cst_203 : f32 to vector<8x128xf32>
    %692 = arith.addf %691, %690 : vector<8x128xf32>
    %693 = arith.divf %691, %692 : vector<8x128xf32>
    %694 = arith.select %5, %688, %693 : vector<8x128xi1>, vector<8x128xf32>
    %695 = vector.extract_strided_slice %694 {offsets = [0, 0], sizes = [8, 32], strides = [1, 1]} : vector<8x128xf32> to vector<8x32xf32>
    %696 = vector.extract_strided_slice %694 {offsets = [0, 32], sizes = [8, 32], strides = [1, 1]} : vector<8x128xf32> to vector<8x32xf32>
    %697 = vector.extract_strided_slice %694 {offsets = [0, 64], sizes = [8, 32], strides = [1, 1]} : vector<8x128xf32> to vector<8x32xf32>
    %698 = vector.extract_strided_slice %694 {offsets = [0, 96], sizes = [8, 32], strides = [1, 1]} : vector<8x128xf32> to vector<8x32xf32>
    %699 = arith.mulf %696, %678 : vector<8x32xf32>
    %700 = arith.mulf %695, %697 : vector<8x32xf32>
    %701 = arith.addf %699, %700 : vector<8x32xf32>
    %702 = math.tanh %701 : vector<8x32xf32>
    %703 = arith.mulf %698, %702 : vector<8x32xf32>
    %c2_i32_204 = arith.constant 2 : i32
    %c8_i32_205 = arith.constant 8 : i32
    %704 = arith.muli %c2_i32_204, %c8_i32_205 : i32
    %705 = tpu.assume_multiple %704, 8 : i32
    %706 = arith.index_cast %705 : i32 to index
    %c0_206 = arith.constant 0 : index
    %707 = vector.load %arg9[%706, %c0_206] : memref<64x128xf32, #tpu.memory_space<vmem>>, vector<8x128xf32>
    %708 = arith.truncf %703 : vector<8x32xf32> to vector<8x32xbf16>
    %cst_207 = arith.constant dense<0.000000e+00> : vector<8x128xf32>
    %709 = tpu.matmul %708, %646, %cst_207 {dimension_numbers = #tpu.dot_dimension_numbers<[1], [0], [0], [1], [0, 0, 1, 1], [], []>} : vector<8x32xbf16>, vector<32x128xbf16>, vector<8x128xf32> -> vector<8x128xf32>
    %710 = arith.addf %707, %709 : vector<8x128xf32>
    %711 = math.tanh %710 : vector<8x128xf32>
    %712 = arith.negf %710 : vector<8x128xf32>
    %713 = math.exp %712 : vector<8x128xf32>
    %cst_208 = arith.constant 1.000000e+00 : f32
    %714 = vector.broadcast %cst_208 : f32 to vector<8x128xf32>
    %715 = arith.addf %714, %713 : vector<8x128xf32>
    %716 = arith.divf %714, %715 : vector<8x128xf32>
    %717 = arith.select %5, %711, %716 : vector<8x128xi1>, vector<8x128xf32>
    %718 = vector.extract_strided_slice %717 {offsets = [0, 0], sizes = [8, 32], strides = [1, 1]} : vector<8x128xf32> to vector<8x32xf32>
    %719 = vector.extract_strided_slice %717 {offsets = [0, 32], sizes = [8, 32], strides = [1, 1]} : vector<8x128xf32> to vector<8x32xf32>
    %720 = vector.extract_strided_slice %717 {offsets = [0, 64], sizes = [8, 32], strides = [1, 1]} : vector<8x128xf32> to vector<8x32xf32>
    %721 = vector.extract_strided_slice %717 {offsets = [0, 96], sizes = [8, 32], strides = [1, 1]} : vector<8x128xf32> to vector<8x32xf32>
    %722 = arith.mulf %719, %701 : vector<8x32xf32>
    %723 = arith.mulf %718, %720 : vector<8x32xf32>
    %724 = arith.addf %722, %723 : vector<8x32xf32>
    %725 = math.tanh %724 : vector<8x32xf32>
    %726 = arith.mulf %721, %725 : vector<8x32xf32>
    %c3_i32_209 = arith.constant 3 : i32
    %c8_i32_210 = arith.constant 8 : i32
    %727 = arith.muli %c3_i32_209, %c8_i32_210 : i32
    %728 = tpu.assume_multiple %727, 8 : i32
    %729 = arith.index_cast %728 : i32 to index
    %c0_211 = arith.constant 0 : index
    %730 = vector.load %arg9[%729, %c0_211] : memref<64x128xf32, #tpu.memory_space<vmem>>, vector<8x128xf32>
    %731 = arith.truncf %726 : vector<8x32xf32> to vector<8x32xbf16>
    %cst_212 = arith.constant dense<0.000000e+00> : vector<8x128xf32>
    %732 = tpu.matmul %731, %646, %cst_212 {dimension_numbers = #tpu.dot_dimension_numbers<[1], [0], [0], [1], [0, 0, 1, 1], [], []>} : vector<8x32xbf16>, vector<32x128xbf16>, vector<8x128xf32> -> vector<8x128xf32>
    %733 = arith.addf %730, %732 : vector<8x128xf32>
    %734 = math.tanh %733 : vector<8x128xf32>
    %735 = arith.negf %733 : vector<8x128xf32>
    %736 = math.exp %735 : vector<8x128xf32>
    %cst_213 = arith.constant 1.000000e+00 : f32
    %737 = vector.broadcast %cst_213 : f32 to vector<8x128xf32>
    %738 = arith.addf %737, %736 : vector<8x128xf32>
    %739 = arith.divf %737, %738 : vector<8x128xf32>
    %740 = arith.select %5, %734, %739 : vector<8x128xi1>, vector<8x128xf32>
    %741 = vector.extract_strided_slice %740 {offsets = [0, 0], sizes = [8, 32], strides = [1, 1]} : vector<8x128xf32> to vector<8x32xf32>
    %742 = vector.extract_strided_slice %740 {offsets = [0, 32], sizes = [8, 32], strides = [1, 1]} : vector<8x128xf32> to vector<8x32xf32>
    %743 = vector.extract_strided_slice %740 {offsets = [0, 64], sizes = [8, 32], strides = [1, 1]} : vector<8x128xf32> to vector<8x32xf32>
    %744 = vector.extract_strided_slice %740 {offsets = [0, 96], sizes = [8, 32], strides = [1, 1]} : vector<8x128xf32> to vector<8x32xf32>
    %745 = arith.mulf %742, %724 : vector<8x32xf32>
    %746 = arith.mulf %741, %743 : vector<8x32xf32>
    %747 = arith.addf %745, %746 : vector<8x32xf32>
    %748 = math.tanh %747 : vector<8x32xf32>
    %749 = arith.mulf %744, %748 : vector<8x32xf32>
    %c4_i32_214 = arith.constant 4 : i32
    %c8_i32_215 = arith.constant 8 : i32
    %750 = arith.muli %c4_i32_214, %c8_i32_215 : i32
    %751 = tpu.assume_multiple %750, 8 : i32
    %752 = arith.index_cast %751 : i32 to index
    %c0_216 = arith.constant 0 : index
    %753 = vector.load %arg9[%752, %c0_216] : memref<64x128xf32, #tpu.memory_space<vmem>>, vector<8x128xf32>
    %754 = arith.truncf %749 : vector<8x32xf32> to vector<8x32xbf16>
    %cst_217 = arith.constant dense<0.000000e+00> : vector<8x128xf32>
    %755 = tpu.matmul %754, %646, %cst_217 {dimension_numbers = #tpu.dot_dimension_numbers<[1], [0], [0], [1], [0, 0, 1, 1], [], []>} : vector<8x32xbf16>, vector<32x128xbf16>, vector<8x128xf32> -> vector<8x128xf32>
    %756 = arith.addf %753, %755 : vector<8x128xf32>
    %757 = math.tanh %756 : vector<8x128xf32>
    %758 = arith.negf %756 : vector<8x128xf32>
    %759 = math.exp %758 : vector<8x128xf32>
    %cst_218 = arith.constant 1.000000e+00 : f32
    %760 = vector.broadcast %cst_218 : f32 to vector<8x128xf32>
    %761 = arith.addf %760, %759 : vector<8x128xf32>
    %762 = arith.divf %760, %761 : vector<8x128xf32>
    %763 = arith.select %5, %757, %762 : vector<8x128xi1>, vector<8x128xf32>
    %764 = vector.extract_strided_slice %763 {offsets = [0, 0], sizes = [8, 32], strides = [1, 1]} : vector<8x128xf32> to vector<8x32xf32>
    %765 = vector.extract_strided_slice %763 {offsets = [0, 32], sizes = [8, 32], strides = [1, 1]} : vector<8x128xf32> to vector<8x32xf32>
    %766 = vector.extract_strided_slice %763 {offsets = [0, 64], sizes = [8, 32], strides = [1, 1]} : vector<8x128xf32> to vector<8x32xf32>
    %767 = vector.extract_strided_slice %763 {offsets = [0, 96], sizes = [8, 32], strides = [1, 1]} : vector<8x128xf32> to vector<8x32xf32>
    %768 = arith.mulf %765, %747 : vector<8x32xf32>
    %769 = arith.mulf %764, %766 : vector<8x32xf32>
    %770 = arith.addf %768, %769 : vector<8x32xf32>
    %771 = math.tanh %770 : vector<8x32xf32>
    %772 = arith.mulf %767, %771 : vector<8x32xf32>
    %c5_i32_219 = arith.constant 5 : i32
    %c8_i32_220 = arith.constant 8 : i32
    %773 = arith.muli %c5_i32_219, %c8_i32_220 : i32
    %774 = tpu.assume_multiple %773, 8 : i32
    %775 = arith.index_cast %774 : i32 to index
    %c0_221 = arith.constant 0 : index
    %776 = vector.load %arg9[%775, %c0_221] : memref<64x128xf32, #tpu.memory_space<vmem>>, vector<8x128xf32>
    %777 = arith.truncf %772 : vector<8x32xf32> to vector<8x32xbf16>
    %cst_222 = arith.constant dense<0.000000e+00> : vector<8x128xf32>
    %778 = tpu.matmul %777, %646, %cst_222 {dimension_numbers = #tpu.dot_dimension_numbers<[1], [0], [0], [1], [0, 0, 1, 1], [], []>} : vector<8x32xbf16>, vector<32x128xbf16>, vector<8x128xf32> -> vector<8x128xf32>
    %779 = arith.addf %776, %778 : vector<8x128xf32>
    %780 = math.tanh %779 : vector<8x128xf32>
    %781 = arith.negf %779 : vector<8x128xf32>
    %782 = math.exp %781 : vector<8x128xf32>
    %cst_223 = arith.constant 1.000000e+00 : f32
    %783 = vector.broadcast %cst_223 : f32 to vector<8x128xf32>
    %784 = arith.addf %783, %782 : vector<8x128xf32>
    %785 = arith.divf %783, %784 : vector<8x128xf32>
    %786 = arith.select %5, %780, %785 : vector<8x128xi1>, vector<8x128xf32>
    %787 = vector.extract_strided_slice %786 {offsets = [0, 0], sizes = [8, 32], strides = [1, 1]} : vector<8x128xf32> to vector<8x32xf32>
    %788 = vector.extract_strided_slice %786 {offsets = [0, 32], sizes = [8, 32], strides = [1, 1]} : vector<8x128xf32> to vector<8x32xf32>
    %789 = vector.extract_strided_slice %786 {offsets = [0, 64], sizes = [8, 32], strides = [1, 1]} : vector<8x128xf32> to vector<8x32xf32>
    %790 = vector.extract_strided_slice %786 {offsets = [0, 96], sizes = [8, 32], strides = [1, 1]} : vector<8x128xf32> to vector<8x32xf32>
    %791 = arith.mulf %788, %770 : vector<8x32xf32>
    %792 = arith.mulf %787, %789 : vector<8x32xf32>
    %793 = arith.addf %791, %792 : vector<8x32xf32>
    %794 = math.tanh %793 : vector<8x32xf32>
    %795 = arith.mulf %790, %794 : vector<8x32xf32>
    %c6_i32_224 = arith.constant 6 : i32
    %c8_i32_225 = arith.constant 8 : i32
    %796 = arith.muli %c6_i32_224, %c8_i32_225 : i32
    %797 = tpu.assume_multiple %796, 8 : i32
    %798 = arith.index_cast %797 : i32 to index
    %c0_226 = arith.constant 0 : index
    %799 = vector.load %arg9[%798, %c0_226] : memref<64x128xf32, #tpu.memory_space<vmem>>, vector<8x128xf32>
    %800 = arith.truncf %795 : vector<8x32xf32> to vector<8x32xbf16>
    %cst_227 = arith.constant dense<0.000000e+00> : vector<8x128xf32>
    %801 = tpu.matmul %800, %646, %cst_227 {dimension_numbers = #tpu.dot_dimension_numbers<[1], [0], [0], [1], [0, 0, 1, 1], [], []>} : vector<8x32xbf16>, vector<32x128xbf16>, vector<8x128xf32> -> vector<8x128xf32>
    %802 = arith.addf %799, %801 : vector<8x128xf32>
    %803 = math.tanh %802 : vector<8x128xf32>
    %804 = arith.negf %802 : vector<8x128xf32>
    %805 = math.exp %804 : vector<8x128xf32>
    %cst_228 = arith.constant 1.000000e+00 : f32
    %806 = vector.broadcast %cst_228 : f32 to vector<8x128xf32>
    %807 = arith.addf %806, %805 : vector<8x128xf32>
    %808 = arith.divf %806, %807 : vector<8x128xf32>
    %809 = arith.select %5, %803, %808 : vector<8x128xi1>, vector<8x128xf32>
    %810 = vector.extract_strided_slice %809 {offsets = [0, 0], sizes = [8, 32], strides = [1, 1]} : vector<8x128xf32> to vector<8x32xf32>
    %811 = vector.extract_strided_slice %809 {offsets = [0, 32], sizes = [8, 32], strides = [1, 1]} : vector<8x128xf32> to vector<8x32xf32>
    %812 = vector.extract_strided_slice %809 {offsets = [0, 64], sizes = [8, 32], strides = [1, 1]} : vector<8x128xf32> to vector<8x32xf32>
    %813 = vector.extract_strided_slice %809 {offsets = [0, 96], sizes = [8, 32], strides = [1, 1]} : vector<8x128xf32> to vector<8x32xf32>
    %814 = arith.mulf %811, %793 : vector<8x32xf32>
    %815 = arith.mulf %810, %812 : vector<8x32xf32>
    %816 = arith.addf %814, %815 : vector<8x32xf32>
    %817 = math.tanh %816 : vector<8x32xf32>
    %818 = arith.mulf %813, %817 : vector<8x32xf32>
    %c7_i32_229 = arith.constant 7 : i32
    %c8_i32_230 = arith.constant 8 : i32
    %819 = arith.muli %c7_i32_229, %c8_i32_230 : i32
    %820 = tpu.assume_multiple %819, 8 : i32
    %821 = arith.index_cast %820 : i32 to index
    %c0_231 = arith.constant 0 : index
    %822 = vector.load %arg9[%821, %c0_231] : memref<64x128xf32, #tpu.memory_space<vmem>>, vector<8x128xf32>
    %823 = arith.truncf %818 : vector<8x32xf32> to vector<8x32xbf16>
    %cst_232 = arith.constant dense<0.000000e+00> : vector<8x128xf32>
    %824 = tpu.matmul %823, %646, %cst_232 {dimension_numbers = #tpu.dot_dimension_numbers<[1], [0], [0], [1], [0, 0, 1, 1], [], []>} : vector<8x32xbf16>, vector<32x128xbf16>, vector<8x128xf32> -> vector<8x128xf32>
    %825 = arith.addf %822, %824 : vector<8x128xf32>
    %826 = math.tanh %825 : vector<8x128xf32>
    %827 = arith.negf %825 : vector<8x128xf32>
    %828 = math.exp %827 : vector<8x128xf32>
    %cst_233 = arith.constant 1.000000e+00 : f32
    %829 = vector.broadcast %cst_233 : f32 to vector<8x128xf32>
    %830 = arith.addf %829, %828 : vector<8x128xf32>
    %831 = arith.divf %829, %830 : vector<8x128xf32>
    %832 = arith.select %5, %826, %831 : vector<8x128xi1>, vector<8x128xf32>
    %833 = vector.extract_strided_slice %832 {offsets = [0, 0], sizes = [8, 32], strides = [1, 1]} : vector<8x128xf32> to vector<8x32xf32>
    %834 = vector.extract_strided_slice %832 {offsets = [0, 32], sizes = [8, 32], strides = [1, 1]} : vector<8x128xf32> to vector<8x32xf32>
    %835 = vector.extract_strided_slice %832 {offsets = [0, 64], sizes = [8, 32], strides = [1, 1]} : vector<8x128xf32> to vector<8x32xf32>
    %836 = vector.extract_strided_slice %832 {offsets = [0, 96], sizes = [8, 32], strides = [1, 1]} : vector<8x128xf32> to vector<8x32xf32>
    %837 = arith.mulf %834, %816 : vector<8x32xf32>
    %838 = arith.mulf %833, %835 : vector<8x32xf32>
    %839 = arith.addf %837, %838 : vector<8x32xf32>
    %840 = math.tanh %839 : vector<8x32xf32>
    %841 = arith.mulf %836, %840 : vector<8x32xf32>
    %c8_i32_234 = arith.constant 8 : i32
    %842 = arith.truncf %841 : vector<8x32xf32> to vector<8x32xbf16>
    %c0_235 = arith.constant 0 : index
    %c0_236 = arith.constant 0 : index
    %843 = vector.load %arg5[%c0_235, %c0_236] : memref<32x128xbf16, #tpu.memory_space<vmem>>, vector<32x128xbf16>
    %cst_237 = arith.constant dense<0.000000e+00> : vector<8x128xf32>
    %844 = tpu.matmul %842, %843, %cst_237 {dimension_numbers = #tpu.dot_dimension_numbers<[1], [0], [0], [1], [0, 0, 1, 1], [], []>} : vector<8x32xbf16>, vector<32x128xbf16>, vector<8x128xf32> -> vector<8x128xf32>
    %c0_238 = arith.constant 0 : index
    %c0_239 = arith.constant 0 : index
    %845 = vector.load %arg6[%c0_238, %c0_239] : memref<1x128xf32, #tpu.memory_space<vmem>>, vector<1x128xf32>
    %846 = vector.broadcast %845 : vector<1x128xf32> to vector<8x128xf32>
    %847 = arith.addf %844, %846 : vector<8x128xf32>
    %c0_240 = arith.constant 0 : index
    %c0_241 = arith.constant 0 : index
    %848 = vector.load %arg7[%c0_240, %c0_241] : memref<8x128xf32, #tpu.memory_space<vmem>>, vector<8x128xf32>
    tpu.vector_store %arg7[%c0_240, %c0_241], %847 {strides = array<i32>} : memref<8x128xf32, #tpu.memory_space<vmem>>, vector<8x128xf32>,
    return
  }
  func.func @transform_0(%arg0: i32) -> (i32, i32, i32) {
    %c0_i32 = arith.constant 0 : i32
    %c0_i32_0 = arith.constant 0 : i32
    %c0_i32_1 = arith.constant 0 : i32
    return %arg0, %c0_i32, %c0_i32_0 : i32, i32, i32
  }
  func.func @transform_1(%arg0: i32) -> (i32, i32, i32) {
    %c0_i32 = arith.constant 0 : i32
    %c0_i32_0 = arith.constant 0 : i32
    %c0_i32_1 = arith.constant 0 : i32
    %c0_i32_2 = arith.constant 0 : i32
    return %c0_i32, %c0_i32_0, %c0_i32_1 : i32, i32, i32
  }
  func.func @transform_2(%arg0: i32) -> (i32, i32, i32) {
    %c0_i32 = arith.constant 0 : i32
    %c0_i32_0 = arith.constant 0 : i32
    %c0_i32_1 = arith.constant 0 : i32
    %c0_i32_2 = arith.constant 0 : i32
    return %c0_i32, %c0_i32_0, %c0_i32_1 : i32, i32, i32
  }
  func.func @transform_3(%arg0: i32) -> (i32, i32, i32) {
    %c0_i32 = arith.constant 0 : i32
    %c0_i32_0 = arith.constant 0 : i32
    %c0_i32_1 = arith.constant 0 : i32
    %c0_i32_2 = arith.constant 0 : i32
    return %c0_i32, %c0_i32_0, %c0_i32_1 : i32, i32, i32
  }
  func.func @transform_4(%arg0: i32) -> (i32, i32) {
    %c0_i32 = arith.constant 0 : i32
    %c0_i32_0 = arith.constant 0 : i32
    %c0_i32_1 = arith.constant 0 : i32
    return %c0_i32, %c0_i32_0 : i32, i32
  }
  func.func @transform_5(%arg0: i32) -> (i32, i32) {
    %c0_i32 = arith.constant 0 : i32
    %c0_i32_0 = arith.constant 0 : i32
    %c0_i32_1 = arith.constant 0 : i32
    return %c0_i32, %c0_i32_0 : i32, i32
  }
  func.func @transform_6(%arg0: i32) -> (i32, i32) {
    %c0_i32 = arith.constant 0 : i32
    %c0_i32_0 = arith.constant 0 : i32
    return %arg0, %c0_i32 : i32, i32
  }
}

</mosaic_0001>

<llo_original>
// kernel: tpu_custom_call.1
$region0: #{tpu_custom_call.1}
  #allocation0 [shape = 'u32[]', space=smem, size = 0x4, offset = 0x4, fixed_abs, tag = 'smem constant byte address 0x4 - core index']
  #allocation1 [shape = 'u32[144,128]{1,0:T(1,128)}', space=vmem, size = 0x12000, scoped, tag = 'internal scratch']
  #allocation2 [shape = 'f32[64,32]{1,0:T(8,128)}', space=vmem, size = 0x8000, scoped, tag = 'scratch operand']
  #allocation3 [shape = 'f32[64,128]{1,0:T(8,128)}', space=vmem, size = 0x8000, scoped, tag = 'scratch operand']
  %s0 = inlined_call_operand.vmem [shape: bf16[1,64,32], index: 0, kind: input, shape index: {}]
  %s1 = inlined_call_operand.hbm [shape: bf16[4,32,128], index: 1, kind: input, shape index: {}]
  %s2 = inlined_call_operand.hbm [shape: bf16[4,32,128], index: 2, kind: input, shape index: {}]
  %s3 = inlined_call_operand.vmem [shape: f32[4,1,128], index: 3, kind: input, shape index: {}]
  %s4 = inlined_call_operand.vmem [shape: bf16[32,128], index: 4, kind: input, shape index: {}]
  %s5 = inlined_call_operand.vmem [shape: f32[1,128], index: 5, kind: input, shape index: {}]
  %s6 = inlined_call_operand.hbm [shape: f32[8,128], index: 6, kind: output, shape index: {}]
  %s7 = sld [smem:[#allocation0]]
  $region42: #{tpu_custom_call.1} parent=0
    _
  %s9 = ssub.s32 1, %s7
  %s10 = scalar_select 0, %s9, %s7
  $region1: #{tpu_custom_call.1} parent=0
    #allocation4 [shape = 'u8[32768]{0}', space=vmem, size = 0x8000, scoped, tag = 'input window, operand 1, single buffered']
    #allocation5 [shape = 's32[1]{0}', space=sflag, size = 0x4, scoped, tag = 'scoped memory for tpu_custom_call.1']
    #allocation6 [shape = 's32[1]{0}', space=sflag, size = 0x4, scoped, tag = 'scoped memory for tpu_custom_call.1']
    #allocation7 [shape = 'u8[32768]{0}', space=vmem, size = 0x8000, scoped, tag = 'input window, operand 2, single buffered']
    #allocation8 [shape = 's32[1]{0}', space=sflag, size = 0x4, scoped, tag = 'scoped memory for tpu_custom_call.1']
    #allocation9 [shape = 'u8[4096]{0}', space=vmem, size = 0x1000, scoped, tag = 'output window, operand 0, single buffered']
    %11 = vsyncpa [#allocation5], 0
    %12 = vsyncpa [#allocation8], 0
    %13 = vsyncpa [#allocation6], 0
    // Predicated region
    $region2: #{tpu_custom_call.1} parent=1 // pred_check
      _
    $region3: #{tpu_custom_call.1} parent=1 // pred_check_branch
      %15 = sbr.rel (0) target = $region5
    $region4: #{tpu_custom_call.1} parent=1 // pred_region
      _
    $region5: #{tpu_custom_call.1} parent=1 // pred_fallthru
      _
    // Predicated region
    $region6: #{tpu_custom_call.1} parent=1 // pred_check
      _
    $region7: #{tpu_custom_call.1} parent=1 // pred_check_branch
      %17 = sbr.rel (0) target = $region9
    $region8: #{tpu_custom_call.1} parent=1 // pred_region
      %s19 = ssub.s32 1024, 1024
      %20 = vsyncadd [#allocation5], %s19
      %s21 = sshll.u32 [#allocation4], 4
      %s22 = int_to_ptr.vmem [resolvable:$true] %s21
      %27 = dma.hbm_to_vmem [thread:$0]  %s1, 1024, %s22, [#allocation5], 64, 64, 4
    $region9: #{tpu_custom_call.1} parent=1 // pred_fallthru
      _
    // Predicated region
    $region10: #{tpu_custom_call.1} parent=1 // pred_check
      _
    $region11: #{tpu_custom_call.1} parent=1 // pred_check_branch
      %29 = sbr.rel (0) target = $region13
    $region12: #{tpu_custom_call.1} parent=1 // pred_region
      %s31 = ssub.s32 1024, 1024
      %32 = vsyncadd [#allocation8], %s31
      %s33 = sshll.u32 [#allocation7], 4
      %s34 = int_to_ptr.vmem [resolvable:$true] %s33
      %39 = dma.hbm_to_vmem [thread:$0]  %s2, 1024, %s34, [#allocation8], 64, 64, 4
    $region13: #{tpu_custom_call.1} parent=1 // pred_fallthru
      _
    // Predicated region
    $region14: #{tpu_custom_call.1} parent=1 // pred_check
      _
    $region15: #{tpu_custom_call.1} parent=1 // pred_check_branch
      %41 = sbr.rel (0) target = $region17
    $region16: #{tpu_custom_call.1} parent=1 // pred_region
      _
    $region17: #{tpu_custom_call.1} parent=1 // pred_fallthru
      _
    // Predicated region
    $region18: #{tpu_custom_call.1} parent=1 // pred_check
      _
    $region19: #{tpu_custom_call.1} parent=1 // pred_check_branch
      %43 = sbr.rel (0) target = $region21
    $region20: #{tpu_custom_call.1} parent=1 // pred_region
      _
    $region21: #{tpu_custom_call.1} parent=1 // pred_fallthru
      _
    // Predicated region
    $region22: #{tpu_custom_call.1} parent=1 // pred_check
      _
    $region23: #{tpu_custom_call.1} parent=1 // pred_check_branch
      %45 = sbr.rel (0) target = $region25
    $region24: #{tpu_custom_call.1} parent=1 // pred_region
      _
    $region25: #{tpu_custom_call.1} parent=1 // pred_fallthru
      _
    // Predicated region
    $region26: #{tpu_custom_call.1} parent=1 // pred_check
      _
    $region27: #{tpu_custom_call.1} parent=1 // pred_check_branch
      %47 = sbr.rel (0) target = $region29
    $region28: #{tpu_custom_call.1} parent=1 // pred_region
      %48 = dma.done [#allocation5], 1024
    $region29: #{tpu_custom_call.1} parent=1 // pred_fallthru
      _
    // Predicated region
    $region30: #{tpu_custom_call.1} parent=1 // pred_check
      _
    $region31: #{tpu_custom_call.1} parent=1 // pred_check_branch
      %50 = sbr.rel (0) target = $region33
    $region32: #{tpu_custom_call.1} parent=1 // pred_region
      %51 = dma.done [#allocation8], 1024
    $region33: #{tpu_custom_call.1} parent=1 // pred_fallthru
      _
    %v53 = vlaneseq
    %v54 = vand.u32 %v53, 127
    %vm55 = vcmp.ge.s32.totalorder %v54, 64
    %vm56 = vcmp.lt.s32.totalorder %v54, 96
    %vm57 = vmand %vm55, %vm56
    %v58 = vld [vmem:[#allocation7] sm:$0xf]
    %v59 = vld [vmem:[#allocation7 + $0x4] sm:$0xf]
    %v60 = vld [vmem:[#allocation7 + $0x8] sm:$0xf]
    %v61 = vld [vmem:[#allocation7 + $0xc] sm:$0xf]
    %v62 = vld [vmem:[%s0] sm:$0xf]
    %v63 = vld [vmem:[%s0 + $0x4] sm:$0xf]
    %v64 = vld [vmem:[%s0 + $0x8] sm:$0xf]
    %v65 = vld [vmem:[%s0 + $0xc] sm:$0xf]
    %v66 = vld [vmem:[%s0 + $0x10] sm:$0xf]
    %v67 = vld [vmem:[%s0 + $0x14] sm:$0xf]
    %v68 = vld [vmem:[%s0 + $0x18] sm:$0xf]
    %v69 = vld [vmem:[%s0 + $0x1c] sm:$0xf]
    %v70 = vld [vmem:[#allocation4] sm:$0xf]
    %v71 = vld [vmem:[#allocation4 + $0x4] sm:$0xf]
    %v72 = vld [vmem:[#allocation4 + $0x8] sm:$0xf]
    %v73 = vld [vmem:[#allocation4 + $0xc] sm:$0xf]
    %v74 = vld [vmem:[%s3] sm:$0x1]
    %v76 = vlaneseq
    %v77 = vshrl.u32 %v76, 7
    %v78 = vsub.s32 0, %v77
    %v79 = vrot.slane %v74, %v78
    %v89 = vunpack.c.l.b16 %v62
    %v90 = vunpack.c.l.b16 %v63
    %v91 = vunpack.c.l.b16 %v64
    %v92 = vunpack.c.l.b16 %v65
    %v93 = vunpack.c.l.b16 %v66
    %v94 = vunpack.c.l.b16 %v67
    %v95 = vunpack.c.l.b16 %v68
    %v96 = vunpack.c.l.b16 %v69
    %v97 = vpack.c.b16 %v90, %v89
    %v98 = vpack.c.b16 %v92, %v91
    %v99 = vpack.c.b16 %v94, %v93
    %v100 = vpack.c.b16 %v96, %v95
    %v105 = vunpack.c.l.b16 %v70
    %v106 = vunpack.c.l.b16 %v71
    %v107 = vunpack.c.l.b16 %v72
    %v108 = vunpack.c.l.b16 %v73
    %v109 = vpack.c.b16 %v106, %v105
    %v110 = vpack.c.b16 %v108, %v107
    %vm113 = vcmask 261120
    %v115 = vsel %vm113, %v97, 0
    %v118 = vsel %vm113, %v98, 0
    %v121 = vsel %vm113, %v99, 0
    %v124 = vsel %vm113, %v100, 0
    %126 = vmatprep.subr.bf16.mxu0 0
    %127 = vmatpush1.bf16.msra.mxu0 0
    %128 = vmatprep.subr.bf16.mxu0 0
    %129 = vmatpush1.bf16.msra.mxu0 0
    %130 = vmatprep.subr.bf16.mxu0 0
    %131 = vmatpush1.bf16.msra.mxu0 0
    %132 = vmatprep.subr.bf16.mxu0 0
    %133 = vmatpush1.bf16.msra.mxu0 0
    %134 = vmatprep.subr.bf16.mxu0 0
    %135 = vmatpush1.bf16.msra.mxu0 0
    %136 = vmatprep.subr.bf16.mxu0 0
    %137 = vmatpush1.bf16.msra.mxu0 0
    %138 = vmatprep.subr.bf16.mxu0 0
    %139 = vmatpush1.bf16.msra.mxu0 %v110
    %140 = vmatprep.subr.bf16.mxu0 0
    %141 = vmatpush1.bf16.msra.mxu0 %v109
    %142 = vmatprep.subr.bf16.mxu0 0
    %143 = vmatpush2.bf16.msra.mxu0 0
    %144 = vmatprep.subr.bf16.mxu0 0
    %145 = vmatpush2.bf16.msra.mxu0 0
    %146 = vmatprep.subr.bf16.mxu0 0
    %147 = vmatpush2.bf16.msra.mxu0 0
    %148 = vmatprep.subr.bf16.mxu0 0
    %149 = vmatpush2.bf16.msra.mxu0 0
    %150 = vmatprep.subr.bf16.mxu0 0
    %151 = vmatpush2.bf16.msra.mxu0 0
    %152 = vmatprep.subr.bf16.mxu0 0
    %153 = vmatpush2.bf16.msra.mxu0 0
    %154 = vmatprep.subr.bf16.mxu0 0
    %155 = vmatpush2.bf16.msra.mxu0 0
    %156 = vmatprep.subr.bf16.mxu0 0
    %157 = vmatpush2.bf16.msra.mxu0 0
    %158 = vmatprep.mubr.bf16.mxu0 0
    %159 = vmatmul.mubr.bf16.gmra.mxu0 %v115
    %v160 = vpop.f32.mrf.mxu0
    %v161 = vadd.f32 %v79, %v160
    %v162 = vpop.f32.mrf.mxu0
    %v163 = vpop.f32.mrf.mxu0
    %v164 = vadd.f32 %v79, %v163
    %v165 = vpop.f32.mrf.mxu0
    %166 = vmatprep.mubr.bf16.mxu0 0
    %167 = vmatmul.mubr.bf16.gmra.mxu0 %v118
    %v168 = vpop.f32.mrf.mxu0
    %v169 = vadd.f32 %v79, %v168
    %v170 = vpop.f32.mrf.mxu0
    %v171 = vpop.f32.mrf.mxu0
    %v172 = vadd.f32 %v79, %v171
    %v173 = vpop.f32.mrf.mxu0
    %174 = vmatprep.mubr.bf16.mxu0 0
    %175 = vmatmul.mubr.bf16.gmra.mxu0 %v121
    %v176 = vpop.f32.mrf.mxu0
    %v177 = vadd.f32 %v79, %v176
    %v178 = vpop.f32.mrf.mxu0
    %v179 = vpop.f32.mrf.mxu0
    %v180 = vadd.f32 %v79, %v179
    %v181 = vpop.f32.mrf.mxu0
    %182 = vmatprep.mubr.bf16.mxu0 0
    %183 = vmatmul.mubr.bf16.gmra.mxu0 %v124
    %v184 = vpop.f32.mrf.mxu0
    %v185 = vadd.f32 %v79, %v184
    %v186 = vpop.f32.mrf.mxu0
    %v187 = vpop.f32.mrf.mxu0
    %v188 = vadd.f32 %v79, %v187
    %v189 = vpop.f32.mrf.mxu0
    %190 = vdwg.mxu0
    %191 = vst [vmem:[#allocation3] sm:$0xff] %v161
    %192 = vst [vmem:[#allocation3 + $0x8] sm:$0xff] %v164
    %193 = vst [vmem:[#allocation3 + $0x10] sm:$0xff] %v169
    %194 = vst [vmem:[#allocation3 + $0x18] sm:$0xff] %v172
    %195 = vst [vmem:[#allocation3 + $0x20] sm:$0xff] %v177
    %196 = vst [vmem:[#allocation3 + $0x28] sm:$0xff] %v180
    %197 = vst [vmem:[#allocation3 + $0x30] sm:$0xff] %v185
    %198 = vst [vmem:[#allocation3 + $0x38] sm:$0xff] %v188
    %v199 = vld [vmem:[#allocation3] sm:$0xff]
    %v204 = vunpack.c.l.b16 %v58
    %v205 = vunpack.c.l.b16 %v59
    %v206 = vunpack.c.l.b16 %v60
    %v207 = vunpack.c.l.b16 %v61
    %v208 = vpack.c.b16 %v205, %v204
    %v209 = vpack.c.b16 %v207, %v206
    %v213 = vsel %vm113, 0, 0
    %215 = vmatprep.subr.bf16.mxu0 0
    %216 = vmatpush1.bf16.msra.mxu0 0
    %217 = vmatprep.subr.bf16.mxu0 0
    %218 = vmatpush1.bf16.msra.mxu0 0
    %219 = vmatprep.subr.bf16.mxu0 0
    %220 = vmatpush1.bf16.msra.mxu0 0
    %221 = vmatprep.subr.bf16.mxu0 0
    %222 = vmatpush1.bf16.msra.mxu0 0
    %223 = vmatprep.subr.bf16.mxu0 0
    %224 = vmatpush1.bf16.msra.mxu0 0
    %225 = vmatprep.subr.bf16.mxu0 0
    %226 = vmatpush1.bf16.msra.mxu0 0
    %227 = vmatprep.subr.bf16.mxu0 0
    %228 = vmatpush1.bf16.msra.mxu0 %v209
    %229 = vmatprep.subr.bf16.mxu0 0
    %230 = vmatpush1.bf16.msra.mxu0 %v208
    %231 = vmatprep.subr.bf16.mxu0 0
    %232 = vmatpush2.bf16.msra.mxu0 0
    %233 = vmatprep.subr.bf16.mxu0 0
    %234 = vmatpush2.bf16.msra.mxu0 0
    %235 = vmatprep.subr.bf16.mxu0 0
    %236 = vmatpush2.bf16.msra.mxu0 0
    %237 = vmatprep.subr.bf16.mxu0 0
    %238 = vmatpush2.bf16.msra.mxu0 0
    %239 = vmatprep.subr.bf16.mxu0 0
    %240 = vmatpush2.bf16.msra.mxu0 0
    %241 = vmatprep.subr.bf16.mxu0 0
    %242 = vmatpush2.bf16.msra.mxu0 0
    %243 = vmatprep.subr.bf16.mxu0 0
    %244 = vmatpush2.bf16.msra.mxu0 0
    %245 = vmatprep.subr.bf16.mxu0 0
    %246 = vmatpush2.bf16.msra.mxu0 0
    %247 = vmatprep.mubr.bf16.mxu0 0
    %248 = vmatmul.mubr.bf16.gmra.mxu0 %v213
    %v249 = vpop.f32.mrf.mxu0
    %v250 = vadd.f32 0.0, %v249
    %v251 = vpop.f32.mrf.mxu0
    %v252 = vpop.f32.mrf.mxu0
    %v253 = vpop.f32.mrf.mxu0
    %254 = vdwg.mxu0
    %v255 = vadd.f32 %v199, %v250
    %v256 = vtanh.pop %v255
    %v257 = vxor.u32 %v255, 2147483648
    %v258 = vmul.f32 %v257, 1.442695
    %v259 = vpow.pop %v258
    %v260 = vadd.f32 %v259, 1.0
    %v261 = vrcp.pop %v260
    %v262 = vmul.f32 1.0, %v261
    %v263 = vsel %vm57, %v256, %v262
    %v264 = vmul.f32 %v263, 0.0
    %266 = vrot.lane.b32.xlu0 %v263, 64
    %v267 = vpop.permute.xlu0 %266
    %v269 = vmul.f32 %v263, %v267
    %271 = vrot.lane.b32.xlu0 %v269, 32
    %v272 = vpop.permute.xlu0 %271
    %v274 = vadd.f32 %v264, %v272
    %v275 = vtanh.pop %v274
    %277 = vrot.lane.b32.xlu0 %v275, 64
    %v278 = vpop.permute.xlu0 %277
    %v280 = vmul.f32 %v263, %v278
    %282 = vrot.lane.b32.xlu0 %v280, 32
    %v283 = vpop.permute.xlu0 %282
    %285 = vst.msk [vmem:[#allocation2] sm:$0xff] %vm113, %v283
    %s286 = scalar_lea.vmem [#allocation3], 8
    %v287 = vld [vmem:[%s286] sm:$0xff]
    %v288 = vpack.c.bf16 %v280, %v280
    %290 = vrot.lane.b32.xlu0 %v288, 32
    %v291 = vpop.permute.xlu0 %290
    %v293 = vsel %vm113, %v291, 0
    %295 = vmatprep.subr.bf16.mxu0 0
    %296 = vmatpush1.bf16.msra.mxu0 0
    %297 = vmatprep.subr.bf16.mxu0 0
    %298 = vmatpush1.bf16.msra.mxu0 0
    %299 = vmatprep.subr.bf16.mxu0 0
    %300 = vmatpush1.bf16.msra.mxu0 0
    %301 = vmatprep.subr.bf16.mxu0 0
    %302 = vmatpush1.bf16.msra.mxu0 0
    %303 = vmatprep.subr.bf16.mxu0 0
    %304 = vmatpush1.bf16.msra.mxu0 0
    %305 = vmatprep.subr.bf16.mxu0 0
    %306 = vmatpush1.bf16.msra.mxu0 0
    %307 = vmatprep.subr.bf16.mxu0 0
    %308 = vmatpush1.bf16.msra.mxu0 %v209
    %309 = vmatprep.subr.bf16.mxu0 0
    %310 = vmatpush1.bf16.msra.mxu0 %v208
    %311 = vmatprep.subr.bf16.mxu0 0
    %312 = vmatpush2.bf16.msra.mxu0 0
    %313 = vmatprep.subr.bf16.mxu0 0
    %314 = vmatpush2.bf16.msra.mxu0 0
    %315 = vmatprep.subr.bf16.mxu0 0
    %316 = vmatpush2.bf16.msra.mxu0 0
    %317 = vmatprep.subr.bf16.mxu0 0
    %318 = vmatpush2.bf16.msra.mxu0 0
    %319 = vmatprep.subr.bf16.mxu0 0
    %320 = vmatpush2.bf16.msra.mxu0 0
    %321 = vmatprep.subr.bf16.mxu0 0
    %322 = vmatpush2.bf16.msra.mxu0 0
    %323 = vmatprep.subr.bf16.mxu0 0
    %324 = vmatpush2.bf16.msra.mxu0 0
    %325 = vmatprep.subr.bf16.mxu0 0
    %326 = vmatpush2.bf16.msra.mxu0 0
    %327 = vmatprep.mubr.bf16.mxu0 0
    %328 = vmatmul.mubr.bf16.gmra.mxu0 %v293
    %v329 = vpop.f32.mrf.mxu0
    %v330 = vadd.f32 0.0, %v329
    %v331 = vpop.f32.mrf.mxu0
    %v332 = vpop.f32.mrf.mxu0
    %v333 = vpop.f32.mrf.mxu0
    %334 = vdwg.mxu0
    %v335 = vadd.f32 %v287, %v330
    %v336 = vtanh.pop %v335
    %v337 = vxor.u32 %v335, 2147483648
    %v338 = vmul.f32 %v337, 1.442695
    %v339 = vpow.pop %v338
    %v340 = vadd.f32 %v339, 1.0
    %v341 = vrcp.pop %v340
    %v342 = vmul.f32 1.0, %v341
    %v343 = vsel %vm57, %v336, %v342
    %v344 = vmul.f32 %v343, %v274
    %346 = vrot.lane.b32.xlu0 %v343, 64
    %v347 = vpop.permute.xlu0 %346
    %v349 = vmul.f32 %v343, %v347
    %351 = vrot.lane.b32.xlu0 %v349, 32
    %v352 = vpop.permute.xlu0 %351
    %v354 = vadd.f32 %v344, %v352
    %v355 = vtanh.pop %v354
    %357 = vrot.lane.b32.xlu0 %v355, 64
    %v358 = vpop.permute.xlu0 %357
    %v360 = vmul.f32 %v343, %v358
    %362 = vrot.lane.b32.xlu0 %v360, 32
    %v363 = vpop.permute.xlu0 %362
    %s365 = scalar_lea.vmem [#allocation2], 8
    %366 = vst.msk [vmem:[%s365] sm:$0xff] %vm113, %v363
    %s367 = scalar_lea.vmem [#allocation3], 16
    %v368 = vld [vmem:[%s367] sm:$0xff]
    %v369 = vpack.c.bf16 %v360, %v360
    %371 = vrot.lane.b32.xlu0 %v369, 32
    %v372 = vpop.permute.xlu0 %371
    %v374 = vsel %vm113, %v372, 0
    %376 = vmatprep.subr.bf16.mxu0 0
    %377 = vmatpush1.bf16.msra.mxu0 0
    %378 = vmatprep.subr.bf16.mxu0 0
    %379 = vmatpush1.bf16.msra.mxu0 0
    %380 = vmatprep.subr.bf16.mxu0 0
    %381 = vmatpush1.bf16.msra.mxu0 0
    %382 = vmatprep.subr.bf16.mxu0 0
    %383 = vmatpush1.bf16.msra.mxu0 0
    %384 = vmatprep.subr.bf16.mxu0 0
    %385 = vmatpush1.bf16.msra.mxu0 0
    %386 = vmatprep.subr.bf16.mxu0 0
    %387 = vmatpush1.bf16.msra.mxu0 0
    %388 = vmatprep.subr.bf16.mxu0 0
    %389 = vmatpush1.bf16.msra.mxu0 %v209
    %390 = vmatprep.subr.bf16.mxu0 0
    %391 = vmatpush1.bf16.msra.mxu0 %v208
    %392 = vmatprep.subr.bf16.mxu0 0
    %393 = vmatpush2.bf16.msra.mxu0 0
    %394 = vmatprep.subr.bf16.mxu0 0
    %395 = vmatpush2.bf16.msra.mxu0 0
    %396 = vmatprep.subr.bf16.mxu0 0
    %397 = vmatpush2.bf16.msra.mxu0 0
    %398 = vmatprep.subr.bf16.mxu0 0
    %399 = vmatpush2.bf16.msra.mxu0 0
    %400 = vmatprep.subr.bf16.mxu0 0
    %401 = vmatpush2.bf16.msra.mxu0 0
    %402 = vmatprep.subr.bf16.mxu0 0
    %403 = vmatpush2.bf16.msra.mxu0 0
    %404 = vmatprep.subr.bf16.mxu0 0
    %405 = vmatpush2.bf16.msra.mxu0 0
    %406 = vmatprep.subr.bf16.mxu0 0
    %407 = vmatpush2.bf16.msra.mxu0 0
    %408 = vmatprep.mubr.bf16.mxu0 0
    %409 = vmatmul.mubr.bf16.gmra.mxu0 %v374
    %v410 = vpop.f32.mrf.mxu0
    %v411 = vadd.f32 0.0, %v410
    %v412 = vpop.f32.mrf.mxu0
    %v413 = vpop.f32.mrf.mxu0
    %v414 = vpop.f32.mrf.mxu0
    %415 = vdwg.mxu0
    %v416 = vadd.f32 %v368, %v411
    %v417 = vtanh.pop %v416
    %v418 = vxor.u32 %v416, 2147483648
    %v419 = vmul.f32 %v418, 1.442695
    %v420 = vpow.pop %v419
    %v421 = vadd.f32 %v420, 1.0
    %v422 = vrcp.pop %v421
    %v423 = vmul.f32 1.0, %v422
    %v424 = vsel %vm57, %v417, %v423
    %v425 = vmul.f32 %v424, %v354
    %427 = vrot.lane.b32.xlu0 %v424, 64
    %v428 = vpop.permute.xlu0 %427
    %v430 = vmul.f32 %v424, %v428
    %432 = vrot.lane.b32.xlu0 %v430, 32
    %v433 = vpop.permute.xlu0 %432
    %v435 = vadd.f32 %v425, %v433
    %v436 = vtanh.pop %v435
    %438 = vrot.lane.b32.xlu0 %v436, 64
    %v439 = vpop.permute.xlu0 %438
    %v441 = vmul.f32 %v424, %v439
    %443 = vrot.lane.b32.xlu0 %v441, 32
    %v444 = vpop.permute.xlu0 %443
    %s446 = scalar_lea.vmem [#allocation2], 16
    %447 = vst.msk [vmem:[%s446] sm:$0xff] %vm113, %v444
    %s448 = scalar_lea.vmem [#allocation3], 24
    %v449 = vld [vmem:[%s448] sm:$0xff]
    %v450 = vpack.c.bf16 %v441, %v441
    %452 = vrot.lane.b32.xlu0 %v450, 32
    %v453 = vpop.permute.xlu0 %452
    %v455 = vsel %vm113, %v453, 0
    %457 = vmatprep.subr.bf16.mxu0 0
    %458 = vmatpush1.bf16.msra.mxu0 0
    %459 = vmatprep.subr.bf16.mxu0 0
    %460 = vmatpush1.bf16.msra.mxu0 0
    %461 = vmatprep.subr.bf16.mxu0 0
    %462 = vmatpush1.bf16.msra.mxu0 0
    %463 = vmatprep.subr.bf16.mxu0 0
    %464 = vmatpush1.bf16.msra.mxu0 0
    %465 = vmatprep.subr.bf16.mxu0 0
    %466 = vmatpush1.bf16.msra.mxu0 0
    %467 = vmatprep.subr.bf16.mxu0 0
    %468 = vmatpush1.bf16.msra.mxu0 0
    %469 = vmatprep.subr.bf16.mxu0 0
    %470 = vmatpush1.bf16.msra.mxu0 %v209
    %471 = vmatprep.subr.bf16.mxu0 0
    %472 = vmatpush1.bf16.msra.mxu0 %v208
    %473 = vmatprep.subr.bf16.mxu0 0
    %474 = vmatpush2.bf16.msra.mxu0 0
    %475 = vmatprep.subr.bf16.mxu0 0
    %476 = vmatpush2.bf16.msra.mxu0 0
    %477 = vmatprep.subr.bf16.mxu0 0
    %478 = vmatpush2.bf16.msra.mxu0 0
    %479 = vmatprep.subr.bf16.mxu0 0
    %480 = vmatpush2.bf16.msra.mxu0 0
    %481 = vmatprep.subr.bf16.mxu0 0
    %482 = vmatpush2.bf16.msra.mxu0 0
    %483 = vmatprep.subr.bf16.mxu0 0
    %484 = vmatpush2.bf16.msra.mxu0 0
    %485 = vmatprep.subr.bf16.mxu0 0
    %486 = vmatpush2.bf16.msra.mxu0 0
    %487 = vmatprep.subr.bf16.mxu0 0
    %488 = vmatpush2.bf16.msra.mxu0 0
    %489 = vmatprep.mubr.bf16.mxu0 0
    %490 = vmatmul.mubr.bf16.gmra.mxu0 %v455
    %v491 = vpop.f32.mrf.mxu0
    %v492 = vadd.f32 0.0, %v491
    %v493 = vpop.f32.mrf.mxu0
    %v494 = vpop.f32.mrf.mxu0
    %v495 = vpop.f32.mrf.mxu0
    %496 = vdwg.mxu0
    %v497 = vadd.f32 %v449, %v492
    %v498 = vtanh.pop %v497
    %v499 = vxor.u32 %v497, 2147483648
    %v500 = vmul.f32 %v499, 1.442695
    %v501 = vpow.pop %v500
    %v502 = vadd.f32 %v501, 1.0
    %v503 = vrcp.pop %v502
    %v504 = vmul.f32 1.0, %v503
    %v505 = vsel %vm57, %v498, %v504
    %v506 = vmul.f32 %v505, %v435
    %508 = vrot.lane.b32.xlu0 %v505, 64
    %v509 = vpop.permute.xlu0 %508
    %v511 = vmul.f32 %v505, %v509
    %513 = vrot.lane.b32.xlu0 %v511, 32
    %v514 = vpop.permute.xlu0 %513
    %v516 = vadd.f32 %v506, %v514
    %v517 = vtanh.pop %v516
    %519 = vrot.lane.b32.xlu0 %v517, 64
    %v520 = vpop.permute.xlu0 %519
    %v522 = vmul.f32 %v505, %v520
    %524 = vrot.lane.b32.xlu0 %v522, 32
    %v525 = vpop.permute.xlu0 %524
    %s527 = scalar_lea.vmem [#allocation2], 24
    %528 = vst.msk [vmem:[%s527] sm:$0xff] %vm113, %v525
    %s529 = scalar_lea.vmem [#allocation3], 32
    %v530 = vld [vmem:[%s529] sm:$0xff]
    %v531 = vpack.c.bf16 %v522, %v522
    %533 = vrot.lane.b32.xlu0 %v531, 32
    %v534 = vpop.permute.xlu0 %533
    %v536 = vsel %vm113, %v534, 0
    %538 = vmatprep.subr.bf16.mxu0 0
    %539 = vmatpush1.bf16.msra.mxu0 0
    %540 = vmatprep.subr.bf16.mxu0 0
    %541 = vmatpush1.bf16.msra.mxu0 0
    %542 = vmatprep.subr.bf16.mxu0 0
    %543 = vmatpush1.bf16.msra.mxu0 0
    %544 = vmatprep.subr.bf16.mxu0 0
    %545 = vmatpush1.bf16.msra.mxu0 0
    %546 = vmatprep.subr.bf16.mxu0 0
    %547 = vmatpush1.bf16.msra.mxu0 0
    %548 = vmatprep.subr.bf16.mxu0 0
    %549 = vmatpush1.bf16.msra.mxu0 0
    %550 = vmatprep.subr.bf16.mxu0 0
    %551 = vmatpush1.bf16.msra.mxu0 %v209
    %552 = vmatprep.subr.bf16.mxu0 0
    %553 = vmatpush1.bf16.msra.mxu0 %v208
    %554 = vmatprep.subr.bf16.mxu0 0
    %555 = vmatpush2.bf16.msra.mxu0 0
    %556 = vmatprep.subr.bf16.mxu0 0
    %557 = vmatpush2.bf16.msra.mxu0 0
    %558 = vmatprep.subr.bf16.mxu0 0
    %559 = vmatpush2.bf16.msra.mxu0 0
    %560 = vmatprep.subr.bf16.mxu0 0
    %561 = vmatpush2.bf16.msra.mxu0 0
    %562 = vmatprep.subr.bf16.mxu0 0
    %563 = vmatpush2.bf16.msra.mxu0 0
    %564 = vmatprep.subr.bf16.mxu0 0
    %565 = vmatpush2.bf16.msra.mxu0 0
    %566 = vmatprep.subr.bf16.mxu0 0
    %567 = vmatpush2.bf16.msra.mxu0 0
    %568 = vmatprep.subr.bf16.mxu0 0
    %569 = vmatpush2.bf16.msra.mxu0 0
    %570 = vmatprep.mubr.bf16.mxu0 0
    %571 = vmatmul.mubr.bf16.gmra.mxu0 %v536
    %v572 = vpop.f32.mrf.mxu0
    %v573 = vadd.f32 0.0, %v572
    %v574 = vpop.f32.mrf.mxu0
    %v575 = vpop.f32.mrf.mxu0
    %v576 = vpop.f32.mrf.mxu0
    %577 = vdwg.mxu0
    %v578 = vadd.f32 %v530, %v573
    %v579 = vtanh.pop %v578
    %v580 = vxor.u32 %v578, 2147483648
    %v581 = vmul.f32 %v580, 1.442695
    %v582 = vpow.pop %v581
    %v583 = vadd.f32 %v582, 1.0
    %v584 = vrcp.pop %v583
    %v585 = vmul.f32 1.0, %v584
    %v586 = vsel %vm57, %v579, %v585
    %v587 = vmul.f32 %v586, %v516
    %589 = vrot.lane.b32.xlu0 %v586, 64
    %v590 = vpop.permute.xlu0 %589
    %v592 = vmul.f32 %v586, %v590
    %594 = vrot.lane.b32.xlu0 %v592, 32
    %v595 = vpop.permute.xlu0 %594
    %v597 = vadd.f32 %v587, %v595
    %v598 = vtanh.pop %v597
    %600 = vrot.lane.b32.xlu0 %v598, 64
    %v601 = vpop.permute.xlu0 %600
    %v603 = vmul.f32 %v586, %v601
    %605 = vrot.lane.b32.xlu0 %v603, 32
    %v606 = vpop.permute.xlu0 %605
    %s608 = scalar_lea.vmem [#allocation2], 32
    %609 = vst.msk [vmem:[%s608] sm:$0xff] %vm113, %v606
    %s610 = scalar_lea.vmem [#allocation3], 40
    %v611 = vld [vmem:[%s610] sm:$0xff]
    %v612 = vpack.c.bf16 %v603, %v603
    %614 = vrot.lane.b32.xlu0 %v612, 32
    %v615 = vpop.permute.xlu0 %614
    %v617 = vsel %vm113, %v615, 0
    %619 = vmatprep.subr.bf16.mxu0 0
    %620 = vmatpush1.bf16.msra.mxu0 0
    %621 = vmatprep.subr.bf16.mxu0 0
    %622 = vmatpush1.bf16.msra.mxu0 0
    %623 = vmatprep.subr.bf16.mxu0 0
    %624 = vmatpush1.bf16.msra.mxu0 0
    %625 = vmatprep.subr.bf16.mxu0 0
    %626 = vmatpush1.bf16.msra.mxu0 0
    %627 = vmatprep.subr.bf16.mxu0 0
    %628 = vmatpush1.bf16.msra.mxu0 0
    %629 = vmatprep.subr.bf16.mxu0 0
    %630 = vmatpush1.bf16.msra.mxu0 0
    %631 = vmatprep.subr.bf16.mxu0 0
    %632 = vmatpush1.bf16.msra.mxu0 %v209
    %633 = vmatprep.subr.bf16.mxu0 0
    %634 = vmatpush1.bf16.msra.mxu0 %v208
    %635 = vmatprep.subr.bf16.mxu0 0
    %636 = vmatpush2.bf16.msra.mxu0 0
    %637 = vmatprep.subr.bf16.mxu0 0
    %638 = vmatpush2.bf16.msra.mxu0 0
    %639 = vmatprep.subr.bf16.mxu0 0
    %640 = vmatpush2.bf16.msra.mxu0 0
    %641 = vmatprep.subr.bf16.mxu0 0
    %642 = vmatpush2.bf16.msra.mxu0 0
    %643 = vmatprep.subr.bf16.mxu0 0
    %644 = vmatpush2.bf16.msra.mxu0 0
    %645 = vmatprep.subr.bf16.mxu0 0
    %646 = vmatpush2.bf16.msra.mxu0 0
    %647 = vmatprep.subr.bf16.mxu0 0
    %648 = vmatpush2.bf16.msra.mxu0 0
    %649 = vmatprep.subr.bf16.mxu0 0
    %650 = vmatpush2.bf16.msra.mxu0 0
    %651 = vmatprep.mubr.bf16.mxu0 0
    %652 = vmatmul.mubr.bf16.gmra.mxu0 %v617
    %v653 = vpop.f32.mrf.mxu0
    %v654 = vadd.f32 0.0, %v653
    %v655 = vpop.f32.mrf.mxu0
    %v656 = vpop.f32.mrf.mxu0
    %v657 = vpop.f32.mrf.mxu0
    %658 = vdwg.mxu0
    %v659 = vadd.f32 %v611, %v654
    %v660 = vtanh.pop %v659
    %v661 = vxor.u32 %v659, 2147483648
    %v662 = vmul.f32 %v661, 1.442695
    %v663 = vpow.pop %v662
    %v664 = vadd.f32 %v663, 1.0
    %v665 = vrcp.pop %v664
    %v666 = vmul.f32 1.0, %v665
    %v667 = vsel %vm57, %v660, %v666
    %v668 = vmul.f32 %v667, %v597
    %670 = vrot.lane.b32.xlu0 %v667, 64
    %v671 = vpop.permute.xlu0 %670
    %v673 = vmul.f32 %v667, %v671
    %675 = vrot.lane.b32.xlu0 %v673, 32
    %v676 = vpop.permute.xlu0 %675
    %v678 = vadd.f32 %v668, %v676
    %v679 = vtanh.pop %v678
    %681 = vrot.lane.b32.xlu0 %v679, 64
    %v682 = vpop.permute.xlu0 %681
    %v684 = vmul.f32 %v667, %v682
    %686 = vrot.lane.b32.xlu0 %v684, 32
    %v687 = vpop.permute.xlu0 %686
    %s689 = scalar_lea.vmem [#allocation2], 40
    %690 = vst.msk [vmem:[%s689] sm:$0xff] %vm113, %v687
    %s691 = scalar_lea.vmem [#allocation3], 48
    %v692 = vld [vmem:[%s691] sm:$0xff]
    %v693 = vpack.c.bf16 %v684, %v684
    %695 = vrot.lane.b32.xlu0 %v693, 32
    %v696 = vpop.permute.xlu0 %695
    %v698 = vsel %vm113, %v696, 0
    %700 = vmatprep.subr.bf16.mxu0 0
    %701 = vmatpush1.bf16.msra.mxu0 0
    %702 = vmatprep.subr.bf16.mxu0 0
    %703 = vmatpush1.bf16.msra.mxu0 0
    %704 = vmatprep.subr.bf16.mxu0 0
    %705 = vmatpush1.bf16.msra.mxu0 0
    %706 = vmatprep.subr.bf16.mxu0 0
    %707 = vmatpush1.bf16.msra.mxu0 0
    %708 = vmatprep.subr.bf16.mxu0 0
    %709 = vmatpush1.bf16.msra.mxu0 0
    %710 = vmatprep.subr.bf16.mxu0 0
    %711 = vmatpush1.bf16.msra.mxu0 0
    %712 = vmatprep.subr.bf16.mxu0 0
    %713 = vmatpush1.bf16.msra.mxu0 %v209
    %714 = vmatprep.subr.bf16.mxu0 0
    %715 = vmatpush1.bf16.msra.mxu0 %v208
    %716 = vmatprep.subr.bf16.mxu0 0
    %717 = vmatpush2.bf16.msra.mxu0 0
    %718 = vmatprep.subr.bf16.mxu0 0
    %719 = vmatpush2.bf16.msra.mxu0 0
    %720 = vmatprep.subr.bf16.mxu0 0
    %721 = vmatpush2.bf16.msra.mxu0 0
    %722 = vmatprep.subr.bf16.mxu0 0
    %723 = vmatpush2.bf16.msra.mxu0 0
    %724 = vmatprep.subr.bf16.mxu0 0
    %725 = vmatpush2.bf16.msra.mxu0 0
    %726 = vmatprep.subr.bf16.mxu0 0
    %727 = vmatpush2.bf16.msra.mxu0 0
    %728 = vmatprep.subr.bf16.mxu0 0
    %729 = vmatpush2.bf16.msra.mxu0 0
    %730 = vmatprep.subr.bf16.mxu0 0
    %731 = vmatpush2.bf16.msra.mxu0 0
    %732 = vmatprep.mubr.bf16.mxu0 0
    %733 = vmatmul.mubr.bf16.gmra.mxu0 %v698
    %v734 = vpop.f32.mrf.mxu0
    %v735 = vadd.f32 0.0, %v734
    %v736 = vpop.f32.mrf.mxu0
    %v737 = vpop.f32.mrf.mxu0
    %v738 = vpop.f32.mrf.mxu0
    %739 = vdwg.mxu0
    %v740 = vadd.f32 %v692, %v735
    %v741 = vtanh.pop %v740
    %v742 = vxor.u32 %v740, 2147483648
    %v743 = vmul.f32 %v742, 1.442695
    %v744 = vpow.pop %v743
    %v745 = vadd.f32 %v744, 1.0
    %v746 = vrcp.pop %v745
    %v747 = vmul.f32 1.0, %v746
    %v748 = vsel %vm57, %v741, %v747
    %v749 = vmul.f32 %v748, %v678
    %751 = vrot.lane.b32.xlu0 %v748, 64
    %v752 = vpop.permute.xlu0 %751
    %v754 = vmul.f32 %v748, %v752
    %756 = vrot.lane.b32.xlu0 %v754, 32
    %v757 = vpop.permute.xlu0 %756
    %v759 = vadd.f32 %v749, %v757
    %v760 = vtanh.pop %v759
    %762 = vrot.lane.b32.xlu0 %v760, 64
    %v763 = vpop.permute.xlu0 %762
    %v765 = vmul.f32 %v748, %v763
    %767 = vrot.lane.b32.xlu0 %v765, 32
    %v768 = vpop.permute.xlu0 %767
    %s770 = scalar_lea.vmem [#allocation2], 48
    %771 = vst.msk [vmem:[%s770] sm:$0xff] %vm113, %v768
    %s772 = scalar_lea.vmem [#allocation3], 56
    %v773 = vld [vmem:[%s772] sm:$0xff]
    %v774 = vpack.c.bf16 %v765, %v765
    %776 = vrot.lane.b32.xlu0 %v774, 32
    %v777 = vpop.permute.xlu0 %776
    %v779 = vsel %vm113, %v777, 0
    %781 = vmatprep.subr.bf16.mxu0 0
    %782 = vmatpush1.bf16.msra.mxu0 0
    %783 = vmatprep.subr.bf16.mxu0 0
    %784 = vmatpush1.bf16.msra.mxu0 0
    %785 = vmatprep.subr.bf16.mxu0 0
    %786 = vmatpush1.bf16.msra.mxu0 0
    %787 = vmatprep.subr.bf16.mxu0 0
    %788 = vmatpush1.bf16.msra.mxu0 0
    %789 = vmatprep.subr.bf16.mxu0 0
    %790 = vmatpush1.bf16.msra.mxu0 0
    %791 = vmatprep.subr.bf16.mxu0 0
    %792 = vmatpush1.bf16.msra.mxu0 0
    %793 = vmatprep.subr.bf16.mxu0 0
    %794 = vmatpush1.bf16.msra.mxu0 %v209
    %795 = vmatprep.subr.bf16.mxu0 0
    %796 = vmatpush1.bf16.msra.mxu0 %v208
    %797 = vmatprep.subr.bf16.mxu0 0
    %798 = vmatpush2.bf16.msra.mxu0 0
    %799 = vmatprep.subr.bf16.mxu0 0
    %800 = vmatpush2.bf16.msra.mxu0 0
    %801 = vmatprep.subr.bf16.mxu0 0
    %802 = vmatpush2.bf16.msra.mxu0 0
    %803 = vmatprep.subr.bf16.mxu0 0
    %804 = vmatpush2.bf16.msra.mxu0 0
    %805 = vmatprep.subr.bf16.mxu0 0
    %806 = vmatpush2.bf16.msra.mxu0 0
    %807 = vmatprep.subr.bf16.mxu0 0
    %808 = vmatpush2.bf16.msra.mxu0 0
    %809 = vmatprep.subr.bf16.mxu0 0
    %810 = vmatpush2.bf16.msra.mxu0 0
    %811 = vmatprep.subr.bf16.mxu0 0
    %812 = vmatpush2.bf16.msra.mxu0 0
    %813 = vmatprep.mubr.bf16.mxu0 0
    %814 = vmatmul.mubr.bf16.gmra.mxu0 %v779
    %v815 = vpop.f32.mrf.mxu0
    %v816 = vadd.f32 0.0, %v815
    %v817 = vpop.f32.mrf.mxu0
    %v818 = vpop.f32.mrf.mxu0
    %v819 = vpop.f32.mrf.mxu0
    %820 = vdwg.mxu0
    %v821 = vadd.f32 %v773, %v816
    %v822 = vtanh.pop %v821
    %v823 = vxor.u32 %v821, 2147483648
    %v824 = vmul.f32 %v823, 1.442695
    %v825 = vpow.pop %v824
    %v826 = vadd.f32 %v825, 1.0
    %v827 = vrcp.pop %v826
    %v828 = vmul.f32 1.0, %v827
    %v829 = vsel %vm57, %v822, %v828
    %v830 = vmul.f32 %v829, %v759
    %832 = vrot.lane.b32.xlu0 %v829, 64
    %v833 = vpop.permute.xlu0 %832
    %v835 = vmul.f32 %v829, %v833
    %837 = vrot.lane.b32.xlu0 %v835, 32
    %v838 = vpop.permute.xlu0 %837
    %v840 = vadd.f32 %v830, %v838
    %v841 = vtanh.pop %v840
    %843 = vrot.lane.b32.xlu0 %v841, 64
    %v844 = vpop.permute.xlu0 %843
    %v846 = vmul.f32 %v829, %v844
    %848 = vrot.lane.b32.xlu0 %v846, 32
    %v849 = vpop.permute.xlu0 %848
    %s851 = scalar_lea.vmem [#allocation2], 56
    %852 = vst.msk [vmem:[%s851] sm:$0xff] %vm113, %v849
    %s853 = scalar_lea.vmem [#allocation7], 16
    %v854 = vld [vmem:[%s853] sm:$0xf]
    %v855 = vld [vmem:[%s853 + $0x4] sm:$0xf]
    %v856 = vld [vmem:[%s853 + $0x8] sm:$0xf]
    %v857 = vld [vmem:[%s853 + $0xc] sm:$0xf]
    %v858 = vld [vmem:[#allocation2] sm:$0xff]
    %v859 = vld [vmem:[#allocation2 + $0x8] sm:$0xff]
    %v860 = vld [vmem:[#allocation2 + $0x10] sm:$0xff]
    %v861 = vld [vmem:[#allocation2 + $0x18] sm:$0xff]
    %v862 = vld [vmem:[#allocation2 + $0x20] sm:$0xff]
    %v863 = vld [vmem:[#allocation2 + $0x28] sm:$0xff]
    %v864 = vld [vmem:[#allocation2 + $0x30] sm:$0xff]
    %v865 = vld [vmem:[#allocation2 + $0x38] sm:$0xff]
    %v866 = vpack.c.bf16 %v859, %v858
    %v867 = vpack.c.bf16 %v861, %v860
    %v868 = vpack.c.bf16 %v863, %v862
    %v869 = vpack.c.bf16 %v865, %v864
    %s870 = scalar_lea.vmem [#allocation4], 16
    %v871 = vld [vmem:[%s870] sm:$0xf]
    %v872 = vld [vmem:[%s870 + $0x4] sm:$0xf]
    %v873 = vld [vmem:[%s870 + $0x8] sm:$0xf]
    %v874 = vld [vmem:[%s870 + $0xc] sm:$0xf]
    %s875 = scalar_lea.vmem %s3, 1
    %v876 = vld [vmem:[%s875] sm:$0x1]
    %v878 = vlaneseq
    %v879 = vshrl.u32 %v878, 7
    %v880 = vsub.s32 0, %v879
    %v881 = vrot.slane %v876, %v880
    %v887 = vunpack.c.l.b16 %v871
    %v888 = vunpack.c.l.b16 %v872
    %v889 = vunpack.c.l.b16 %v873
    %v890 = vunpack.c.l.b16 %v874
    %v891 = vpack.c.b16 %v888, %v887
    %v892 = vpack.c.b16 %v890, %v889
    %v896 = vsel %vm113, %v866, 0
    %v899 = vsel %vm113, %v867, 0
    %v902 = vsel %vm113, %v868, 0
    %v905 = vsel %vm113, %v869, 0
    %907 = vmatprep.subr.bf16.mxu0 0
    %908 = vmatpush1.bf16.msra.mxu0 0
    %909 = vmatprep.subr.bf16.mxu0 0
    %910 = vmatpush1.bf16.msra.mxu0 0
    %911 = vmatprep.subr.bf16.mxu0 0
    %912 = vmatpush1.bf16.msra.mxu0 0
    %913 = vmatprep.subr.bf16.mxu0 0
    %914 = vmatpush1.bf16.msra.mxu0 0
    %915 = vmatprep.subr.bf16.mxu0 0
    %916 = vmatpush1.bf16.msra.mxu0 0
    %917 = vmatprep.subr.bf16.mxu0 0
    %918 = vmatpush1.bf16.msra.mxu0 0
    %919 = vmatprep.subr.bf16.mxu0 0
    %920 = vmatpush1.bf16.msra.mxu0 %v892
    %921 = vmatprep.subr.bf16.mxu0 0
    %922 = vmatpush1.bf16.msra.mxu0 %v891
    %923 = vmatprep.subr.bf16.mxu0 0
    %924 = vmatpush2.bf16.msra.mxu0 0
    %925 = vmatprep.subr.bf16.mxu0 0
    %926 = vmatpush2.bf16.msra.mxu0 0
    %927 = vmatprep.subr.bf16.mxu0 0
    %928 = vmatpush2.bf16.msra.mxu0 0
    %929 = vmatprep.subr.bf16.mxu0 0
    %930 = vmatpush2.bf16.msra.mxu0 0
    %931 = vmatprep.subr.bf16.mxu0 0
    %932 = vmatpush2.bf16.msra.mxu0 0
    %933 = vmatprep.subr.bf16.mxu0 0
    %934 = vmatpush2.bf16.msra.mxu0 0
    %935 = vmatprep.subr.bf16.mxu0 0
    %936 = vmatpush2.bf16.msra.mxu0 0
    %937 = vmatprep.subr.bf16.mxu0 0
    %938 = vmatpush2.bf16.msra.mxu0 0
    %939 = vmatprep.mubr.bf16.mxu0 0
    %940 = vmatmul.mubr.bf16.gmra.mxu0 %v896
    %v941 = vpop.f32.mrf.mxu0
    %v942 = vadd.f32 %v881, %v941
    %v943 = vpop.f32.mrf.mxu0
    %v944 = vpop.f32.mrf.mxu0
    %v945 = vadd.f32 %v881, %v944
    %v946 = vpop.f32.mrf.mxu0
    %947 = vmatprep.mubr.bf16.mxu0 0
    %948 = vmatmul.mubr.bf16.gmra.mxu0 %v899
    %v949 = vpop.f32.mrf.mxu0
    %v950 = vadd.f32 %v881, %v949
    %v951 = vpop.f32.mrf.mxu0
    %v952 = vpop.f32.mrf.mxu0
    %v953 = vadd.f32 %v881, %v952
    %v954 = vpop.f32.mrf.mxu0
    %955 = vmatprep.mubr.bf16.mxu0 0
    %956 = vmatmul.mubr.bf16.gmra.mxu0 %v902
    %v957 = vpop.f32.mrf.mxu0
    %v958 = vadd.f32 %v881, %v957
    %v959 = vpop.f32.mrf.mxu0
    %v960 = vpop.f32.mrf.mxu0
    %v961 = vadd.f32 %v881, %v960
    %v962 = vpop.f32.mrf.mxu0
    %963 = vmatprep.mubr.bf16.mxu0 0
    %964 = vmatmul.mubr.bf16.gmra.mxu0 %v905
    %v965 = vpop.f32.mrf.mxu0
    %v966 = vadd.f32 %v881, %v965
    %v967 = vpop.f32.mrf.mxu0
    %v968 = vpop.f32.mrf.mxu0
    %v969 = vadd.f32 %v881, %v968
    %v970 = vpop.f32.mrf.mxu0
    %971 = vdwg.mxu0
    %972 = vst [vmem:[#allocation3] sm:$0xff] %v942
    %973 = vst [vmem:[#allocation3 + $0x8] sm:$0xff] %v945
    %974 = vst [vmem:[#allocation3 + $0x10] sm:$0xff] %v950
    %975 = vst [vmem:[#allocation3 + $0x18] sm:$0xff] %v953
    %976 = vst [vmem:[#allocation3 + $0x20] sm:$0xff] %v958
    %977 = vst [vmem:[#allocation3 + $0x28] sm:$0xff] %v961
    %978 = vst [vmem:[#allocation3 + $0x30] sm:$0xff] %v966
    %979 = vst [vmem:[#allocation3 + $0x38] sm:$0xff] %v969
    %v980 = vld [vmem:[#allocation3] sm:$0xff]
    %v985 = vunpack.c.l.b16 %v854
    %v986 = vunpack.c.l.b16 %v855
    %v987 = vunpack.c.l.b16 %v856
    %v988 = vunpack.c.l.b16 %v857
    %v989 = vpack.c.b16 %v986, %v985
    %v990 = vpack.c.b16 %v988, %v987
    %993 = vmatprep.subr.bf16.mxu0 0
    %994 = vmatpush1.bf16.msra.mxu0 0
    %995 = vmatprep.subr.bf16.mxu0 0
    %996 = vmatpush1.bf16.msra.mxu0 0
    %997 = vmatprep.subr.bf16.mxu0 0
    %998 = vmatpush1.bf16.msra.mxu0 0
    %999 = vmatprep.subr.bf16.mxu0 0
    %1000 = vmatpush1.bf16.msra.mxu0 0
    %1001 = vmatprep.subr.bf16.mxu0 0
    %1002 = vmatpush1.bf16.msra.mxu0 0
    %1003 = vmatprep.subr.bf16.mxu0 0
    %1004 = vmatpush1.bf16.msra.mxu0 0
    %1005 = vmatprep.subr.bf16.mxu0 0
    %1006 = vmatpush1.bf16.msra.mxu0 %v990
    %1007 = vmatprep.subr.bf16.mxu0 0
    %1008 = vmatpush1.bf16.msra.mxu0 %v989
    %1009 = vmatprep.subr.bf16.mxu0 0
    %1010 = vmatpush2.bf16.msra.mxu0 0
    %1011 = vmatprep.subr.bf16.mxu0 0
    %1012 = vmatpush2.bf16.msra.mxu0 0
    %1013 = vmatprep.subr.bf16.mxu0 0
    %1014 = vmatpush2.bf16.msra.mxu0 0
    %1015 = vmatprep.subr.bf16.mxu0 0
    %1016 = vmatpush2.bf16.msra.mxu0 0
    %1017 = vmatprep.subr.bf16.mxu0 0
    %1018 = vmatpush2.bf16.msra.mxu0 0
    %1019 = vmatprep.subr.bf16.mxu0 0
    %1020 = vmatpush2.bf16.msra.mxu0 0
    %1021 = vmatprep.subr.bf16.mxu0 0
    %1022 = vmatpush2.bf16.msra.mxu0 0
    %1023 = vmatprep.subr.bf16.mxu0 0
    %1024 = vmatpush2.bf16.msra.mxu0 0
    %1025 = vmatprep.mubr.bf16.mxu0 0
    %1026 = vmatmul.mubr.bf16.gmra.mxu0 %v213
    %v1027 = vpop.f32.mrf.mxu0
    %v1028 = vadd.f32 0.0, %v1027
    %v1029 = vpop.f32.mrf.mxu0
    %v1030 = vpop.f32.mrf.mxu0
    %v1031 = vpop.f32.mrf.mxu0
    %1032 = vdwg.mxu0
    %v1033 = vadd.f32 %v980, %v1028
    %v1034 = vtanh.pop %v1033
    %v1035 = vxor.u32 %v1033, 2147483648
    %v1036 = vmul.f32 %v1035, 1.442695
    %v1037 = vpow.pop %v1036
    %v1038 = vadd.f32 %v1037, 1.0
    %v1039 = vrcp.pop %v1038
    %v1040 = vmul.f32 1.0, %v1039
    %v1041 = vsel %vm57, %v1034, %v1040
    %v1042 = vmul.f32 %v1041, 0.0
    %1044 = vrot.lane.b32.xlu0 %v1041, 64
    %v1045 = vpop.permute.xlu0 %1044
    %v1047 = vmul.f32 %v1041, %v1045
    %1049 = vrot.lane.b32.xlu0 %v1047, 32
    %v1050 = vpop.permute.xlu0 %1049
    %v1052 = vadd.f32 %v1042, %v1050
    %v1053 = vtanh.pop %v1052
    %1055 = vrot.lane.b32.xlu0 %v1053, 64
    %v1056 = vpop.permute.xlu0 %1055
    %v1058 = vmul.f32 %v1041, %v1056
    %1060 = vrot.lane.b32.xlu0 %v1058, 32
    %v1061 = vpop.permute.xlu0 %1060
    %1063 = vst.msk [vmem:[#allocation2] sm:$0xff] %vm113, %v1061
    %v1064 = vld [vmem:[%s286] sm:$0xff]
    %v1065 = vpack.c.bf16 %v1058, %v1058
    %1067 = vrot.lane.b32.xlu0 %v1065, 32
    %v1068 = vpop.permute.xlu0 %1067
    %v1070 = vsel %vm113, %v1068, 0
    %1072 = vmatprep.subr.bf16.mxu0 0
    %1073 = vmatpush1.bf16.msra.mxu0 0
    %1074 = vmatprep.subr.bf16.mxu0 0
    %1075 = vmatpush1.bf16.msra.mxu0 0
    %1076 = vmatprep.subr.bf16.mxu0 0
    %1077 = vmatpush1.bf16.msra.mxu0 0
    %1078 = vmatprep.subr.bf16.mxu0 0
    %1079 = vmatpush1.bf16.msra.mxu0 0
    %1080 = vmatprep.subr.bf16.mxu0 0
    %1081 = vmatpush1.bf16.msra.mxu0 0
    %1082 = vmatprep.subr.bf16.mxu0 0
    %1083 = vmatpush1.bf16.msra.mxu0 0
    %1084 = vmatprep.subr.bf16.mxu0 0
    %1085 = vmatpush1.bf16.msra.mxu0 %v990
    %1086 = vmatprep.subr.bf16.mxu0 0
    %1087 = vmatpush1.bf16.msra.mxu0 %v989
    %1088 = vmatprep.subr.bf16.mxu0 0
    %1089 = vmatpush2.bf16.msra.mxu0 0
    %1090 = vmatprep.subr.bf16.mxu0 0
    %1091 = vmatpush2.bf16.msra.mxu0 0
    %1092 = vmatprep.subr.bf16.mxu0 0
    %1093 = vmatpush2.bf16.msra.mxu0 0
    %1094 = vmatprep.subr.bf16.mxu0 0
    %1095 = vmatpush2.bf16.msra.mxu0 0
    %1096 = vmatprep.subr.bf16.mxu0 0
    %1097 = vmatpush2.bf16.msra.mxu0 0
    %1098 = vmatprep.subr.bf16.mxu0 0
    %1099 = vmatpush2.bf16.msra.mxu0 0
    %1100 = vmatprep.subr.bf16.mxu0 0
    %1101 = vmatpush2.bf16.msra.mxu0 0
    %1102 = vmatprep.subr.bf16.mxu0 0
    %1103 = vmatpush2.bf16.msra.mxu0 0
    %1104 = vmatprep.mubr.bf16.mxu0 0
    %1105 = vmatmul.mubr.bf16.gmra.mxu0 %v1070
    %v1106 = vpop.f32.mrf.mxu0
    %v1107 = vadd.f32 0.0, %v1106
    %v1108 = vpop.f32.mrf.mxu0
    %v1109 = vpop.f32.mrf.mxu0
    %v1110 = vpop.f32.mrf.mxu0
    %1111 = vdwg.mxu0
    %v1112 = vadd.f32 %v1064, %v1107
    %v1113 = vtanh.pop %v1112
    %v1114 = vxor.u32 %v1112, 2147483648
    %v1115 = vmul.f32 %v1114, 1.442695
    %v1116 = vpow.pop %v1115
    %v1117 = vadd.f32 %v1116, 1.0
    %v1118 = vrcp.pop %v1117
    %v1119 = vmul.f32 1.0, %v1118
    %v1120 = vsel %vm57, %v1113, %v1119
    %v1121 = vmul.f32 %v1120, %v1052
    %1123 = vrot.lane.b32.xlu0 %v1120, 64
    %v1124 = vpop.permute.xlu0 %1123
    %v1126 = vmul.f32 %v1120, %v1124
    %1128 = vrot.lane.b32.xlu0 %v1126, 32
    %v1129 = vpop.permute.xlu0 %1128
    %v1131 = vadd.f32 %v1121, %v1129
    %v1132 = vtanh.pop %v1131
    %1134 = vrot.lane.b32.xlu0 %v1132, 64
    %v1135 = vpop.permute.xlu0 %1134
    %v1137 = vmul.f32 %v1120, %v1135
    %1139 = vrot.lane.b32.xlu0 %v1137, 32
    %v1140 = vpop.permute.xlu0 %1139
    %1142 = vst.msk [vmem:[%s365] sm:$0xff] %vm113, %v1140
    %v1143 = vld [vmem:[%s367] sm:$0xff]
    %v1144 = vpack.c.bf16 %v1137, %v1137
    %1146 = vrot.lane.b32.xlu0 %v1144, 32
    %v1147 = vpop.permute.xlu0 %1146
    %v1149 = vsel %vm113, %v1147, 0
    %1151 = vmatprep.subr.bf16.mxu0 0
    %1152 = vmatpush1.bf16.msra.mxu0 0
    %1153 = vmatprep.subr.bf16.mxu0 0
    %1154 = vmatpush1.bf16.msra.mxu0 0
    %1155 = vmatprep.subr.bf16.mxu0 0
    %1156 = vmatpush1.bf16.msra.mxu0 0
    %1157 = vmatprep.subr.bf16.mxu0 0
    %1158 = vmatpush1.bf16.msra.mxu0 0
    %1159 = vmatprep.subr.bf16.mxu0 0
    %1160 = vmatpush1.bf16.msra.mxu0 0
    %1161 = vmatprep.subr.bf16.mxu0 0
    %1162 = vmatpush1.bf16.msra.mxu0 0
    %1163 = vmatprep.subr.bf16.mxu0 0
    %1164 = vmatpush1.bf16.msra.mxu0 %v990
    %1165 = vmatprep.subr.bf16.mxu0 0
    %1166 = vmatpush1.bf16.msra.mxu0 %v989
    %1167 = vmatprep.subr.bf16.mxu0 0
    %1168 = vmatpush2.bf16.msra.mxu0 0
    %1169 = vmatprep.subr.bf16.mxu0 0
    %1170 = vmatpush2.bf16.msra.mxu0 0
    %1171 = vmatprep.subr.bf16.mxu0 0
    %1172 = vmatpush2.bf16.msra.mxu0 0
    %1173 = vmatprep.subr.bf16.mxu0 0
    %1174 = vmatpush2.bf16.msra.mxu0 0
    %1175 = vmatprep.subr.bf16.mxu0 0
    %1176 = vmatpush2.bf16.msra.mxu0 0
    %1177 = vmatprep.subr.bf16.mxu0 0
    %1178 = vmatpush2.bf16.msra.mxu0 0
    %1179 = vmatprep.subr.bf16.mxu0 0
    %1180 = vmatpush2.bf16.msra.mxu0 0
    %1181 = vmatprep.subr.bf16.mxu0 0
    %1182 = vmatpush2.bf16.msra.mxu0 0
    %1183 = vmatprep.mubr.bf16.mxu0 0
    %1184 = vmatmul.mubr.bf16.gmra.mxu0 %v1149
    %v1185 = vpop.f32.mrf.mxu0
    %v1186 = vadd.f32 0.0, %v1185
    %v1187 = vpop.f32.mrf.mxu0
    %v1188 = vpop.f32.mrf.mxu0
    %v1189 = vpop.f32.mrf.mxu0
    %1190 = vdwg.mxu0
    %v1191 = vadd.f32 %v1143, %v1186
    %v1192 = vtanh.pop %v1191
    %v1193 = vxor.u32 %v1191, 2147483648
    %v1194 = vmul.f32 %v1193, 1.442695
    %v1195 = vpow.pop %v1194
    %v1196 = vadd.f32 %v1195, 1.0
    %v1197 = vrcp.pop %v1196
    %v1198 = vmul.f32 1.0, %v1197
    %v1199 = vsel %vm57, %v1192, %v1198
    %v1200 = vmul.f32 %v1199, %v1131
    %1202 = vrot.lane.b32.xlu0 %v1199, 64
    %v1203 = vpop.permute.xlu0 %1202
    %v1205 = vmul.f32 %v1199, %v1203
    %1207 = vrot.lane.b32.xlu0 %v1205, 32
    %v1208 = vpop.permute.xlu0 %1207
    %v1210 = vadd.f32 %v1200, %v1208
    %v1211 = vtanh.pop %v1210
    %1213 = vrot.lane.b32.xlu0 %v1211, 64
    %v1214 = vpop.permute.xlu0 %1213
    %v1216 = vmul.f32 %v1199, %v1214
    %1218 = vrot.lane.b32.xlu0 %v1216, 32
    %v1219 = vpop.permute.xlu0 %1218
    %1221 = vst.msk [vmem:[%s446] sm:$0xff] %vm113, %v1219
    %v1222 = vld [vmem:[%s448] sm:$0xff]
    %v1223 = vpack.c.bf16 %v1216, %v1216
    %1225 = vrot.lane.b32.xlu0 %v1223, 32
    %v1226 = vpop.permute.xlu0 %1225
    %v1228 = vsel %vm113, %v1226, 0
    %1230 = vmatprep.subr.bf16.mxu0 0
    %1231 = vmatpush1.bf16.msra.mxu0 0
    %1232 = vmatprep.subr.bf16.mxu0 0
    %1233 = vmatpush1.bf16.msra.mxu0 0
    %1234 = vmatprep.subr.bf16.mxu0 0
    %1235 = vmatpush1.bf16.msra.mxu0 0
    %1236 = vmatprep.subr.bf16.mxu0 0
    %1237 = vmatpush1.bf16.msra.mxu0 0
    %1238 = vmatprep.subr.bf16.mxu0 0
    %1239 = vmatpush1.bf16.msra.mxu0 0
    %1240 = vmatprep.subr.bf16.mxu0 0
    %1241 = vmatpush1.bf16.msra.mxu0 0
    %1242 = vmatprep.subr.bf16.mxu0 0
    %1243 = vmatpush1.bf16.msra.mxu0 %v990
    %1244 = vmatprep.subr.bf16.mxu0 0
    %1245 = vmatpush1.bf16.msra.mxu0 %v989
    %1246 = vmatprep.subr.bf16.mxu0 0
    %1247 = vmatpush2.bf16.msra.mxu0 0
    %1248 = vmatprep.subr.bf16.mxu0 0
    %1249 = vmatpush2.bf16.msra.mxu0 0
    %1250 = vmatprep.subr.bf16.mxu0 0
    %1251 = vmatpush2.bf16.msra.mxu0 0
    %1252 = vmatprep.subr.bf16.mxu0 0
    %1253 = vmatpush2.bf16.msra.mxu0 0
    %1254 = vmatprep.subr.bf16.mxu0 0
    %1255 = vmatpush2.bf16.msra.mxu0 0
    %1256 = vmatprep.subr.bf16.mxu0 0
    %1257 = vmatpush2.bf16.msra.mxu0 0
    %1258 = vmatprep.subr.bf16.mxu0 0
    %1259 = vmatpush2.bf16.msra.mxu0 0
    %1260 = vmatprep.subr.bf16.mxu0 0
    %1261 = vmatpush2.bf16.msra.mxu0 0
    %1262 = vmatprep.mubr.bf16.mxu0 0
    %1263 = vmatmul.mubr.bf16.gmra.mxu0 %v1228
    %v1264 = vpop.f32.mrf.mxu0
    %v1265 = vadd.f32 0.0, %v1264
    %v1266 = vpop.f32.mrf.mxu0
    %v1267 = vpop.f32.mrf.mxu0
    %v1268 = vpop.f32.mrf.mxu0
    %1269 = vdwg.mxu0
    %v1270 = vadd.f32 %v1222, %v1265
    %v1271 = vtanh.pop %v1270
    %v1272 = vxor.u32 %v1270, 2147483648
    %v1273 = vmul.f32 %v1272, 1.442695
    %v1274 = vpow.pop %v1273
    %v1275 = vadd.f32 %v1274, 1.0
    %v1276 = vrcp.pop %v1275
    %v1277 = vmul.f32 1.0, %v1276
    %v1278 = vsel %vm57, %v1271, %v1277
    %v1279 = vmul.f32 %v1278, %v1210
    %1281 = vrot.lane.b32.xlu0 %v1278, 64
    %v1282 = vpop.permute.xlu0 %1281
    %v1284 = vmul.f32 %v1278, %v1282
    %1286 = vrot.lane.b32.xlu0 %v1284, 32
    %v1287 = vpop.permute.xlu0 %1286
    %v1289 = vadd.f32 %v1279, %v1287
    %v1290 = vtanh.pop %v1289
    %1292 = vrot.lane.b32.xlu0 %v1290, 64
    %v1293 = vpop.permute.xlu0 %1292
    %v1295 = vmul.f32 %v1278, %v1293
    %1297 = vrot.lane.b32.xlu0 %v1295, 32
    %v1298 = vpop.permute.xlu0 %1297
    %1300 = vst.msk [vmem:[%s527] sm:$0xff] %vm113, %v1298
    %v1301 = vld [vmem:[%s529] sm:$0xff]
    %v1302 = vpack.c.bf16 %v1295, %v1295
    %1304 = vrot.lane.b32.xlu0 %v1302, 32
    %v1305 = vpop.permute.xlu0 %1304
    %v1307 = vsel %vm113, %v1305, 0
    %1309 = vmatprep.subr.bf16.mxu0 0
    %1310 = vmatpush1.bf16.msra.mxu0 0
    %1311 = vmatprep.subr.bf16.mxu0 0
    %1312 = vmatpush1.bf16.msra.mxu0 0
    %1313 = vmatprep.subr.bf16.mxu0 0
    %1314 = vmatpush1.bf16.msra.mxu0 0
    %1315 = vmatprep.subr.bf16.mxu0 0
    %1316 = vmatpush1.bf16.msra.mxu0 0
    %1317 = vmatprep.subr.bf16.mxu0 0
    %1318 = vmatpush1.bf16.msra.mxu0 0
    %1319 = vmatprep.subr.bf16.mxu0 0
    %1320 = vmatpush1.bf16.msra.mxu0 0
    %1321 = vmatprep.subr.bf16.mxu0 0
    %1322 = vmatpush1.bf16.msra.mxu0 %v990
    %1323 = vmatprep.subr.bf16.mxu0 0
    %1324 = vmatpush1.bf16.msra.mxu0 %v989
    %1325 = vmatprep.subr.bf16.mxu0 0
    %1326 = vmatpush2.bf16.msra.mxu0 0
    %1327 = vmatprep.subr.bf16.mxu0 0
    %1328 = vmatpush2.bf16.msra.mxu0 0
    %1329 = vmatprep.subr.bf16.mxu0 0
    %1330 = vmatpush2.bf16.msra.mxu0 0
    %1331 = vmatprep.subr.bf16.mxu0 0
    %1332 = vmatpush2.bf16.msra.mxu0 0
    %1333 = vmatprep.subr.bf16.mxu0 0
    %1334 = vmatpush2.bf16.msra.mxu0 0
    %1335 = vmatprep.subr.bf16.mxu0 0
    %1336 = vmatpush2.bf16.msra.mxu0 0
    %1337 = vmatprep.subr.bf16.mxu0 0
    %1338 = vmatpush2.bf16.msra.mxu0 0
    %1339 = vmatprep.subr.bf16.mxu0 0
    %1340 = vmatpush2.bf16.msra.mxu0 0
    %1341 = vmatprep.mubr.bf16.mxu0 0
    %1342 = vmatmul.mubr.bf16.gmra.mxu0 %v1307
    %v1343 = vpop.f32.mrf.mxu0
    %v1344 = vadd.f32 0.0, %v1343
    %v1345 = vpop.f32.mrf.mxu0
    %v1346 = vpop.f32.mrf.mxu0
    %v1347 = vpop.f32.mrf.mxu0
    %1348 = vdwg.mxu0
    %v1349 = vadd.f32 %v1301, %v1344
    %v1350 = vtanh.pop %v1349
    %v1351 = vxor.u32 %v1349, 2147483648
    %v1352 = vmul.f32 %v1351, 1.442695
    %v1353 = vpow.pop %v1352
    %v1354 = vadd.f32 %v1353, 1.0
    %v1355 = vrcp.pop %v1354
    %v1356 = vmul.f32 1.0, %v1355
    %v1357 = vsel %vm57, %v1350, %v1356
    %v1358 = vmul.f32 %v1357, %v1289
    %1360 = vrot.lane.b32.xlu0 %v1357, 64
    %v1361 = vpop.permute.xlu0 %1360
    %v1363 = vmul.f32 %v1357, %v1361
    %1365 = vrot.lane.b32.xlu0 %v1363, 32
    %v1366 = vpop.permute.xlu0 %1365
    %v1368 = vadd.f32 %v1358, %v1366
    %v1369 = vtanh.pop %v1368
    %1371 = vrot.lane.b32.xlu0 %v1369, 64
    %v1372 = vpop.permute.xlu0 %1371
    %v1374 = vmul.f32 %v1357, %v1372
    %1376 = vrot.lane.b32.xlu0 %v1374, 32
    %v1377 = vpop.permute.xlu0 %1376
    %1379 = vst.msk [vmem:[%s608] sm:$0xff] %vm113, %v1377
    %v1380 = vld [vmem:[%s610] sm:$0xff]
    %v1381 = vpack.c.bf16 %v1374, %v1374
    %1383 = vrot.lane.b32.xlu0 %v1381, 32
    %v1384 = vpop.permute.xlu0 %1383
    %v1386 = vsel %vm113, %v1384, 0
    %1388 = vmatprep.subr.bf16.mxu0 0
    %1389 = vmatpush1.bf16.msra.mxu0 0
    %1390 = vmatprep.subr.bf16.mxu0 0
    %1391 = vmatpush1.bf16.msra.mxu0 0
    %1392 = vmatprep.subr.bf16.mxu0 0
    %1393 = vmatpush1.bf16.msra.mxu0 0
    %1394 = vmatprep.subr.bf16.mxu0 0
    %1395 = vmatpush1.bf16.msra.mxu0 0
    %1396 = vmatprep.subr.bf16.mxu0 0
    %1397 = vmatpush1.bf16.msra.mxu0 0
    %1398 = vmatprep.subr.bf16.mxu0 0
    %1399 = vmatpush1.bf16.msra.mxu0 0
    %1400 = vmatprep.subr.bf16.mxu0 0
    %1401 = vmatpush1.bf16.msra.mxu0 %v990
    %1402 = vmatprep.subr.bf16.mxu0 0
    %1403 = vmatpush1.bf16.msra.mxu0 %v989
    %1404 = vmatprep.subr.bf16.mxu0 0
    %1405 = vmatpush2.bf16.msra.mxu0 0
    %1406 = vmatprep.subr.bf16.mxu0 0
    %1407 = vmatpush2.bf16.msra.mxu0 0
    %1408 = vmatprep.subr.bf16.mxu0 0
    %1409 = vmatpush2.bf16.msra.mxu0 0
    %1410 = vmatprep.subr.bf16.mxu0 0
    %1411 = vmatpush2.bf16.msra.mxu0 0
    %1412 = vmatprep.subr.bf16.mxu0 0
    %1413 = vmatpush2.bf16.msra.mxu0 0
    %1414 = vmatprep.subr.bf16.mxu0 0
    %1415 = vmatpush2.bf16.msra.mxu0 0
    %1416 = vmatprep.subr.bf16.mxu0 0
    %1417 = vmatpush2.bf16.msra.mxu0 0
    %1418 = vmatprep.subr.bf16.mxu0 0
    %1419 = vmatpush2.bf16.msra.mxu0 0
    %1420 = vmatprep.mubr.bf16.mxu0 0
    %1421 = vmatmul.mubr.bf16.gmra.mxu0 %v1386
    %v1422 = vpop.f32.mrf.mxu0
    %v1423 = vadd.f32 0.0, %v1422
    %v1424 = vpop.f32.mrf.mxu0
    %v1425 = vpop.f32.mrf.mxu0
    %v1426 = vpop.f32.mrf.mxu0
    %1427 = vdwg.mxu0
    %v1428 = vadd.f32 %v1380, %v1423
    %v1429 = vtanh.pop %v1428
    %v1430 = vxor.u32 %v1428, 2147483648
    %v1431 = vmul.f32 %v1430, 1.442695
    %v1432 = vpow.pop %v1431
    %v1433 = vadd.f32 %v1432, 1.0
    %v1434 = vrcp.pop %v1433
    %v1435 = vmul.f32 1.0, %v1434
    %v1436 = vsel %vm57, %v1429, %v1435
    %v1437 = vmul.f32 %v1436, %v1368
    %1439 = vrot.lane.b32.xlu0 %v1436, 64
    %v1440 = vpop.permute.xlu0 %1439
    %v1442 = vmul.f32 %v1436, %v1440
    %1444 = vrot.lane.b32.xlu0 %v1442, 32
    %v1445 = vpop.permute.xlu0 %1444
    %v1447 = vadd.f32 %v1437, %v1445
    %v1448 = vtanh.pop %v1447
    %1450 = vrot.lane.b32.xlu0 %v1448, 64
    %v1451 = vpop.permute.xlu0 %1450
    %v1453 = vmul.f32 %v1436, %v1451
    %1455 = vrot.lane.b32.xlu0 %v1453, 32
    %v1456 = vpop.permute.xlu0 %1455
    %1458 = vst.msk [vmem:[%s689] sm:$0xff] %vm113, %v1456
    %v1459 = vld [vmem:[%s691] sm:$0xff]
    %v1460 = vpack.c.bf16 %v1453, %v1453
    %1462 = vrot.lane.b32.xlu0 %v1460, 32
    %v1463 = vpop.permute.xlu0 %1462
    %v1465 = vsel %vm113, %v1463, 0
    %1467 = vmatprep.subr.bf16.mxu0 0
    %1468 = vmatpush1.bf16.msra.mxu0 0
    %1469 = vmatprep.subr.bf16.mxu0 0
    %1470 = vmatpush1.bf16.msra.mxu0 0
    %1471 = vmatprep.subr.bf16.mxu0 0
    %1472 = vmatpush1.bf16.msra.mxu0 0
    %1473 = vmatprep.subr.bf16.mxu0 0
    %1474 = vmatpush1.bf16.msra.mxu0 0
    %1475 = vmatprep.subr.bf16.mxu0 0
    %1476 = vmatpush1.bf16.msra.mxu0 0
    %1477 = vmatprep.subr.bf16.mxu0 0
    %1478 = vmatpush1.bf16.msra.mxu0 0
    %1479 = vmatprep.subr.bf16.mxu0 0
    %1480 = vmatpush1.bf16.msra.mxu0 %v990
    %1481 = vmatprep.subr.bf16.mxu0 0
    %1482 = vmatpush1.bf16.msra.mxu0 %v989
    %1483 = vmatprep.subr.bf16.mxu0 0
    %1484 = vmatpush2.bf16.msra.mxu0 0
    %1485 = vmatprep.subr.bf16.mxu0 0
    %1486 = vmatpush2.bf16.msra.mxu0 0
    %1487 = vmatprep.subr.bf16.mxu0 0
    %1488 = vmatpush2.bf16.msra.mxu0 0
    %1489 = vmatprep.subr.bf16.mxu0 0
    %1490 = vmatpush2.bf16.msra.mxu0 0
    %1491 = vmatprep.subr.bf16.mxu0 0
    %1492 = vmatpush2.bf16.msra.mxu0 0
    %1493 = vmatprep.subr.bf16.mxu0 0
    %1494 = vmatpush2.bf16.msra.mxu0 0
    %1495 = vmatprep.subr.bf16.mxu0 0
    %1496 = vmatpush2.bf16.msra.mxu0 0
    %1497 = vmatprep.subr.bf16.mxu0 0
    %1498 = vmatpush2.bf16.msra.mxu0 0
    %1499 = vmatprep.mubr.bf16.mxu0 0
    %1500 = vmatmul.mubr.bf16.gmra.mxu0 %v1465
    %v1501 = vpop.f32.mrf.mxu0
    %v1502 = vadd.f32 0.0, %v1501
    %v1503 = vpop.f32.mrf.mxu0
    %v1504 = vpop.f32.mrf.mxu0
    %v1505 = vpop.f32.mrf.mxu0
    %1506 = vdwg.mxu0
    %v1507 = vadd.f32 %v1459, %v1502
    %v1508 = vtanh.pop %v1507
    %v1509 = vxor.u32 %v1507, 2147483648
    %v1510 = vmul.f32 %v1509, 1.442695
    %v1511 = vpow.pop %v1510
    %v1512 = vadd.f32 %v1511, 1.0
    %v1513 = vrcp.pop %v1512
    %v1514 = vmul.f32 1.0, %v1513
    %v1515 = vsel %vm57, %v1508, %v1514
    %v1516 = vmul.f32 %v1515, %v1447
    %1518 = vrot.lane.b32.xlu0 %v1515, 64
    %v1519 = vpop.permute.xlu0 %1518
    %v1521 = vmul.f32 %v1515, %v1519
    %1523 = vrot.lane.b32.xlu0 %v1521, 32
    %v1524 = vpop.permute.xlu0 %1523
    %v1526 = vadd.f32 %v1516, %v1524
    %v1527 = vtanh.pop %v1526
    %1529 = vrot.lane.b32.xlu0 %v1527, 64
    %v1530 = vpop.permute.xlu0 %1529
    %v1532 = vmul.f32 %v1515, %v1530
    %1534 = vrot.lane.b32.xlu0 %v1532, 32
    %v1535 = vpop.permute.xlu0 %1534
    %1537 = vst.msk [vmem:[%s770] sm:$0xff] %vm113, %v1535
    %v1538 = vld [vmem:[%s772] sm:$0xff]
    %v1539 = vpack.c.bf16 %v1532, %v1532
    %1541 = vrot.lane.b32.xlu0 %v1539, 32
    %v1542 = vpop.permute.xlu0 %1541
    %v1544 = vsel %vm113, %v1542, 0
    %1546 = vmatprep.subr.bf16.mxu0 0
    %1547 = vmatpush1.bf16.msra.mxu0 0
    %1548 = vmatprep.subr.bf16.mxu0 0
    %1549 = vmatpush1.bf16.msra.mxu0 0
    %1550 = vmatprep.subr.bf16.mxu0 0
    %1551 = vmatpush1.bf16.msra.mxu0 0
    %1552 = vmatprep.subr.bf16.mxu0 0
    %1553 = vmatpush1.bf16.msra.mxu0 0
    %1554 = vmatprep.subr.bf16.mxu0 0
    %1555 = vmatpush1.bf16.msra.mxu0 0
    %1556 = vmatprep.subr.bf16.mxu0 0
    %1557 = vmatpush1.bf16.msra.mxu0 0
    %1558 = vmatprep.subr.bf16.mxu0 0
    %1559 = vmatpush1.bf16.msra.mxu0 %v990
    %1560 = vmatprep.subr.bf16.mxu0 0
    %1561 = vmatpush1.bf16.msra.mxu0 %v989
    %1562 = vmatprep.subr.bf16.mxu0 0
    %1563 = vmatpush2.bf16.msra.mxu0 0
    %1564 = vmatprep.subr.bf16.mxu0 0
    %1565 = vmatpush2.bf16.msra.mxu0 0
    %1566 = vmatprep.subr.bf16.mxu0 0
    %1567 = vmatpush2.bf16.msra.mxu0 0
    %1568 = vmatprep.subr.bf16.mxu0 0
    %1569 = vmatpush2.bf16.msra.mxu0 0
    %1570 = vmatprep.subr.bf16.mxu0 0
    %1571 = vmatpush2.bf16.msra.mxu0 0
    %1572 = vmatprep.subr.bf16.mxu0 0
    %1573 = vmatpush2.bf16.msra.mxu0 0
    %1574 = vmatprep.subr.bf16.mxu0 0
    %1575 = vmatpush2.bf16.msra.mxu0 0
    %1576 = vmatprep.subr.bf16.mxu0 0
    %1577 = vmatpush2.bf16.msra.mxu0 0
    %1578 = vmatprep.mubr.bf16.mxu0 0
    %1579 = vmatmul.mubr.bf16.gmra.mxu0 %v1544
    %v1580 = vpop.f32.mrf.mxu0
    %v1581 = vadd.f32 0.0, %v1580
    %v1582 = vpop.f32.mrf.mxu0
    %v1583 = vpop.f32.mrf.mxu0
    %v1584 = vpop.f32.mrf.mxu0
    %1585 = vdwg.mxu0
    %v1586 = vadd.f32 %v1538, %v1581
    %v1587 = vtanh.pop %v1586
    %v1588 = vxor.u32 %v1586, 2147483648
    %v1589 = vmul.f32 %v1588, 1.442695
    %v1590 = vpow.pop %v1589
    %v1591 = vadd.f32 %v1590, 1.0
    %v1592 = vrcp.pop %v1591
    %v1593 = vmul.f32 1.0, %v1592
    %v1594 = vsel %vm57, %v1587, %v1593
    %v1595 = vmul.f32 %v1594, %v1526
    %1597 = vrot.lane.b32.xlu0 %v1594, 64
    %v1598 = vpop.permute.xlu0 %1597
    %v1600 = vmul.f32 %v1594, %v1598
    %1602 = vrot.lane.b32.xlu0 %v1600, 32
    %v1603 = vpop.permute.xlu0 %1602
    %v1605 = vadd.f32 %v1595, %v1603
    %v1606 = vtanh.pop %v1605
    %1608 = vrot.lane.b32.xlu0 %v1606, 64
    %v1609 = vpop.permute.xlu0 %1608
    %v1611 = vmul.f32 %v1594, %v1609
    %1613 = vrot.lane.b32.xlu0 %v1611, 32
    %v1614 = vpop.permute.xlu0 %1613
    %1616 = vst.msk [vmem:[%s851] sm:$0xff] %vm113, %v1614
    %s1617 = scalar_lea.vmem [#allocation7], 32
    %v1618 = vld [vmem:[%s1617] sm:$0xf]
    %v1619 = vld [vmem:[%s1617 + $0x4] sm:$0xf]
    %v1620 = vld [vmem:[%s1617 + $0x8] sm:$0xf]
    %v1621 = vld [vmem:[%s1617 + $0xc] sm:$0xf]
    %v1622 = vld [vmem:[#allocation2] sm:$0xff]
    %v1623 = vld [vmem:[#allocation2 + $0x8] sm:$0xff]
    %v1624 = vld [vmem:[#allocation2 + $0x10] sm:$0xff]
    %v1625 = vld [vmem:[#allocation2 + $0x18] sm:$0xff]
    %v1626 = vld [vmem:[#allocation2 + $0x20] sm:$0xff]
    %v1627 = vld [vmem:[#allocation2 + $0x28] sm:$0xff]
    %v1628 = vld [vmem:[#allocation2 + $0x30] sm:$0xff]
    %v1629 = vld [vmem:[#allocation2 + $0x38] sm:$0xff]
    %v1630 = vpack.c.bf16 %v1623, %v1622
    %v1631 = vpack.c.bf16 %v1625, %v1624
    %v1632 = vpack.c.bf16 %v1627, %v1626
    %v1633 = vpack.c.bf16 %v1629, %v1628
    %s1634 = scalar_lea.vmem [#allocation4], 32
    %v1635 = vld [vmem:[%s1634] sm:$0xf]
    %v1636 = vld [vmem:[%s1634 + $0x4] sm:$0xf]
    %v1637 = vld [vmem:[%s1634 + $0x8] sm:$0xf]
    %v1638 = vld [vmem:[%s1634 + $0xc] sm:$0xf]
    %s1639 = scalar_lea.vmem %s3, 2
    %v1640 = vld [vmem:[%s1639] sm:$0x1]
    %v1642 = vlaneseq
    %v1643 = vshrl.u32 %v1642, 7
    %v1644 = vsub.s32 0, %v1643
    %v1645 = vrot.slane %v1640, %v1644
    %v1651 = vunpack.c.l.b16 %v1635
    %v1652 = vunpack.c.l.b16 %v1636
    %v1653 = vunpack.c.l.b16 %v1637
    %v1654 = vunpack.c.l.b16 %v1638
    %v1655 = vpack.c.b16 %v1652, %v1651
    %v1656 = vpack.c.b16 %v1654, %v1653
    %v1660 = vsel %vm113, %v1630, 0
    %v1663 = vsel %vm113, %v1631, 0
    %v1666 = vsel %vm113, %v1632, 0
    %v1669 = vsel %vm113, %v1633, 0
    %1671 = vmatprep.subr.bf16.mxu0 0
    %1672 = vmatpush1.bf16.msra.mxu0 0
    %1673 = vmatprep.subr.bf16.mxu0 0
    %1674 = vmatpush1.bf16.msra.mxu0 0
    %1675 = vmatprep.subr.bf16.mxu0 0
    %1676 = vmatpush1.bf16.msra.mxu0 0
    %1677 = vmatprep.subr.bf16.mxu0 0
    %1678 = vmatpush1.bf16.msra.mxu0 0
    %1679 = vmatprep.subr.bf16.mxu0 0
    %1680 = vmatpush1.bf16.msra.mxu0 0
    %1681 = vmatprep.subr.bf16.mxu0 0
    %1682 = vmatpush1.bf16.msra.mxu0 0
    %1683 = vmatprep.subr.bf16.mxu0 0
    %1684 = vmatpush1.bf16.msra.mxu0 %v1656
    %1685 = vmatprep.subr.bf16.mxu0 0
    %1686 = vmatpush1.bf16.msra.mxu0 %v1655
    %1687 = vmatprep.subr.bf16.mxu0 0
    %1688 = vmatpush2.bf16.msra.mxu0 0
    %1689 = vmatprep.subr.bf16.mxu0 0
    %1690 = vmatpush2.bf16.msra.mxu0 0
    %1691 = vmatprep.subr.bf16.mxu0 0
    %1692 = vmatpush2.bf16.msra.mxu0 0
    %1693 = vmatprep.subr.bf16.mxu0 0
    %1694 = vmatpush2.bf16.msra.mxu0 0
    %1695 = vmatprep.subr.bf16.mxu0 0
    %1696 = vmatpush2.bf16.msra.mxu0 0
    %1697 = vmatprep.subr.bf16.mxu0 0
    %1698 = vmatpush2.bf16.msra.mxu0 0
    %1699 = vmatprep.subr.bf16.mxu0 0
    %1700 = vmatpush2.bf16.msra.mxu0 0
    %1701 = vmatprep.subr.bf16.mxu0 0
    %1702 = vmatpush2.bf16.msra.mxu0 0
    %1703 = vmatprep.mubr.bf16.mxu0 0
    %1704 = vmatmul.mubr.bf16.gmra.mxu0 %v1660
    %v1705 = vpop.f32.mrf.mxu0
    %v1706 = vadd.f32 %v1645, %v1705
    %v1707 = vpop.f32.mrf.mxu0
    %v1708 = vpop.f32.mrf.mxu0
    %v1709 = vadd.f32 %v1645, %v1708
    %v1710 = vpop.f32.mrf.mxu0
    %1711 = vmatprep.mubr.bf16.mxu0 0
    %1712 = vmatmul.mubr.bf16.gmra.mxu0 %v1663
    %v1713 = vpop.f32.mrf.mxu0
    %v1714 = vadd.f32 %v1645, %v1713
    %v1715 = vpop.f32.mrf.mxu0
    %v1716 = vpop.f32.mrf.mxu0
    %v1717 = vadd.f32 %v1645, %v1716
    %v1718 = vpop.f32.mrf.mxu0
    %1719 = vmatprep.mubr.bf16.mxu0 0
    %1720 = vmatmul.mubr.bf16.gmra.mxu0 %v1666
    %v1721 = vpop.f32.mrf.mxu0
    %v1722 = vadd.f32 %v1645, %v1721
    %v1723 = vpop.f32.mrf.mxu0
    %v1724 = vpop.f32.mrf.mxu0
    %v1725 = vadd.f32 %v1645, %v1724
    %v1726 = vpop.f32.mrf.mxu0
    %1727 = vmatprep.mubr.bf16.mxu0 0
    %1728 = vmatmul.mubr.bf16.gmra.mxu0 %v1669
    %v1729 = vpop.f32.mrf.mxu0
    %v1730 = vadd.f32 %v1645, %v1729
    %v1731 = vpop.f32.mrf.mxu0
    %v1732 = vpop.f32.mrf.mxu0
    %v1733 = vadd.f32 %v1645, %v1732
    %v1734 = vpop.f32.mrf.mxu0
    %1735 = vdwg.mxu0
    %1736 = vst [vmem:[#allocation3] sm:$0xff] %v1706
    %1737 = vst [vmem:[#allocation3 + $0x8] sm:$0xff] %v1709
    %1738 = vst [vmem:[#allocation3 + $0x10] sm:$0xff] %v1714
    %1739 = vst [vmem:[#allocation3 + $0x18] sm:$0xff] %v1717
    %1740 = vst [vmem:[#allocation3 + $0x20] sm:$0xff] %v1722
    %1741 = vst [vmem:[#allocation3 + $0x28] sm:$0xff] %v1725
    %1742 = vst [vmem:[#allocation3 + $0x30] sm:$0xff] %v1730
    %1743 = vst [vmem:[#allocation3 + $0x38] sm:$0xff] %v1733
    %v1744 = vld [vmem:[#allocation3] sm:$0xff]
    %v1749 = vunpack.c.l.b16 %v1618
    %v1750 = vunpack.c.l.b16 %v1619
    %v1751 = vunpack.c.l.b16 %v1620
    %v1752 = vunpack.c.l.b16 %v1621
    %v1753 = vpack.c.b16 %v1750, %v1749
    %v1754 = vpack.c.b16 %v1752, %v1751
    %1757 = vmatprep.subr.bf16.mxu0 0
    %1758 = vmatpush1.bf16.msra.mxu0 0
    %1759 = vmatprep.subr.bf16.mxu0 0
    %1760 = vmatpush1.bf16.msra.mxu0 0
    %1761 = vmatprep.subr.bf16.mxu0 0
    %1762 = vmatpush1.bf16.msra.mxu0 0
    %1763 = vmatprep.subr.bf16.mxu0 0
    %1764 = vmatpush1.bf16.msra.mxu0 0
    %1765 = vmatprep.subr.bf16.mxu0 0
    %1766 = vmatpush1.bf16.msra.mxu0 0
    %1767 = vmatprep.subr.bf16.mxu0 0
    %1768 = vmatpush1.bf16.msra.mxu0 0
    %1769 = vmatprep.subr.bf16.mxu0 0
    %1770 = vmatpush1.bf16.msra.mxu0 %v1754
    %1771 = vmatprep.subr.bf16.mxu0 0
    %1772 = vmatpush1.bf16.msra.mxu0 %v1753
    %1773 = vmatprep.subr.bf16.mxu0 0
    %1774 = vmatpush2.bf16.msra.mxu0 0
    %1775 = vmatprep.subr.bf16.mxu0 0
    %1776 = vmatpush2.bf16.msra.mxu0 0
    %1777 = vmatprep.subr.bf16.mxu0 0
    %1778 = vmatpush2.bf16.msra.mxu0 0
    %1779 = vmatprep.subr.bf16.mxu0 0
    %1780 = vmatpush2.bf16.msra.mxu0 0
    %1781 = vmatprep.subr.bf16.mxu0 0
    %1782 = vmatpush2.bf16.msra.mxu0 0
    %1783 = vmatprep.subr.bf16.mxu0 0
    %1784 = vmatpush2.bf16.msra.mxu0 0
    %1785 = vmatprep.subr.bf16.mxu0 0
    %1786 = vmatpush2.bf16.msra.mxu0 0
    %1787 = vmatprep.subr.bf16.mxu0 0
    %1788 = vmatpush2.bf16.msra.mxu0 0
    %1789 = vmatprep.mubr.bf16.mxu0 0
    %1790 = vmatmul.mubr.bf16.gmra.mxu0 %v213
    %v1791 = vpop.f32.mrf.mxu0
    %v1792 = vadd.f32 0.0, %v1791
    %v1793 = vpop.f32.mrf.mxu0
    %v1794 = vpop.f32.mrf.mxu0
    %v1795 = vpop.f32.mrf.mxu0
    %1796 = vdwg.mxu0
    %v1797 = vadd.f32 %v1744, %v1792
    %v1798 = vtanh.pop %v1797
    %v1799 = vxor.u32 %v1797, 2147483648
    %v1800 = vmul.f32 %v1799, 1.442695
    %v1801 = vpow.pop %v1800
    %v1802 = vadd.f32 %v1801, 1.0
    %v1803 = vrcp.pop %v1802
    %v1804 = vmul.f32 1.0, %v1803
    %v1805 = vsel %vm57, %v1798, %v1804
    %v1806 = vmul.f32 %v1805, 0.0
    %1808 = vrot.lane.b32.xlu0 %v1805, 64
    %v1809 = vpop.permute.xlu0 %1808
    %v1811 = vmul.f32 %v1805, %v1809
    %1813 = vrot.lane.b32.xlu0 %v1811, 32
    %v1814 = vpop.permute.xlu0 %1813
    %v1816 = vadd.f32 %v1806, %v1814
    %v1817 = vtanh.pop %v1816
    %1819 = vrot.lane.b32.xlu0 %v1817, 64
    %v1820 = vpop.permute.xlu0 %1819
    %v1822 = vmul.f32 %v1805, %v1820
    %1824 = vrot.lane.b32.xlu0 %v1822, 32
    %v1825 = vpop.permute.xlu0 %1824
    %1827 = vst.msk [vmem:[#allocation2] sm:$0xff] %vm113, %v1825
    %v1828 = vld [vmem:[%s286] sm:$0xff]
    %v1829 = vpack.c.bf16 %v1822, %v1822
    %1831 = vrot.lane.b32.xlu0 %v1829, 32
    %v1832 = vpop.permute.xlu0 %1831
    %v1834 = vsel %vm113, %v1832, 0
    %1836 = vmatprep.subr.bf16.mxu0 0
    %1837 = vmatpush1.bf16.msra.mxu0 0
    %1838 = vmatprep.subr.bf16.mxu0 0
    %1839 = vmatpush1.bf16.msra.mxu0 0
    %1840 = vmatprep.subr.bf16.mxu0 0
    %1841 = vmatpush1.bf16.msra.mxu0 0
    %1842 = vmatprep.subr.bf16.mxu0 0
    %1843 = vmatpush1.bf16.msra.mxu0 0
    %1844 = vmatprep.subr.bf16.mxu0 0
    %1845 = vmatpush1.bf16.msra.mxu0 0
    %1846 = vmatprep.subr.bf16.mxu0 0
    %1847 = vmatpush1.bf16.msra.mxu0 0
    %1848 = vmatprep.subr.bf16.mxu0 0
    %1849 = vmatpush1.bf16.msra.mxu0 %v1754
    %1850 = vmatprep.subr.bf16.mxu0 0
    %1851 = vmatpush1.bf16.msra.mxu0 %v1753
    %1852 = vmatprep.subr.bf16.mxu0 0
    %1853 = vmatpush2.bf16.msra.mxu0 0
    %1854 = vmatprep.subr.bf16.mxu0 0
    %1855 = vmatpush2.bf16.msra.mxu0 0
    %1856 = vmatprep.subr.bf16.mxu0 0
    %1857 = vmatpush2.bf16.msra.mxu0 0
    %1858 = vmatprep.subr.bf16.mxu0 0
    %1859 = vmatpush2.bf16.msra.mxu0 0
    %1860 = vmatprep.subr.bf16.mxu0 0
    %1861 = vmatpush2.bf16.msra.mxu0 0
    %1862 = vmatprep.subr.bf16.mxu0 0
    %1863 = vmatpush2.bf16.msra.mxu0 0
    %1864 = vmatprep.subr.bf16.mxu0 0
    %1865 = vmatpush2.bf16.msra.mxu0 0
    %1866 = vmatprep.subr.bf16.mxu0 0
    %1867 = vmatpush2.bf16.msra.mxu0 0
    %1868 = vmatprep.mubr.bf16.mxu0 0
    %1869 = vmatmul.mubr.bf16.gmra.mxu0 %v1834
    %v1870 = vpop.f32.mrf.mxu0
    %v1871 = vadd.f32 0.0, %v1870
    %v1872 = vpop.f32.mrf.mxu0
    %v1873 = vpop.f32.mrf.mxu0
    %v1874 = vpop.f32.mrf.mxu0
    %1875 = vdwg.mxu0
    %v1876 = vadd.f32 %v1828, %v1871
    %v1877 = vtanh.pop %v1876
    %v1878 = vxor.u32 %v1876, 2147483648
    %v1879 = vmul.f32 %v1878, 1.442695
    %v1880 = vpow.pop %v1879
    %v1881 = vadd.f32 %v1880, 1.0
    %v1882 = vrcp.pop %v1881
    %v1883 = vmul.f32 1.0, %v1882
    %v1884 = vsel %vm57, %v1877, %v1883
    %v1885 = vmul.f32 %v1884, %v1816
    %1887 = vrot.lane.b32.xlu0 %v1884, 64
    %v1888 = vpop.permute.xlu0 %1887
    %v1890 = vmul.f32 %v1884, %v1888
    %1892 = vrot.lane.b32.xlu0 %v1890, 32
    %v1893 = vpop.permute.xlu0 %1892
    %v1895 = vadd.f32 %v1885, %v1893
    %v1896 = vtanh.pop %v1895
    %1898 = vrot.lane.b32.xlu0 %v1896, 64
    %v1899 = vpop.permute.xlu0 %1898
    %v1901 = vmul.f32 %v1884, %v1899
    %1903 = vrot.lane.b32.xlu0 %v1901, 32
    %v1904 = vpop.permute.xlu0 %1903
    %1906 = vst.msk [vmem:[%s365] sm:$0xff] %vm113, %v1904
    %v1907 = vld [vmem:[%s367] sm:$0xff]
    %v1908 = vpack.c.bf16 %v1901, %v1901
    %1910 = vrot.lane.b32.xlu0 %v1908, 32
    %v1911 = vpop.permute.xlu0 %1910
    %v1913 = vsel %vm113, %v1911, 0
    %1915 = vmatprep.subr.bf16.mxu0 0
    %1916 = vmatpush1.bf16.msra.mxu0 0
    %1917 = vmatprep.subr.bf16.mxu0 0
    %1918 = vmatpush1.bf16.msra.mxu0 0
    %1919 = vmatprep.subr.bf16.mxu0 0
    %1920 = vmatpush1.bf16.msra.mxu0 0
    %1921 = vmatprep.subr.bf16.mxu0 0
    %1922 = vmatpush1.bf16.msra.mxu0 0
    %1923 = vmatprep.subr.bf16.mxu0 0
    %1924 = vmatpush1.bf16.msra.mxu0 0
    %1925 = vmatprep.subr.bf16.mxu0 0
    %1926 = vmatpush1.bf16.msra.mxu0 0
    %1927 = vmatprep.subr.bf16.mxu0 0
    %1928 = vmatpush1.bf16.msra.mxu0 %v1754
    %1929 = vmatprep.subr.bf16.mxu0 0
    %1930 = vmatpush1.bf16.msra.mxu0 %v1753
    %1931 = vmatprep.subr.bf16.mxu0 0
    %1932 = vmatpush2.bf16.msra.mxu0 0
    %1933 = vmatprep.subr.bf16.mxu0 0
    %1934 = vmatpush2.bf16.msra.mxu0 0
    %1935 = vmatprep.subr.bf16.mxu0 0
    %1936 = vmatpush2.bf16.msra.mxu0 0
    %1937 = vmatprep.subr.bf16.mxu0 0
    %1938 = vmatpush2.bf16.msra.mxu0 0
    %1939 = vmatprep.subr.bf16.mxu0 0
    %1940 = vmatpush2.bf16.msra.mxu0 0
    %1941 = vmatprep.subr.bf16.mxu0 0
    %1942 = vmatpush2.bf16.msra.mxu0 0
    %1943 = vmatprep.subr.bf16.mxu0 0
    %1944 = vmatpush2.bf16.msra.mxu0 0
    %1945 = vmatprep.subr.bf16.mxu0 0
    %1946 = vmatpush2.bf16.msra.mxu0 0
    %1947 = vmatprep.mubr.bf16.mxu0 0
    %1948 = vmatmul.mubr.bf16.gmra.mxu0 %v1913
    %v1949 = vpop.f32.mrf.mxu0
    %v1950 = vadd.f32 0.0, %v1949
    %v1951 = vpop.f32.mrf.mxu0
    %v1952 = vpop.f32.mrf.mxu0
    %v1953 = vpop.f32.mrf.mxu0
    %1954 = vdwg.mxu0
    %v1955 = vadd.f32 %v1907, %v1950
    %v1956 = vtanh.pop %v1955
    %v1957 = vxor.u32 %v1955, 2147483648
    %v1958 = vmul.f32 %v1957, 1.442695
    %v1959 = vpow.pop %v1958
    %v1960 = vadd.f32 %v1959, 1.0
    %v1961 = vrcp.pop %v1960
    %v1962 = vmul.f32 1.0, %v1961
    %v1963 = vsel %vm57, %v1956, %v1962
    %v1964 = vmul.f32 %v1963, %v1895
    %1966 = vrot.lane.b32.xlu0 %v1963, 64
    %v1967 = vpop.permute.xlu0 %1966
    %v1969 = vmul.f32 %v1963, %v1967
    %1971 = vrot.lane.b32.xlu0 %v1969, 32
    %v1972 = vpop.permute.xlu0 %1971
    %v1974 = vadd.f32 %v1964, %v1972
    %v1975 = vtanh.pop %v1974
    %1977 = vrot.lane.b32.xlu0 %v1975, 64
    %v1978 = vpop.permute.xlu0 %1977
    %v1980 = vmul.f32 %v1963, %v1978
    %1982 = vrot.lane.b32.xlu0 %v1980, 32
    %v1983 = vpop.permute.xlu0 %1982
    %1985 = vst.msk [vmem:[%s446] sm:$0xff] %vm113, %v1983
    %v1986 = vld [vmem:[%s448] sm:$0xff]
    %v1987 = vpack.c.bf16 %v1980, %v1980
    %1989 = vrot.lane.b32.xlu0 %v1987, 32
    %v1990 = vpop.permute.xlu0 %1989
    %v1992 = vsel %vm113, %v1990, 0
    %1994 = vmatprep.subr.bf16.mxu0 0
    %1995 = vmatpush1.bf16.msra.mxu0 0
    %1996 = vmatprep.subr.bf16.mxu0 0
    %1997 = vmatpush1.bf16.msra.mxu0 0
    %1998 = vmatprep.subr.bf16.mxu0 0
    %1999 = vmatpush1.bf16.msra.mxu0 0
    %2000 = vmatprep.subr.bf16.mxu0 0
    %2001 = vmatpush1.bf16.msra.mxu0 0
    %2002 = vmatprep.subr.bf16.mxu0 0
    %2003 = vmatpush1.bf16.msra.mxu0 0
    %2004 = vmatprep.subr.bf16.mxu0 0
    %2005 = vmatpush1.bf16.msra.mxu0 0
    %2006 = vmatprep.subr.bf16.mxu0 0
    %2007 = vmatpush1.bf16.msra.mxu0 %v1754
    %2008 = vmatprep.subr.bf16.mxu0 0
    %2009 = vmatpush1.bf16.msra.mxu0 %v1753
    %2010 = vmatprep.subr.bf16.mxu0 0
    %2011 = vmatpush2.bf16.msra.mxu0 0
    %2012 = vmatprep.subr.bf16.mxu0 0
    %2013 = vmatpush2.bf16.msra.mxu0 0
    %2014 = vmatprep.subr.bf16.mxu0 0
    %2015 = vmatpush2.bf16.msra.mxu0 0
    %2016 = vmatprep.subr.bf16.mxu0 0
    %2017 = vmatpush2.bf16.msra.mxu0 0
    %2018 = vmatprep.subr.bf16.mxu0 0
    %2019 = vmatpush2.bf16.msra.mxu0 0
    %2020 = vmatprep.subr.bf16.mxu0 0
    %2021 = vmatpush2.bf16.msra.mxu0 0
    %2022 = vmatprep.subr.bf16.mxu0 0
    %2023 = vmatpush2.bf16.msra.mxu0 0
    %2024 = vmatprep.subr.bf16.mxu0 0
    %2025 = vmatpush2.bf16.msra.mxu0 0
    %2026 = vmatprep.mubr.bf16.mxu0 0
    %2027 = vmatmul.mubr.bf16.gmra.mxu0 %v1992
    %v2028 = vpop.f32.mrf.mxu0
    %v2029 = vadd.f32 0.0, %v2028
    %v2030 = vpop.f32.mrf.mxu0
    %v2031 = vpop.f32.mrf.mxu0
    %v2032 = vpop.f32.mrf.mxu0
    %2033 = vdwg.mxu0
    %v2034 = vadd.f32 %v1986, %v2029
    %v2035 = vtanh.pop %v2034
    %v2036 = vxor.u32 %v2034, 2147483648
    %v2037 = vmul.f32 %v2036, 1.442695
    %v2038 = vpow.pop %v2037
    %v2039 = vadd.f32 %v2038, 1.0
    %v2040 = vrcp.pop %v2039
    %v2041 = vmul.f32 1.0, %v2040
    %v2042 = vsel %vm57, %v2035, %v2041
    %v2043 = vmul.f32 %v2042, %v1974
    %2045 = vrot.lane.b32.xlu0 %v2042, 64
    %v2046 = vpop.permute.xlu0 %2045
    %v2048 = vmul.f32 %v2042, %v2046
    %2050 = vrot.lane.b32.xlu0 %v2048, 32
    %v2051 = vpop.permute.xlu0 %2050
    %v2053 = vadd.f32 %v2043, %v2051
    %v2054 = vtanh.pop %v2053
    %2056 = vrot.lane.b32.xlu0 %v2054, 64
    %v2057 = vpop.permute.xlu0 %2056
    %v2059 = vmul.f32 %v2042, %v2057
    %2061 = vrot.lane.b32.xlu0 %v2059, 32
    %v2062 = vpop.permute.xlu0 %2061
    %2064 = vst.msk [vmem:[%s527] sm:$0xff] %vm113, %v2062
    %v2065 = vld [vmem:[%s529] sm:$0xff]
    %v2066 = vpack.c.bf16 %v2059, %v2059
    %2068 = vrot.lane.b32.xlu0 %v2066, 32
    %v2069 = vpop.permute.xlu0 %2068
    %v2071 = vsel %vm113, %v2069, 0
    %2073 = vmatprep.subr.bf16.mxu0 0
    %2074 = vmatpush1.bf16.msra.mxu0 0
    %2075 = vmatprep.subr.bf16.mxu0 0
    %2076 = vmatpush1.bf16.msra.mxu0 0
    %2077 = vmatprep.subr.bf16.mxu0 0
    %2078 = vmatpush1.bf16.msra.mxu0 0
    %2079 = vmatprep.subr.bf16.mxu0 0
    %2080 = vmatpush1.bf16.msra.mxu0 0
    %2081 = vmatprep.subr.bf16.mxu0 0
    %2082 = vmatpush1.bf16.msra.mxu0 0
    %2083 = vmatprep.subr.bf16.mxu0 0
    %2084 = vmatpush1.bf16.msra.mxu0 0
    %2085 = vmatprep.subr.bf16.mxu0 0
    %2086 = vmatpush1.bf16.msra.mxu0 %v1754
    %2087 = vmatprep.subr.bf16.mxu0 0
    %2088 = vmatpush1.bf16.msra.mxu0 %v1753
    %2089 = vmatprep.subr.bf16.mxu0 0
    %2090 = vmatpush2.bf16.msra.mxu0 0
    %2091 = vmatprep.subr.bf16.mxu0 0
    %2092 = vmatpush2.bf16.msra.mxu0 0
    %2093 = vmatprep.subr.bf16.mxu0 0
    %2094 = vmatpush2.bf16.msra.mxu0 0
    %2095 = vmatprep.subr.bf16.mxu0 0
    %2096 = vmatpush2.bf16.msra.mxu0 0
    %2097 = vmatprep.subr.bf16.mxu0 0
    %2098 = vmatpush2.bf16.msra.mxu0 0
    %2099 = vmatprep.subr.bf16.mxu0 0
    %2100 = vmatpush2.bf16.msra.mxu0 0
    %2101 = vmatprep.subr.bf16.mxu0 0
    %2102 = vmatpush2.bf16.msra.mxu0 0
    %2103 = vmatprep.subr.bf16.mxu0 0
    %2104 = vmatpush2.bf16.msra.mxu0 0
    %2105 = vmatprep.mubr.bf16.mxu0 0
    %2106 = vmatmul.mubr.bf16.gmra.mxu0 %v2071
    %v2107 = vpop.f32.mrf.mxu0
    %v2108 = vadd.f32 0.0, %v2107
    %v2109 = vpop.f32.mrf.mxu0
    %v2110 = vpop.f32.mrf.mxu0
    %v2111 = vpop.f32.mrf.mxu0
    %2112 = vdwg.mxu0
    %v2113 = vadd.f32 %v2065, %v2108
    %v2114 = vtanh.pop %v2113
    %v2115 = vxor.u32 %v2113, 2147483648
    %v2116 = vmul.f32 %v2115, 1.442695
    %v2117 = vpow.pop %v2116
    %v2118 = vadd.f32 %v2117, 1.0
    %v2119 = vrcp.pop %v2118
    %v2120 = vmul.f32 1.0, %v2119
    %v2121 = vsel %vm57, %v2114, %v2120
    %v2122 = vmul.f32 %v2121, %v2053
    %2124 = vrot.lane.b32.xlu0 %v2121, 64
    %v2125 = vpop.permute.xlu0 %2124
    %v2127 = vmul.f32 %v2121, %v2125
    %2129 = vrot.lane.b32.xlu0 %v2127, 32
    %v2130 = vpop.permute.xlu0 %2129
    %v2132 = vadd.f32 %v2122, %v2130
    %v2133 = vtanh.pop %v2132
    %2135 = vrot.lane.b32.xlu0 %v2133, 64
    %v2136 = vpop.permute.xlu0 %2135
    %v2138 = vmul.f32 %v2121, %v2136
    %2140 = vrot.lane.b32.xlu0 %v2138, 32
    %v2141 = vpop.permute.xlu0 %2140
    %2143 = vst.msk [vmem:[%s608] sm:$0xff] %vm113, %v2141
    %v2144 = vld [vmem:[%s610] sm:$0xff]
    %v2145 = vpack.c.bf16 %v2138, %v2138
    %2147 = vrot.lane.b32.xlu0 %v2145, 32
    %v2148 = vpop.permute.xlu0 %2147
    %v2150 = vsel %vm113, %v2148, 0
    %2152 = vmatprep.subr.bf16.mxu0 0
    %2153 = vmatpush1.bf16.msra.mxu0 0
    %2154 = vmatprep.subr.bf16.mxu0 0
    %2155 = vmatpush1.bf16.msra.mxu0 0
    %2156 = vmatprep.subr.bf16.mxu0 0
    %2157 = vmatpush1.bf16.msra.mxu0 0
    %2158 = vmatprep.subr.bf16.mxu0 0
    %2159 = vmatpush1.bf16.msra.mxu0 0
    %2160 = vmatprep.subr.bf16.mxu0 0
    %2161 = vmatpush1.bf16.msra.mxu0 0
    %2162 = vmatprep.subr.bf16.mxu0 0
    %2163 = vmatpush1.bf16.msra.mxu0 0
    %2164 = vmatprep.subr.bf16.mxu0 0
    %2165 = vmatpush1.bf16.msra.mxu0 %v1754
    %2166 = vmatprep.subr.bf16.mxu0 0
    %2167 = vmatpush1.bf16.msra.mxu0 %v1753
    %2168 = vmatprep.subr.bf16.mxu0 0
    %2169 = vmatpush2.bf16.msra.mxu0 0
    %2170 = vmatprep.subr.bf16.mxu0 0
    %2171 = vmatpush2.bf16.msra.mxu0 0
    %2172 = vmatprep.subr.bf16.mxu0 0
    %2173 = vmatpush2.bf16.msra.mxu0 0
    %2174 = vmatprep.subr.bf16.mxu0 0
    %2175 = vmatpush2.bf16.msra.mxu0 0
    %2176 = vmatprep.subr.bf16.mxu0 0
    %2177 = vmatpush2.bf16.msra.mxu0 0
    %2178 = vmatprep.subr.bf16.mxu0 0
    %2179 = vmatpush2.bf16.msra.mxu0 0
    %2180 = vmatprep.subr.bf16.mxu0 0
    %2181 = vmatpush2.bf16.msra.mxu0 0
    %2182 = vmatprep.subr.bf16.mxu0 0
    %2183 = vmatpush2.bf16.msra.mxu0 0
    %2184 = vmatprep.mubr.bf16.mxu0 0
    %2185 = vmatmul.mubr.bf16.gmra.mxu0 %v2150
    %v2186 = vpop.f32.mrf.mxu0
    %v2187 = vadd.f32 0.0, %v2186
    %v2188 = vpop.f32.mrf.mxu0
    %v2189 = vpop.f32.mrf.mxu0
    %v2190 = vpop.f32.mrf.mxu0
    %2191 = vdwg.mxu0
    %v2192 = vadd.f32 %v2144, %v2187
    %v2193 = vtanh.pop %v2192
    %v2194 = vxor.u32 %v2192, 2147483648
    %v2195 = vmul.f32 %v2194, 1.442695
    %v2196 = vpow.pop %v2195
    %v2197 = vadd.f32 %v2196, 1.0
    %v2198 = vrcp.pop %v2197
    %v2199 = vmul.f32 1.0, %v2198
    %v2200 = vsel %vm57, %v2193, %v2199
    %v2201 = vmul.f32 %v2200, %v2132
    %2203 = vrot.lane.b32.xlu0 %v2200, 64
    %v2204 = vpop.permute.xlu0 %2203
    %v2206 = vmul.f32 %v2200, %v2204
    %2208 = vrot.lane.b32.xlu0 %v2206, 32
    %v2209 = vpop.permute.xlu0 %2208
    %v2211 = vadd.f32 %v2201, %v2209
    %v2212 = vtanh.pop %v2211
    %2214 = vrot.lane.b32.xlu0 %v2212, 64
    %v2215 = vpop.permute.xlu0 %2214
    %v2217 = vmul.f32 %v2200, %v2215
    %2219 = vrot.lane.b32.xlu0 %v2217, 32
    %v2220 = vpop.permute.xlu0 %2219
    %2222 = vst.msk [vmem:[%s689] sm:$0xff] %vm113, %v2220
    %v2223 = vld [vmem:[%s691] sm:$0xff]
    %v2224 = vpack.c.bf16 %v2217, %v2217
    %2226 = vrot.lane.b32.xlu0 %v2224, 32
    %v2227 = vpop.permute.xlu0 %2226
    %v2229 = vsel %vm113, %v2227, 0
    %2231 = vmatprep.subr.bf16.mxu0 0
    %2232 = vmatpush1.bf16.msra.mxu0 0
    %2233 = vmatprep.subr.bf16.mxu0 0
    %2234 = vmatpush1.bf16.msra.mxu0 0
    %2235 = vmatprep.subr.bf16.mxu0 0
    %2236 = vmatpush1.bf16.msra.mxu0 0
    %2237 = vmatprep.subr.bf16.mxu0 0
    %2238 = vmatpush1.bf16.msra.mxu0 0
    %2239 = vmatprep.subr.bf16.mxu0 0
    %2240 = vmatpush1.bf16.msra.mxu0 0
    %2241 = vmatprep.subr.bf16.mxu0 0
    %2242 = vmatpush1.bf16.msra.mxu0 0
    %2243 = vmatprep.subr.bf16.mxu0 0
    %2244 = vmatpush1.bf16.msra.mxu0 %v1754
    %2245 = vmatprep.subr.bf16.mxu0 0
    %2246 = vmatpush1.bf16.msra.mxu0 %v1753
    %2247 = vmatprep.subr.bf16.mxu0 0
    %2248 = vmatpush2.bf16.msra.mxu0 0
    %2249 = vmatprep.subr.bf16.mxu0 0
    %2250 = vmatpush2.bf16.msra.mxu0 0
    %2251 = vmatprep.subr.bf16.mxu0 0
    %2252 = vmatpush2.bf16.msra.mxu0 0
    %2253 = vmatprep.subr.bf16.mxu0 0
    %2254 = vmatpush2.bf16.msra.mxu0 0
    %2255 = vmatprep.subr.bf16.mxu0 0
    %2256 = vmatpush2.bf16.msra.mxu0 0
    %2257 = vmatprep.subr.bf16.mxu0 0
    %2258 = vmatpush2.bf16.msra.mxu0 0
    %2259 = vmatprep.subr.bf16.mxu0 0
    %2260 = vmatpush2.bf16.msra.mxu0 0
    %2261 = vmatprep.subr.bf16.mxu0 0
    %2262 = vmatpush2.bf16.msra.mxu0 0
    %2263 = vmatprep.mubr.bf16.mxu0 0
    %2264 = vmatmul.mubr.bf16.gmra.mxu0 %v2229
    %v2265 = vpop.f32.mrf.mxu0
    %v2266 = vadd.f32 0.0, %v2265
    %v2267 = vpop.f32.mrf.mxu0
    %v2268 = vpop.f32.mrf.mxu0
    %v2269 = vpop.f32.mrf.mxu0
    %2270 = vdwg.mxu0
    %v2271 = vadd.f32 %v2223, %v2266
    %v2272 = vtanh.pop %v2271
    %v2273 = vxor.u32 %v2271, 2147483648
    %v2274 = vmul.f32 %v2273, 1.442695
    %v2275 = vpow.pop %v2274
    %v2276 = vadd.f32 %v2275, 1.0
    %v2277 = vrcp.pop %v2276
    %v2278 = vmul.f32 1.0, %v2277
    %v2279 = vsel %vm57, %v2272, %v2278
    %v2280 = vmul.f32 %v2279, %v2211
    %2282 = vrot.lane.b32.xlu0 %v2279, 64
    %v2283 = vpop.permute.xlu0 %2282
    %v2285 = vmul.f32 %v2279, %v2283
    %2287 = vrot.lane.b32.xlu0 %v2285, 32
    %v2288 = vpop.permute.xlu0 %2287
    %v2290 = vadd.f32 %v2280, %v2288
    %v2291 = vtanh.pop %v2290
    %2293 = vrot.lane.b32.xlu0 %v2291, 64
    %v2294 = vpop.permute.xlu0 %2293
    %v2296 = vmul.f32 %v2279, %v2294
    %2298 = vrot.lane.b32.xlu0 %v2296, 32
    %v2299 = vpop.permute.xlu0 %2298
    %2301 = vst.msk [vmem:[%s770] sm:$0xff] %vm113, %v2299
    %v2302 = vld [vmem:[%s772] sm:$0xff]
    %v2303 = vpack.c.bf16 %v2296, %v2296
    %2305 = vrot.lane.b32.xlu0 %v2303, 32
    %v2306 = vpop.permute.xlu0 %2305
    %v2308 = vsel %vm113, %v2306, 0
    %2310 = vmatprep.subr.bf16.mxu0 0
    %2311 = vmatpush1.bf16.msra.mxu0 0
    %2312 = vmatprep.subr.bf16.mxu0 0
    %2313 = vmatpush1.bf16.msra.mxu0 0
    %2314 = vmatprep.subr.bf16.mxu0 0
    %2315 = vmatpush1.bf16.msra.mxu0 0
    %2316 = vmatprep.subr.bf16.mxu0 0
    %2317 = vmatpush1.bf16.msra.mxu0 0
    %2318 = vmatprep.subr.bf16.mxu0 0
    %2319 = vmatpush1.bf16.msra.mxu0 0
    %2320 = vmatprep.subr.bf16.mxu0 0
    %2321 = vmatpush1.bf16.msra.mxu0 0
    %2322 = vmatprep.subr.bf16.mxu0 0
    %2323 = vmatpush1.bf16.msra.mxu0 %v1754
    %2324 = vmatprep.subr.bf16.mxu0 0
    %2325 = vmatpush1.bf16.msra.mxu0 %v1753
    %2326 = vmatprep.subr.bf16.mxu0 0
    %2327 = vmatpush2.bf16.msra.mxu0 0
    %2328 = vmatprep.subr.bf16.mxu0 0
    %2329 = vmatpush2.bf16.msra.mxu0 0
    %2330 = vmatprep.subr.bf16.mxu0 0
    %2331 = vmatpush2.bf16.msra.mxu0 0
    %2332 = vmatprep.subr.bf16.mxu0 0
    %2333 = vmatpush2.bf16.msra.mxu0 0
    %2334 = vmatprep.subr.bf16.mxu0 0
    %2335 = vmatpush2.bf16.msra.mxu0 0
    %2336 = vmatprep.subr.bf16.mxu0 0
    %2337 = vmatpush2.bf16.msra.mxu0 0
    %2338 = vmatprep.subr.bf16.mxu0 0
    %2339 = vmatpush2.bf16.msra.mxu0 0
    %2340 = vmatprep.subr.bf16.mxu0 0
    %2341 = vmatpush2.bf16.msra.mxu0 0
    %2342 = vmatprep.mubr.bf16.mxu0 0
    %2343 = vmatmul.mubr.bf16.gmra.mxu0 %v2308
    %v2344 = vpop.f32.mrf.mxu0
    %v2345 = vadd.f32 0.0, %v2344
    %v2346 = vpop.f32.mrf.mxu0
    %v2347 = vpop.f32.mrf.mxu0
    %v2348 = vpop.f32.mrf.mxu0
    %2349 = vdwg.mxu0
    %v2350 = vadd.f32 %v2302, %v2345
    %v2351 = vtanh.pop %v2350
    %v2352 = vxor.u32 %v2350, 2147483648
    %v2353 = vmul.f32 %v2352, 1.442695
    %v2354 = vpow.pop %v2353
    %v2355 = vadd.f32 %v2354, 1.0
    %v2356 = vrcp.pop %v2355
    %v2357 = vmul.f32 1.0, %v2356
    %v2358 = vsel %vm57, %v2351, %v2357
    %v2359 = vmul.f32 %v2358, %v2290
    %2361 = vrot.lane.b32.xlu0 %v2358, 64
    %v2362 = vpop.permute.xlu0 %2361
    %v2364 = vmul.f32 %v2358, %v2362
    %2366 = vrot.lane.b32.xlu0 %v2364, 32
    %v2367 = vpop.permute.xlu0 %2366
    %v2369 = vadd.f32 %v2359, %v2367
    %v2370 = vtanh.pop %v2369
    %2372 = vrot.lane.b32.xlu0 %v2370, 64
    %v2373 = vpop.permute.xlu0 %2372
    %v2375 = vmul.f32 %v2358, %v2373
    %2377 = vrot.lane.b32.xlu0 %v2375, 32
    %v2378 = vpop.permute.xlu0 %2377
    %2380 = vst.msk [vmem:[%s851] sm:$0xff] %vm113, %v2378
    %s2381 = scalar_lea.vmem [#allocation7], 48
    %v2382 = vld [vmem:[%s2381] sm:$0xf]
    %v2383 = vld [vmem:[%s2381 + $0x4] sm:$0xf]
    %v2384 = vld [vmem:[%s2381 + $0x8] sm:$0xf]
    %v2385 = vld [vmem:[%s2381 + $0xc] sm:$0xf]
    %v2386 = vld [vmem:[#allocation2] sm:$0xff]
    %v2387 = vld [vmem:[#allocation2 + $0x8] sm:$0xff]
    %v2388 = vld [vmem:[#allocation2 + $0x10] sm:$0xff]
    %v2389 = vld [vmem:[#allocation2 + $0x18] sm:$0xff]
    %v2390 = vld [vmem:[#allocation2 + $0x20] sm:$0xff]
    %v2391 = vld [vmem:[#allocation2 + $0x28] sm:$0xff]
    %v2392 = vld [vmem:[#allocation2 + $0x30] sm:$0xff]
    %v2393 = vld [vmem:[#allocation2 + $0x38] sm:$0xff]
    %v2394 = vpack.c.bf16 %v2387, %v2386
    %v2395 = vpack.c.bf16 %v2389, %v2388
    %v2396 = vpack.c.bf16 %v2391, %v2390
    %v2397 = vpack.c.bf16 %v2393, %v2392
    %s2398 = scalar_lea.vmem [#allocation4], 48
    %v2399 = vld [vmem:[%s2398] sm:$0xf]
    %v2400 = vld [vmem:[%s2398 + $0x4] sm:$0xf]
    %v2401 = vld [vmem:[%s2398 + $0x8] sm:$0xf]
    %v2402 = vld [vmem:[%s2398 + $0xc] sm:$0xf]
    %s2403 = scalar_lea.vmem %s3, 3
    %v2404 = vld [vmem:[%s2403] sm:$0x1]
    %v2406 = vlaneseq
    %v2407 = vshrl.u32 %v2406, 7
    %v2408 = vsub.s32 0, %v2407
    %v2409 = vrot.slane %v2404, %v2408
    %v2415 = vunpack.c.l.b16 %v2399
    %v2416 = vunpack.c.l.b16 %v2400
    %v2417 = vunpack.c.l.b16 %v2401
    %v2418 = vunpack.c.l.b16 %v2402
    %v2419 = vpack.c.b16 %v2416, %v2415
    %v2420 = vpack.c.b16 %v2418, %v2417
    %v2424 = vsel %vm113, %v2394, 0
    %v2427 = vsel %vm113, %v2395, 0
    %v2430 = vsel %vm113, %v2396, 0
    %v2433 = vsel %vm113, %v2397, 0
    %2435 = vmatprep.subr.bf16.mxu0 0
    %2436 = vmatpush1.bf16.msra.mxu0 0
    %2437 = vmatprep.subr.bf16.mxu0 0
    %2438 = vmatpush1.bf16.msra.mxu0 0
    %2439 = vmatprep.subr.bf16.mxu0 0
    %2440 = vmatpush1.bf16.msra.mxu0 0
    %2441 = vmatprep.subr.bf16.mxu0 0
    %2442 = vmatpush1.bf16.msra.mxu0 0
    %2443 = vmatprep.subr.bf16.mxu0 0
    %2444 = vmatpush1.bf16.msra.mxu0 0
    %2445 = vmatprep.subr.bf16.mxu0 0
    %2446 = vmatpush1.bf16.msra.mxu0 0
    %2447 = vmatprep.subr.bf16.mxu0 0
    %2448 = vmatpush1.bf16.msra.mxu0 %v2420
    %2449 = vmatprep.subr.bf16.mxu0 0
    %2450 = vmatpush1.bf16.msra.mxu0 %v2419
    %2451 = vmatprep.subr.bf16.mxu0 0
    %2452 = vmatpush2.bf16.msra.mxu0 0
    %2453 = vmatprep.subr.bf16.mxu0 0
    %2454 = vmatpush2.bf16.msra.mxu0 0
    %2455 = vmatprep.subr.bf16.mxu0 0
    %2456 = vmatpush2.bf16.msra.mxu0 0
    %2457 = vmatprep.subr.bf16.mxu0 0
    %2458 = vmatpush2.bf16.msra.mxu0 0
    %2459 = vmatprep.subr.bf16.mxu0 0
    %2460 = vmatpush2.bf16.msra.mxu0 0
    %2461 = vmatprep.subr.bf16.mxu0 0
    %2462 = vmatpush2.bf16.msra.mxu0 0
    %2463 = vmatprep.subr.bf16.mxu0 0
    %2464 = vmatpush2.bf16.msra.mxu0 0
    %2465 = vmatprep.subr.bf16.mxu0 0
    %2466 = vmatpush2.bf16.msra.mxu0 0
    %2467 = vmatprep.mubr.bf16.mxu0 0
    %2468 = vmatmul.mubr.bf16.gmra.mxu0 %v2424
    %v2469 = vpop.f32.mrf.mxu0
    %v2470 = vadd.f32 %v2409, %v2469
    %v2471 = vpop.f32.mrf.mxu0
    %v2472 = vpop.f32.mrf.mxu0
    %v2473 = vadd.f32 %v2409, %v2472
    %v2474 = vpop.f32.mrf.mxu0
    %2475 = vmatprep.mubr.bf16.mxu0 0
    %2476 = vmatmul.mubr.bf16.gmra.mxu0 %v2427
    %v2477 = vpop.f32.mrf.mxu0
    %v2478 = vadd.f32 %v2409, %v2477
    %v2479 = vpop.f32.mrf.mxu0
    %v2480 = vpop.f32.mrf.mxu0
    %v2481 = vadd.f32 %v2409, %v2480
    %v2482 = vpop.f32.mrf.mxu0
    %2483 = vmatprep.mubr.bf16.mxu0 0
    %2484 = vmatmul.mubr.bf16.gmra.mxu0 %v2430
    %v2485 = vpop.f32.mrf.mxu0
    %v2486 = vadd.f32 %v2409, %v2485
    %v2487 = vpop.f32.mrf.mxu0
    %v2488 = vpop.f32.mrf.mxu0
    %v2489 = vadd.f32 %v2409, %v2488
    %v2490 = vpop.f32.mrf.mxu0
    %2491 = vmatprep.mubr.bf16.mxu0 0
    %2492 = vmatmul.mubr.bf16.gmra.mxu0 %v2433
    %v2493 = vpop.f32.mrf.mxu0
    %v2494 = vadd.f32 %v2409, %v2493
    %v2495 = vpop.f32.mrf.mxu0
    %v2496 = vpop.f32.mrf.mxu0
    %v2497 = vadd.f32 %v2409, %v2496
    %v2498 = vpop.f32.mrf.mxu0
    %2499 = vdwg.mxu0
    %2500 = vst [vmem:[#allocation3] sm:$0xff] %v2470
    %2501 = vst [vmem:[#allocation3 + $0x8] sm:$0xff] %v2473
    %2502 = vst [vmem:[#allocation3 + $0x10] sm:$0xff] %v2478
    %2503 = vst [vmem:[#allocation3 + $0x18] sm:$0xff] %v2481
    %2504 = vst [vmem:[#allocation3 + $0x20] sm:$0xff] %v2486
    %2505 = vst [vmem:[#allocation3 + $0x28] sm:$0xff] %v2489
    %2506 = vst [vmem:[#allocation3 + $0x30] sm:$0xff] %v2494
    %2507 = vst [vmem:[#allocation3 + $0x38] sm:$0xff] %v2497
    %v2508 = vld [vmem:[#allocation3] sm:$0xff]
    %v2513 = vunpack.c.l.b16 %v2382
    %v2514 = vunpack.c.l.b16 %v2383
    %v2515 = vunpack.c.l.b16 %v2384
    %v2516 = vunpack.c.l.b16 %v2385
    %v2517 = vpack.c.b16 %v2514, %v2513
    %v2518 = vpack.c.b16 %v2516, %v2515
    %2521 = vmatprep.subr.bf16.mxu0 0
    %2522 = vmatpush1.bf16.msra.mxu0 0
    %2523 = vmatprep.subr.bf16.mxu0 0
    %2524 = vmatpush1.bf16.msra.mxu0 0
    %2525 = vmatprep.subr.bf16.mxu0 0
    %2526 = vmatpush1.bf16.msra.mxu0 0
    %2527 = vmatprep.subr.bf16.mxu0 0
    %2528 = vmatpush1.bf16.msra.mxu0 0
    %2529 = vmatprep.subr.bf16.mxu0 0
    %2530 = vmatpush1.bf16.msra.mxu0 0
    %2531 = vmatprep.subr.bf16.mxu0 0
    %2532 = vmatpush1.bf16.msra.mxu0 0
    %2533 = vmatprep.subr.bf16.mxu0 0
    %2534 = vmatpush1.bf16.msra.mxu0 %v2518
    %2535 = vmatprep.subr.bf16.mxu0 0
    %2536 = vmatpush1.bf16.msra.mxu0 %v2517
    %2537 = vmatprep.subr.bf16.mxu0 0
    %2538 = vmatpush2.bf16.msra.mxu0 0
    %2539 = vmatprep.subr.bf16.mxu0 0
    %2540 = vmatpush2.bf16.msra.mxu0 0
    %2541 = vmatprep.subr.bf16.mxu0 0
    %2542 = vmatpush2.bf16.msra.mxu0 0
    %2543 = vmatprep.subr.bf16.mxu0 0
    %2544 = vmatpush2.bf16.msra.mxu0 0
    %2545 = vmatprep.subr.bf16.mxu0 0
    %2546 = vmatpush2.bf16.msra.mxu0 0
    %2547 = vmatprep.subr.bf16.mxu0 0
    %2548 = vmatpush2.bf16.msra.mxu0 0
    %2549 = vmatprep.subr.bf16.mxu0 0
    %2550 = vmatpush2.bf16.msra.mxu0 0
    %2551 = vmatprep.subr.bf16.mxu0 0
    %2552 = vmatpush2.bf16.msra.mxu0 0
    %2553 = vmatprep.mubr.bf16.mxu0 0
    %2554 = vmatmul.mubr.bf16.gmra.mxu0 %v213
    %v2555 = vpop.f32.mrf.mxu0
    %v2556 = vadd.f32 0.0, %v2555
    %v2557 = vpop.f32.mrf.mxu0
    %v2558 = vpop.f32.mrf.mxu0
    %v2559 = vpop.f32.mrf.mxu0
    %2560 = vdwg.mxu0
    %v2561 = vadd.f32 %v2508, %v2556
    %v2562 = vtanh.pop %v2561
    %v2563 = vxor.u32 %v2561, 2147483648
    %v2564 = vmul.f32 %v2563, 1.442695
    %v2565 = vpow.pop %v2564
    %v2566 = vadd.f32 %v2565, 1.0
    %v2567 = vrcp.pop %v2566
    %v2568 = vmul.f32 1.0, %v2567
    %v2569 = vsel %vm57, %v2562, %v2568
    %v2570 = vmul.f32 %v2569, 0.0
    %2572 = vrot.lane.b32.xlu0 %v2569, 64
    %v2573 = vpop.permute.xlu0 %2572
    %v2575 = vmul.f32 %v2569, %v2573
    %2577 = vrot.lane.b32.xlu0 %v2575, 32
    %v2578 = vpop.permute.xlu0 %2577
    %v2580 = vadd.f32 %v2570, %v2578
    %v2581 = vtanh.pop %v2580
    %2583 = vrot.lane.b32.xlu0 %v2581, 64
    %v2584 = vpop.permute.xlu0 %2583
    %v2586 = vmul.f32 %v2569, %v2584
    %v2587 = vld [vmem:[%s286] sm:$0xff]
    %v2588 = vpack.c.bf16 %v2586, %v2586
    %2590 = vrot.lane.b32.xlu0 %v2588, 32
    %v2591 = vpop.permute.xlu0 %2590
    %v2593 = vsel %vm113, %v2591, 0
    %2595 = vmatprep.subr.bf16.mxu0 0
    %2596 = vmatpush1.bf16.msra.mxu0 0
    %2597 = vmatprep.subr.bf16.mxu0 0
    %2598 = vmatpush1.bf16.msra.mxu0 0
    %2599 = vmatprep.subr.bf16.mxu0 0
    %2600 = vmatpush1.bf16.msra.mxu0 0
    %2601 = vmatprep.subr.bf16.mxu0 0
    %2602 = vmatpush1.bf16.msra.mxu0 0
    %2603 = vmatprep.subr.bf16.mxu0 0
    %2604 = vmatpush1.bf16.msra.mxu0 0
    %2605 = vmatprep.subr.bf16.mxu0 0
    %2606 = vmatpush1.bf16.msra.mxu0 0
    %2607 = vmatprep.subr.bf16.mxu0 0
    %2608 = vmatpush1.bf16.msra.mxu0 %v2518
    %2609 = vmatprep.subr.bf16.mxu0 0
    %2610 = vmatpush1.bf16.msra.mxu0 %v2517
    %2611 = vmatprep.subr.bf16.mxu0 0
    %2612 = vmatpush2.bf16.msra.mxu0 0
    %2613 = vmatprep.subr.bf16.mxu0 0
    %2614 = vmatpush2.bf16.msra.mxu0 0
    %2615 = vmatprep.subr.bf16.mxu0 0
    %2616 = vmatpush2.bf16.msra.mxu0 0
    %2617 = vmatprep.subr.bf16.mxu0 0
    %2618 = vmatpush2.bf16.msra.mxu0 0
    %2619 = vmatprep.subr.bf16.mxu0 0
    %2620 = vmatpush2.bf16.msra.mxu0 0
    %2621 = vmatprep.subr.bf16.mxu0 0
    %2622 = vmatpush2.bf16.msra.mxu0 0
    %2623 = vmatprep.subr.bf16.mxu0 0
    %2624 = vmatpush2.bf16.msra.mxu0 0
    %2625 = vmatprep.subr.bf16.mxu0 0
    %2626 = vmatpush2.bf16.msra.mxu0 0
    %2627 = vmatprep.mubr.bf16.mxu0 0
    %2628 = vmatmul.mubr.bf16.gmra.mxu0 %v2593
    %v2629 = vpop.f32.mrf.mxu0
    %v2630 = vadd.f32 0.0, %v2629
    %v2631 = vpop.f32.mrf.mxu0
    %v2632 = vpop.f32.mrf.mxu0
    %v2633 = vpop.f32.mrf.mxu0
    %2634 = vdwg.mxu0
    %v2635 = vadd.f32 %v2587, %v2630
    %v2636 = vtanh.pop %v2635
    %v2637 = vxor.u32 %v2635, 2147483648
    %v2638 = vmul.f32 %v2637, 1.442695
    %v2639 = vpow.pop %v2638
    %v2640 = vadd.f32 %v2639, 1.0
    %v2641 = vrcp.pop %v2640
    %v2642 = vmul.f32 1.0, %v2641
    %v2643 = vsel %vm57, %v2636, %v2642
    %v2644 = vmul.f32 %v2643, %v2580
    %2646 = vrot.lane.b32.xlu0 %v2643, 64
    %v2647 = vpop.permute.xlu0 %2646
    %v2649 = vmul.f32 %v2643, %v2647
    %2651 = vrot.lane.b32.xlu0 %v2649, 32
    %v2652 = vpop.permute.xlu0 %2651
    %v2654 = vadd.f32 %v2644, %v2652
    %v2655 = vtanh.pop %v2654
    %2657 = vrot.lane.b32.xlu0 %v2655, 64
    %v2658 = vpop.permute.xlu0 %2657
    %v2660 = vmul.f32 %v2643, %v2658
    %v2661 = vld [vmem:[%s367] sm:$0xff]
    %v2662 = vpack.c.bf16 %v2660, %v2660
    %2664 = vrot.lane.b32.xlu0 %v2662, 32
    %v2665 = vpop.permute.xlu0 %2664
    %v2667 = vsel %vm113, %v2665, 0
    %2669 = vmatprep.subr.bf16.mxu0 0
    %2670 = vmatpush1.bf16.msra.mxu0 0
    %2671 = vmatprep.subr.bf16.mxu0 0
    %2672 = vmatpush1.bf16.msra.mxu0 0
    %2673 = vmatprep.subr.bf16.mxu0 0
    %2674 = vmatpush1.bf16.msra.mxu0 0
    %2675 = vmatprep.subr.bf16.mxu0 0
    %2676 = vmatpush1.bf16.msra.mxu0 0
    %2677 = vmatprep.subr.bf16.mxu0 0
    %2678 = vmatpush1.bf16.msra.mxu0 0
    %2679 = vmatprep.subr.bf16.mxu0 0
    %2680 = vmatpush1.bf16.msra.mxu0 0
    %2681 = vmatprep.subr.bf16.mxu0 0
    %2682 = vmatpush1.bf16.msra.mxu0 %v2518
    %2683 = vmatprep.subr.bf16.mxu0 0
    %2684 = vmatpush1.bf16.msra.mxu0 %v2517
    %2685 = vmatprep.subr.bf16.mxu0 0
    %2686 = vmatpush2.bf16.msra.mxu0 0
    %2687 = vmatprep.subr.bf16.mxu0 0
    %2688 = vmatpush2.bf16.msra.mxu0 0
    %2689 = vmatprep.subr.bf16.mxu0 0
    %2690 = vmatpush2.bf16.msra.mxu0 0
    %2691 = vmatprep.subr.bf16.mxu0 0
    %2692 = vmatpush2.bf16.msra.mxu0 0
    %2693 = vmatprep.subr.bf16.mxu0 0
    %2694 = vmatpush2.bf16.msra.mxu0 0
    %2695 = vmatprep.subr.bf16.mxu0 0
    %2696 = vmatpush2.bf16.msra.mxu0 0
    %2697 = vmatprep.subr.bf16.mxu0 0
    %2698 = vmatpush2.bf16.msra.mxu0 0
    %2699 = vmatprep.subr.bf16.mxu0 0
    %2700 = vmatpush2.bf16.msra.mxu0 0
    %2701 = vmatprep.mubr.bf16.mxu0 0
    %2702 = vmatmul.mubr.bf16.gmra.mxu0 %v2667
    %v2703 = vpop.f32.mrf.mxu0
    %v2704 = vadd.f32 0.0, %v2703
    %v2705 = vpop.f32.mrf.mxu0
    %v2706 = vpop.f32.mrf.mxu0
    %v2707 = vpop.f32.mrf.mxu0
    %2708 = vdwg.mxu0
    %v2709 = vadd.f32 %v2661, %v2704
    %v2710 = vtanh.pop %v2709
    %v2711 = vxor.u32 %v2709, 2147483648
    %v2712 = vmul.f32 %v2711, 1.442695
    %v2713 = vpow.pop %v2712
    %v2714 = vadd.f32 %v2713, 1.0
    %v2715 = vrcp.pop %v2714
    %v2716 = vmul.f32 1.0, %v2715
    %v2717 = vsel %vm57, %v2710, %v2716
    %v2718 = vmul.f32 %v2717, %v2654
    %2720 = vrot.lane.b32.xlu0 %v2717, 64
    %v2721 = vpop.permute.xlu0 %2720
    %v2723 = vmul.f32 %v2717, %v2721
    %2725 = vrot.lane.b32.xlu0 %v2723, 32
    %v2726 = vpop.permute.xlu0 %2725
    %v2728 = vadd.f32 %v2718, %v2726
    %v2729 = vtanh.pop %v2728
    %2731 = vrot.lane.b32.xlu0 %v2729, 64
    %v2732 = vpop.permute.xlu0 %2731
    %v2734 = vmul.f32 %v2717, %v2732
    %v2735 = vld [vmem:[%s448] sm:$0xff]
    %v2736 = vpack.c.bf16 %v2734, %v2734
    %2738 = vrot.lane.b32.xlu0 %v2736, 32
    %v2739 = vpop.permute.xlu0 %2738
    %v2741 = vsel %vm113, %v2739, 0
    %2743 = vmatprep.subr.bf16.mxu0 0
    %2744 = vmatpush1.bf16.msra.mxu0 0
    %2745 = vmatprep.subr.bf16.mxu0 0
    %2746 = vmatpush1.bf16.msra.mxu0 0
    %2747 = vmatprep.subr.bf16.mxu0 0
    %2748 = vmatpush1.bf16.msra.mxu0 0
    %2749 = vmatprep.subr.bf16.mxu0 0
    %2750 = vmatpush1.bf16.msra.mxu0 0
    %2751 = vmatprep.subr.bf16.mxu0 0
    %2752 = vmatpush1.bf16.msra.mxu0 0
    %2753 = vmatprep.subr.bf16.mxu0 0
    %2754 = vmatpush1.bf16.msra.mxu0 0
    %2755 = vmatprep.subr.bf16.mxu0 0
    %2756 = vmatpush1.bf16.msra.mxu0 %v2518
    %2757 = vmatprep.subr.bf16.mxu0 0
    %2758 = vmatpush1.bf16.msra.mxu0 %v2517
    %2759 = vmatprep.subr.bf16.mxu0 0
    %2760 = vmatpush2.bf16.msra.mxu0 0
    %2761 = vmatprep.subr.bf16.mxu0 0
    %2762 = vmatpush2.bf16.msra.mxu0 0
    %2763 = vmatprep.subr.bf16.mxu0 0
    %2764 = vmatpush2.bf16.msra.mxu0 0
    %2765 = vmatprep.subr.bf16.mxu0 0
    %2766 = vmatpush2.bf16.msra.mxu0 0
    %2767 = vmatprep.subr.bf16.mxu0 0
    %2768 = vmatpush2.bf16.msra.mxu0 0
    %2769 = vmatprep.subr.bf16.mxu0 0
    %2770 = vmatpush2.bf16.msra.mxu0 0
    %2771 = vmatprep.subr.bf16.mxu0 0
    %2772 = vmatpush2.bf16.msra.mxu0 0
    %2773 = vmatprep.subr.bf16.mxu0 0
    %2774 = vmatpush2.bf16.msra.mxu0 0
    %2775 = vmatprep.mubr.bf16.mxu0 0
    %2776 = vmatmul.mubr.bf16.gmra.mxu0 %v2741
    %v2777 = vpop.f32.mrf.mxu0
    %v2778 = vadd.f32 0.0, %v2777
    %v2779 = vpop.f32.mrf.mxu0
    %v2780 = vpop.f32.mrf.mxu0
    %v2781 = vpop.f32.mrf.mxu0
    %2782 = vdwg.mxu0
    %v2783 = vadd.f32 %v2735, %v2778
    %v2784 = vtanh.pop %v2783
    %v2785 = vxor.u32 %v2783, 2147483648
    %v2786 = vmul.f32 %v2785, 1.442695
    %v2787 = vpow.pop %v2786
    %v2788 = vadd.f32 %v2787, 1.0
    %v2789 = vrcp.pop %v2788
    %v2790 = vmul.f32 1.0, %v2789
    %v2791 = vsel %vm57, %v2784, %v2790
    %v2792 = vmul.f32 %v2791, %v2728
    %2794 = vrot.lane.b32.xlu0 %v2791, 64
    %v2795 = vpop.permute.xlu0 %2794
    %v2797 = vmul.f32 %v2791, %v2795
    %2799 = vrot.lane.b32.xlu0 %v2797, 32
    %v2800 = vpop.permute.xlu0 %2799
    %v2802 = vadd.f32 %v2792, %v2800
    %v2803 = vtanh.pop %v2802
    %2805 = vrot.lane.b32.xlu0 %v2803, 64
    %v2806 = vpop.permute.xlu0 %2805
    %v2808 = vmul.f32 %v2791, %v2806
    %v2809 = vld [vmem:[%s529] sm:$0xff]
    %v2810 = vpack.c.bf16 %v2808, %v2808
    %2812 = vrot.lane.b32.xlu0 %v2810, 32
    %v2813 = vpop.permute.xlu0 %2812
    %v2815 = vsel %vm113, %v2813, 0
    %2817 = vmatprep.subr.bf16.mxu0 0
    %2818 = vmatpush1.bf16.msra.mxu0 0
    %2819 = vmatprep.subr.bf16.mxu0 0
    %2820 = vmatpush1.bf16.msra.mxu0 0
    %2821 = vmatprep.subr.bf16.mxu0 0
    %2822 = vmatpush1.bf16.msra.mxu0 0
    %2823 = vmatprep.subr.bf16.mxu0 0
    %2824 = vmatpush1.bf16.msra.mxu0 0
    %2825 = vmatprep.subr.bf16.mxu0 0
    %2826 = vmatpush1.bf16.msra.mxu0 0
    %2827 = vmatprep.subr.bf16.mxu0 0
    %2828 = vmatpush1.bf16.msra.mxu0 0
    %2829 = vmatprep.subr.bf16.mxu0 0
    %2830 = vmatpush1.bf16.msra.mxu0 %v2518
    %2831 = vmatprep.subr.bf16.mxu0 0
    %2832 = vmatpush1.bf16.msra.mxu0 %v2517
    %2833 = vmatprep.subr.bf16.mxu0 0
    %2834 = vmatpush2.bf16.msra.mxu0 0
    %2835 = vmatprep.subr.bf16.mxu0 0
    %2836 = vmatpush2.bf16.msra.mxu0 0
    %2837 = vmatprep.subr.bf16.mxu0 0
    %2838 = vmatpush2.bf16.msra.mxu0 0
    %2839 = vmatprep.subr.bf16.mxu0 0
    %2840 = vmatpush2.bf16.msra.mxu0 0
    %2841 = vmatprep.subr.bf16.mxu0 0
    %2842 = vmatpush2.bf16.msra.mxu0 0
    %2843 = vmatprep.subr.bf16.mxu0 0
    %2844 = vmatpush2.bf16.msra.mxu0 0
    %2845 = vmatprep.subr.bf16.mxu0 0
    %2846 = vmatpush2.bf16.msra.mxu0 0
    %2847 = vmatprep.subr.bf16.mxu0 0
    %2848 = vmatpush2.bf16.msra.mxu0 0
    %2849 = vmatprep.mubr.bf16.mxu0 0
    %2850 = vmatmul.mubr.bf16.gmra.mxu0 %v2815
    %v2851 = vpop.f32.mrf.mxu0
    %v2852 = vadd.f32 0.0, %v2851
    %v2853 = vpop.f32.mrf.mxu0
    %v2854 = vpop.f32.mrf.mxu0
    %v2855 = vpop.f32.mrf.mxu0
    %2856 = vdwg.mxu0
    %v2857 = vadd.f32 %v2809, %v2852
    %v2858 = vtanh.pop %v2857
    %v2859 = vxor.u32 %v2857, 2147483648
    %v2860 = vmul.f32 %v2859, 1.442695
    %v2861 = vpow.pop %v2860
    %v2862 = vadd.f32 %v2861, 1.0
    %v2863 = vrcp.pop %v2862
    %v2864 = vmul.f32 1.0, %v2863
    %v2865 = vsel %vm57, %v2858, %v2864
    %v2866 = vmul.f32 %v2865, %v2802
    %2868 = vrot.lane.b32.xlu0 %v2865, 64
    %v2869 = vpop.permute.xlu0 %2868
    %v2871 = vmul.f32 %v2865, %v2869
    %2873 = vrot.lane.b32.xlu0 %v2871, 32
    %v2874 = vpop.permute.xlu0 %2873
    %v2876 = vadd.f32 %v2866, %v2874
    %v2877 = vtanh.pop %v2876
    %2879 = vrot.lane.b32.xlu0 %v2877, 64
    %v2880 = vpop.permute.xlu0 %2879
    %v2882 = vmul.f32 %v2865, %v2880
    %v2883 = vld [vmem:[%s610] sm:$0xff]
    %v2884 = vpack.c.bf16 %v2882, %v2882
    %2886 = vrot.lane.b32.xlu0 %v2884, 32
    %v2887 = vpop.permute.xlu0 %2886
    %v2889 = vsel %vm113, %v2887, 0
    %2891 = vmatprep.subr.bf16.mxu0 0
    %2892 = vmatpush1.bf16.msra.mxu0 0
    %2893 = vmatprep.subr.bf16.mxu0 0
    %2894 = vmatpush1.bf16.msra.mxu0 0
    %2895 = vmatprep.subr.bf16.mxu0 0
    %2896 = vmatpush1.bf16.msra.mxu0 0
    %2897 = vmatprep.subr.bf16.mxu0 0
    %2898 = vmatpush1.bf16.msra.mxu0 0
    %2899 = vmatprep.subr.bf16.mxu0 0
    %2900 = vmatpush1.bf16.msra.mxu0 0
    %2901 = vmatprep.subr.bf16.mxu0 0
    %2902 = vmatpush1.bf16.msra.mxu0 0
    %2903 = vmatprep.subr.bf16.mxu0 0
    %2904 = vmatpush1.bf16.msra.mxu0 %v2518
    %2905 = vmatprep.subr.bf16.mxu0 0
    %2906 = vmatpush1.bf16.msra.mxu0 %v2517
    %2907 = vmatprep.subr.bf16.mxu0 0
    %2908 = vmatpush2.bf16.msra.mxu0 0
    %2909 = vmatprep.subr.bf16.mxu0 0
    %2910 = vmatpush2.bf16.msra.mxu0 0
    %2911 = vmatprep.subr.bf16.mxu0 0
    %2912 = vmatpush2.bf16.msra.mxu0 0
    %2913 = vmatprep.subr.bf16.mxu0 0
    %2914 = vmatpush2.bf16.msra.mxu0 0
    %2915 = vmatprep.subr.bf16.mxu0 0
    %2916 = vmatpush2.bf16.msra.mxu0 0
    %2917 = vmatprep.subr.bf16.mxu0 0
    %2918 = vmatpush2.bf16.msra.mxu0 0
    %2919 = vmatprep.subr.bf16.mxu0 0
    %2920 = vmatpush2.bf16.msra.mxu0 0
    %2921 = vmatprep.subr.bf16.mxu0 0
    %2922 = vmatpush2.bf16.msra.mxu0 0
    %2923 = vmatprep.mubr.bf16.mxu0 0
    %2924 = vmatmul.mubr.bf16.gmra.mxu0 %v2889
    %v2925 = vpop.f32.mrf.mxu0
    %v2926 = vadd.f32 0.0, %v2925
    %v2927 = vpop.f32.mrf.mxu0
    %v2928 = vpop.f32.mrf.mxu0
    %v2929 = vpop.f32.mrf.mxu0
    %2930 = vdwg.mxu0
    %v2931 = vadd.f32 %v2883, %v2926
    %v2932 = vtanh.pop %v2931
    %v2933 = vxor.u32 %v2931, 2147483648
    %v2934 = vmul.f32 %v2933, 1.442695
    %v2935 = vpow.pop %v2934
    %v2936 = vadd.f32 %v2935, 1.0
    %v2937 = vrcp.pop %v2936
    %v2938 = vmul.f32 1.0, %v2937
    %v2939 = vsel %vm57, %v2932, %v2938
    %v2940 = vmul.f32 %v2939, %v2876
    %2942 = vrot.lane.b32.xlu0 %v2939, 64
    %v2943 = vpop.permute.xlu0 %2942
    %v2945 = vmul.f32 %v2939, %v2943
    %2947 = vrot.lane.b32.xlu0 %v2945, 32
    %v2948 = vpop.permute.xlu0 %2947
    %v2950 = vadd.f32 %v2940, %v2948
    %v2951 = vtanh.pop %v2950
    %2953 = vrot.lane.b32.xlu0 %v2951, 64
    %v2954 = vpop.permute.xlu0 %2953
    %v2956 = vmul.f32 %v2939, %v2954
    %v2957 = vld [vmem:[%s691] sm:$0xff]
    %v2958 = vpack.c.bf16 %v2956, %v2956
    %2960 = vrot.lane.b32.xlu0 %v2958, 32
    %v2961 = vpop.permute.xlu0 %2960
    %v2963 = vsel %vm113, %v2961, 0
    %2965 = vmatprep.subr.bf16.mxu0 0
    %2966 = vmatpush1.bf16.msra.mxu0 0
    %2967 = vmatprep.subr.bf16.mxu0 0
    %2968 = vmatpush1.bf16.msra.mxu0 0
    %2969 = vmatprep.subr.bf16.mxu0 0
    %2970 = vmatpush1.bf16.msra.mxu0 0
    %2971 = vmatprep.subr.bf16.mxu0 0
    %2972 = vmatpush1.bf16.msra.mxu0 0
    %2973 = vmatprep.subr.bf16.mxu0 0
    %2974 = vmatpush1.bf16.msra.mxu0 0
    %2975 = vmatprep.subr.bf16.mxu0 0
    %2976 = vmatpush1.bf16.msra.mxu0 0
    %2977 = vmatprep.subr.bf16.mxu0 0
    %2978 = vmatpush1.bf16.msra.mxu0 %v2518
    %2979 = vmatprep.subr.bf16.mxu0 0
    %2980 = vmatpush1.bf16.msra.mxu0 %v2517
    %2981 = vmatprep.subr.bf16.mxu0 0
    %2982 = vmatpush2.bf16.msra.mxu0 0
    %2983 = vmatprep.subr.bf16.mxu0 0
    %2984 = vmatpush2.bf16.msra.mxu0 0
    %2985 = vmatprep.subr.bf16.mxu0 0
    %2986 = vmatpush2.bf16.msra.mxu0 0
    %2987 = vmatprep.subr.bf16.mxu0 0
    %2988 = vmatpush2.bf16.msra.mxu0 0
    %2989 = vmatprep.subr.bf16.mxu0 0
    %2990 = vmatpush2.bf16.msra.mxu0 0
    %2991 = vmatprep.subr.bf16.mxu0 0
    %2992 = vmatpush2.bf16.msra.mxu0 0
    %2993 = vmatprep.subr.bf16.mxu0 0
    %2994 = vmatpush2.bf16.msra.mxu0 0
    %2995 = vmatprep.subr.bf16.mxu0 0
    %2996 = vmatpush2.bf16.msra.mxu0 0
    %2997 = vmatprep.mubr.bf16.mxu0 0
    %2998 = vmatmul.mubr.bf16.gmra.mxu0 %v2963
    %v2999 = vpop.f32.mrf.mxu0
    %v3000 = vadd.f32 0.0, %v2999
    %v3001 = vpop.f32.mrf.mxu0
    %v3002 = vpop.f32.mrf.mxu0
    %v3003 = vpop.f32.mrf.mxu0
    %3004 = vdwg.mxu0
    %v3005 = vadd.f32 %v2957, %v3000
    %v3006 = vtanh.pop %v3005
    %v3007 = vxor.u32 %v3005, 2147483648
    %v3008 = vmul.f32 %v3007, 1.442695
    %v3009 = vpow.pop %v3008
    %v3010 = vadd.f32 %v3009, 1.0
    %v3011 = vrcp.pop %v3010
    %v3012 = vmul.f32 1.0, %v3011
    %v3013 = vsel %vm57, %v3006, %v3012
    %v3014 = vmul.f32 %v3013, %v2950
    %3016 = vrot.lane.b32.xlu0 %v3013, 64
    %v3017 = vpop.permute.xlu0 %3016
    %v3019 = vmul.f32 %v3013, %v3017
    %3021 = vrot.lane.b32.xlu0 %v3019, 32
    %v3022 = vpop.permute.xlu0 %3021
    %v3024 = vadd.f32 %v3014, %v3022
    %v3025 = vtanh.pop %v3024
    %3027 = vrot.lane.b32.xlu0 %v3025, 64
    %v3028 = vpop.permute.xlu0 %3027
    %v3030 = vmul.f32 %v3013, %v3028
    %v3031 = vld [vmem:[%s772] sm:$0xff]
    %v3032 = vpack.c.bf16 %v3030, %v3030
    %3034 = vrot.lane.b32.xlu0 %v3032, 32
    %v3035 = vpop.permute.xlu0 %3034
    %v3037 = vsel %vm113, %v3035, 0
    %3039 = vmatprep.subr.bf16.mxu0 0
    %3040 = vmatpush1.bf16.msra.mxu0 0
    %3041 = vmatprep.subr.bf16.mxu0 0
    %3042 = vmatpush1.bf16.msra.mxu0 0
    %3043 = vmatprep.subr.bf16.mxu0 0
    %3044 = vmatpush1.bf16.msra.mxu0 0
    %3045 = vmatprep.subr.bf16.mxu0 0
    %3046 = vmatpush1.bf16.msra.mxu0 0
    %3047 = vmatprep.subr.bf16.mxu0 0
    %3048 = vmatpush1.bf16.msra.mxu0 0
    %3049 = vmatprep.subr.bf16.mxu0 0
    %3050 = vmatpush1.bf16.msra.mxu0 0
    %3051 = vmatprep.subr.bf16.mxu0 0
    %3052 = vmatpush1.bf16.msra.mxu0 %v2518
    %3053 = vmatprep.subr.bf16.mxu0 0
    %3054 = vmatpush1.bf16.msra.mxu0 %v2517
    %3055 = vmatprep.subr.bf16.mxu0 0
    %3056 = vmatpush2.bf16.msra.mxu0 0
    %3057 = vmatprep.subr.bf16.mxu0 0
    %3058 = vmatpush2.bf16.msra.mxu0 0
    %3059 = vmatprep.subr.bf16.mxu0 0
    %3060 = vmatpush2.bf16.msra.mxu0 0
    %3061 = vmatprep.subr.bf16.mxu0 0
    %3062 = vmatpush2.bf16.msra.mxu0 0
    %3063 = vmatprep.subr.bf16.mxu0 0
    %3064 = vmatpush2.bf16.msra.mxu0 0
    %3065 = vmatprep.subr.bf16.mxu0 0
    %3066 = vmatpush2.bf16.msra.mxu0 0
    %3067 = vmatprep.subr.bf16.mxu0 0
    %3068 = vmatpush2.bf16.msra.mxu0 0
    %3069 = vmatprep.subr.bf16.mxu0 0
    %3070 = vmatpush2.bf16.msra.mxu0 0
    %3071 = vmatprep.mubr.bf16.mxu0 0
    %3072 = vmatmul.mubr.bf16.gmra.mxu0 %v3037
    %v3073 = vpop.f32.mrf.mxu0
    %v3074 = vadd.f32 0.0, %v3073
    %v3075 = vpop.f32.mrf.mxu0
    %v3076 = vpop.f32.mrf.mxu0
    %v3077 = vpop.f32.mrf.mxu0
    %3078 = vdwg.mxu0
    %v3079 = vadd.f32 %v3031, %v3074
    %v3080 = vtanh.pop %v3079
    %v3081 = vxor.u32 %v3079, 2147483648
    %v3082 = vmul.f32 %v3081, 1.442695
    %v3083 = vpow.pop %v3082
    %v3084 = vadd.f32 %v3083, 1.0
    %v3085 = vrcp.pop %v3084
    %v3086 = vmul.f32 1.0, %v3085
    %v3087 = vsel %vm57, %v3080, %v3086
    %v3088 = vmul.f32 %v3087, %v3024
    %3090 = vrot.lane.b32.xlu0 %v3087, 64
    %v3091 = vpop.permute.xlu0 %3090
    %v3093 = vmul.f32 %v3087, %v3091
    %3095 = vrot.lane.b32.xlu0 %v3093, 32
    %v3096 = vpop.permute.xlu0 %3095
    %v3098 = vadd.f32 %v3088, %v3096
    %v3099 = vtanh.pop %v3098
    %3101 = vrot.lane.b32.xlu0 %v3099, 64
    %v3102 = vpop.permute.xlu0 %3101
    %v3104 = vmul.f32 %v3087, %v3102
    %v3105 = vpack.c.bf16 %v3104, %v3104
    %v3106 = vld [vmem:[%s4] sm:$0xf]
    %v3107 = vld [vmem:[%s4 + $0x4] sm:$0xf]
    %v3108 = vld [vmem:[%s4 + $0x8] sm:$0xf]
    %v3109 = vld [vmem:[%s4 + $0xc] sm:$0xf]
    %v3110 = vld [vmem:[%s5] sm:$0x1]
    %v3112 = vlaneseq
    %v3113 = vshrl.u32 %v3112, 7
    %v3114 = vsub.s32 0, %v3113
    %v3115 = vrot.slane %v3110, %v3114
    %3118 = vrot.lane.b32.xlu0 %v3105, 32
    %v3119 = vpop.permute.xlu0 %3118
    %v3124 = vunpack.c.l.b16 %v3106
    %v3125 = vunpack.c.l.b16 %v3107
    %v3126 = vunpack.c.l.b16 %v3108
    %v3127 = vunpack.c.l.b16 %v3109
    %v3128 = vpack.c.b16 %v3125, %v3124
    %v3129 = vpack.c.b16 %v3127, %v3126
    %v3133 = vsel %vm113, %v3119, 0
    %3135 = vmatprep.subr.bf16.mxu0 0
    %3136 = vmatpush1.bf16.msra.mxu0 0
    %3137 = vmatprep.subr.bf16.mxu0 0
    %3138 = vmatpush1.bf16.msra.mxu0 0
    %3139 = vmatprep.subr.bf16.mxu0 0
    %3140 = vmatpush1.bf16.msra.mxu0 0
    %3141 = vmatprep.subr.bf16.mxu0 0
    %3142 = vmatpush1.bf16.msra.mxu0 0
    %3143 = vmatprep.subr.bf16.mxu0 0
    %3144 = vmatpush1.bf16.msra.mxu0 0
    %3145 = vmatprep.subr.bf16.mxu0 0
    %3146 = vmatpush1.bf16.msra.mxu0 0
    %3147 = vmatprep.subr.bf16.mxu0 0
    %3148 = vmatpush1.bf16.msra.mxu0 %v3129
    %3149 = vmatprep.subr.bf16.mxu0 0
    %3150 = vmatpush1.bf16.msra.mxu0 %v3128
    %3151 = vmatprep.subr.bf16.mxu0 0
    %3152 = vmatpush2.bf16.msra.mxu0 0
    %3153 = vmatprep.subr.bf16.mxu0 0
    %3154 = vmatpush2.bf16.msra.mxu0 0
    %3155 = vmatprep.subr.bf16.mxu0 0
    %3156 = vmatpush2.bf16.msra.mxu0 0
    %3157 = vmatprep.subr.bf16.mxu0 0
    %3158 = vmatpush2.bf16.msra.mxu0 0
    %3159 = vmatprep.subr.bf16.mxu0 0
    %3160 = vmatpush2.bf16.msra.mxu0 0
    %3161 = vmatprep.subr.bf16.mxu0 0
    %3162 = vmatpush2.bf16.msra.mxu0 0
    %3163 = vmatprep.subr.bf16.mxu0 0
    %3164 = vmatpush2.bf16.msra.mxu0 0
    %3165 = vmatprep.subr.bf16.mxu0 0
    %3166 = vmatpush2.bf16.msra.mxu0 0
    %3167 = vmatprep.mubr.bf16.mxu0 0
    %3168 = vmatmul.mubr.bf16.gmra.mxu0 %v3133
    %v3169 = vpop.f32.mrf.mxu0
    %v3170 = vadd.f32 %v3115, %v3169
    %v3171 = vpop.f32.mrf.mxu0
    %v3172 = vpop.f32.mrf.mxu0
    %v3173 = vpop.f32.mrf.mxu0
    %3174 = vdwg.mxu0
    %3175 = vst [vmem:[#allocation9] sm:$0xff] %v3170
    // Predicated region
    $region34: #{tpu_custom_call.1} parent=1 // pred_check
      _
    $region35: #{tpu_custom_call.1} parent=1 // pred_check_branch
      %3177 = sbr.rel (0) target = $region37
    $region36: #{tpu_custom_call.1} parent=1 // pred_region
      %s3179 = ssub.s32 128, 128
      %3180 = vsyncadd [#allocation6], %s3179
      %s3182 = sshll.u32 [#allocation9], 4
      %s3183 = int_to_ptr.vmem [resolvable:$true] %s3182
      %3185 = dma.vmem_to_hbm [thread:$0]  %s3183, 128, %s6, [#allocation6]
    $region37: #{tpu_custom_call.1} parent=1 // pred_fallthru
      _
    // Predicated region
    $region38: #{tpu_custom_call.1} parent=1 // pred_check
      _
    $region39: #{tpu_custom_call.1} parent=1 // pred_check_branch
      %3187 = sbr.rel (0) target = $region41
    $region40: #{tpu_custom_call.1} parent=1 // pred_region
      %3188 = dma.done [#allocation6], 128
    $region41: #{tpu_custom_call.1} parent=1 // pred_fallthru
      _
    %3189 = vsyncpa [#allocation5], 1
    %3190 = vsyncpa [#allocation8], 1
    %3191 = vsyncpa [#allocation6], 1

</llo_original>
